<compile_context>
chip_gen: v6e
topology: v6e:2x2x1
jax: 0.10.0
libtpu: 0.0.40
codegen_flags: <defaults>
</compile_context>

<pallas_src>
import functools
import math

import jax
import jax.numpy as jnp
import numpy as np
from jax.experimental import pallas as pl
from jax.experimental.pallas import tpu as pltpu

NEG_SLOPE = 0.2                        # DGL GATConv default negative_slope
_VMEM_LIMIT_BYTES = 48 * 1024 * 1024   # <= v7x 64 MiB physical; ample headroom on v5e/v6e


def _round_up(v, m):
    return (v + m - 1) // m * m


# ----------------------------------------------- fused GAT + MLP head kernel
def _gat_head_kernel(nbr_ref, cnt_ref,                     # scalar-prefetch (SMEM)
                     xd_ref, xs_ref, xt_ref, adj_ref,      # tiled inputs
                     w_ref, war_ref, walt_ref, gb_ref,     # small resident params
                     *rest, num_heads, out_feats, seq_len, n_mlp, wx_col):
    mlp_refs = rest[:2 * n_mlp]
    out_ref = rest[2 * n_mlp]
    er_ref, m_ref, l_ref, acc_ref, emb_ref = rest[2 * n_mlp + 1:]

    i = pl.program_id(0)
    j = pl.program_id(1)
    hf = num_heads * out_feats

    @pl.when(j == 0)
    def _init():
        # dst-side attention term er = x_dst @ (W @ ar): tiny K=in_feats matmul,
        # computed once per dst block and kept resident in scratch.
        er_ref[...] = jnp.dot(xd_ref[...], war_ref[...],
                              preferred_element_type=jnp.float32)
        m_ref[...] = jnp.full_like(m_ref, -1e30)
        l_ref[...] = jnp.zeros_like(l_ref)
        acc_ref[...] = jnp.zeros_like(acc_ref)

    # Only src blocks that actually contain edges reach real compute; padded
    # neighbor-list entries repeat the previous block index (no extra DMA) and
    # are skipped here.
    @pl.when(j < cnt_ref[i])
    def _compute():
        # In-tile src projection (K = in_feats, trivial): avoids the HBM
        # round-trip of feat / el and a separate kernel launch.
        feat_src = jnp.dot(xs_ref[...], w_ref[...],
                           preferred_element_type=jnp.float32).astype(jnp.bfloat16)
        # el^T = (W @ al)^T @ x_src^T -> (H, TS) with the src axis on lanes,
        # so no in-kernel transpose is needed for the broadcast below.
        el_t = jnp.dot(walt_ref[...], xt_ref[...],
                       preferred_element_type=jnp.float32)
        # int8 0/1 adjacency -> f32 multiplier, cast once and reused per head.
        mask = adj_ref[...].astype(jnp.float32)          # (TD, TS)
        er = er_ref[...]                                 # (TD, H) f32

        # Online masked edge softmax + aggregation, one pass per head (H tiny).
        # Note: the running max is over unmasked logits; padded src columns are
        # safe only because x is zero-padded (el == 0 there).
        for h in range(num_heads):
            e = er[:, h:h + 1] + el_t[h:h + 1, :]        # (TD, TS) logits src -> dst
            e = jnp.maximum(e, NEG_SLOPE * e)            # LeakyReLU (mul + max)
            m_prev = m_ref[:, h:h + 1]
            m_new = jnp.maximum(m_prev, jnp.max(e, axis=-1, keepdims=True))
            corr = jnp.exp(m_prev - m_new)
            p = jnp.exp(e - m_new) * mask                # f32 softmax math
            l_ref[:, h:h + 1] = corr * l_ref[:, h:h + 1] + jnp.sum(p, axis=-1, keepdims=True)
            cs = slice(h * out_feats, (h + 1) * out_feats)
            acc_ref[:, cs] = corr * acc_ref[:, cs] + jnp.dot(
                p.astype(jnp.bfloat16), feat_src[:, cs],
                preferred_element_type=jnp.float32)
            m_ref[:, h:h + 1] = m_new

    @pl.when(j == pl.num_programs(1) - 1)
    def _finalize():
        td = acc_ref.shape[0]
        pb = td // seq_len                               # whole paths in this dst block

        # Normalize each head (EUP reciprocal) + GATConv bias; the finished
        # (TD, HF) GAT tile stays resident in acc_ref.
        inv_l = pl.reciprocal(jnp.maximum(l_ref[...], 1e-30), approx=True)
        gb = gb_ref[...]
        for h in range(num_heads):
            cs = slice(h * out_feats, (h + 1) * out_feats)
            acc_ref[:, cs] = acc_ref[:, cs] * inv_l[:, h:h + 1] + gb[:, cs]

        # gatEmb[p] = concat over s of GAT row (p*seq_len + s): gather with
        # strided sublane reads into a small scratch slab, then run layer 1
        # (+ the linear_trans column packed at wx_col of the padded W1) as a
        # single K = seq_len*HF MXU pass instead of seq_len K=HF passes.
        for s in range(seq_len):
            emb_ref[:, s * hf:(s + 1) * hf] = acc_ref[pl.ds(s, pb, stride=seq_len), :]
        emb = emb_ref[...].astype(jnp.bfloat16)

        w1_ref, b1_ref = mlp_refs[0], mlp_refs[1]
        h1 = jnp.dot(emb, w1_ref[...], preferred_element_type=jnp.float32)
        wx = h1[:, wx_col:wx_col + 1]                    # linear_trans (no bias, no ReLU)
        act = jnp.maximum(h1 + b1_ref[...], 0.0).astype(jnp.bfloat16)
        for li in range(1, n_mlp - 1):
            act = jnp.maximum(
                jnp.dot(act, mlp_refs[2 * li][...],
                        preferred_element_type=jnp.float32) + mlp_refs[2 * li + 1][...],
                0.0).astype(jnp.bfloat16)
        y = jnp.dot(act, mlp_refs[2 * (n_mlp - 1)][...],
                    preferred_element_type=jnp.float32) + mlp_refs[2 * n_mlp - 1][...]
        out_ref[...] = y + wx


# -------------------------------------------------- parameter preprocessing
def prepare_params(params, *, num_heads, out_feats):
    """One-time (numpy, non-traced) parameter preprocessing:
       * attention vectors folded into the projection: W_ar = W @ ar_pack and
         (W @ al_pack)^T so er / el^T are single tiny matmuls in-kernel,
       * bf16 casts of all MXU operands,
       * MLP weights zero-padded to 128-lane multiples, with the bias-free
         linear_trans packed into a spare column (`wx_col`) of layer 1."""
    H, F = num_heads, out_feats
    HF = H * F

    gat_w = np.asarray(params["gat_w"], np.float32)          # (in_feats, HF)
    attn_l = np.asarray(params["attn_l"], np.float32)        # (H, F)
    attn_r = np.asarray(params["attn_r"], np.float32)
    ar_pack = np.zeros((HF, H), np.float32)
    al_pack = np.zeros((HF, H), np.float32)
    for h in range(H):
        ar_pack[h * F:(h + 1) * F, h] = attn_r[h]
        al_pack[h * F:(h + 1) * F, h] = attn_l[h]
    w_ar = gat_w @ ar_pack                                   # (in_feats, H)
    w_al = gat_w @ al_pack                                   # (in_feats, H)

    mlp_w = [np.asarray(w, np.float32) for w in params["mlp_w"]]
    mlp_b = [np.asarray(b, np.float32).reshape(1, -1) for b in params["mlp_b"]]
    wt = np.asarray(params["wt"], np.float32)
    widths = [w.shape[1] for w in mlp_w]                     # [180,150,128,80,64,32,1]

    w_pad, b_pad = [], []
    wx_col = widths[0]
    cols = _round_up(widths[0] + 1, 128)                     # room for the linear_trans column
    w0 = np.zeros((mlp_w[0].shape[0], cols), np.float32)
    w0[:, :widths[0]] = mlp_w[0]
    w0[:, wx_col] = wt[:, 0]
    b0 = np.zeros((1, cols), np.float32)
    b0[:, :widths[0]] = mlp_b[0]
    w_pad.append(w0)
    b_pad.append(b0)
    prev = cols
    for i in range(1, len(mlp_w)):
        cols = widths[i] if i == len(mlp_w) - 1 else _round_up(widths[i], 128)
        wi = np.zeros((prev, cols), np.float32)              # zero rows kill padded/wx lanes
        wi[:mlp_w[i].shape[0], :widths[i]] = mlp_w[i]
        bi = np.zeros((1, cols), np.float32)
        bi[:, :widths[i]] = mlp_b[i]
        w_pad.append(wi)
        b_pad.append(bi)
        prev = cols

    prep = {
        "gat_w": jnp.asarray(gat_w, jnp.bfloat16),
        "w_ar": jnp.asarray(w_ar, jnp.bfloat16),
        "w_al_t": jnp.asarray(w_al.T, jnp.bfloat16),         # (H, in_feats)
        "gat_b": jnp.asarray(np.asarray(params["gat_b"], np.float32).reshape(1, HF)),
        "mlp_w": [jnp.asarray(w, jnp.bfloat16) for w in w_pad],
        "mlp_b": [jnp.asarray(b, jnp.float32) for b in b_pad],
    }
    return prep, wx_col


# ------------------------------------------------------------- tile choice
def choose_tiles(num_nodes, seq_max_len, *, dst_tile=512, src_tile=1024):
    """dst tiles hold whole paths (multiple of 8*seq_max_len, and of 32 for the
    int8 adjacency sublane tiling); src tiles are lane-aligned (128).  dst_tile
    is capped so the 'parallel' dst axis has >= 2 blocks whenever the problem
    allows it (keeps both v7x TensorCores busy)."""
    dst_unit = math.lcm(8 * seq_max_len, 32)
    max_dst = _round_up(num_nodes, dst_unit)
    dst_tile = min(_round_up(dst_tile, dst_unit), max_dst)
    while dst_tile > dst_unit and _round_up(num_nodes, dst_tile) // dst_tile < 2:
        dst_tile -= dst_unit
    src_tile = min(_round_up(src_tile, 128), _round_up(num_nodes, 128))
    return dst_tile, src_tile


# ----------------------------------------------- graph (adjacency) preprocessing
def prepare_graph(adj_np, *, seq_max_len, dst_tile, src_tile):
    """One-time host-side (numpy) preprocessing of the dense self-looped
    adjacency of the metapath-reachable graph:
       * pad + cast to int8 once, outside the jitted path,
       * per-dst-block neighbor lists / counts of nonzero src blocks, which
         drive the data-dependent src index_map (block sparsity)."""
    adj_np = np.asarray(adj_np)
    N = adj_np.shape[0]
    assert np.all(np.diag(adj_np) > 0), \
        "adjacency must contain self-loops (dgl.add_self_loop) so every dst has degree >= 1"
    n_dst_pad = _round_up(N, dst_tile)
    n_src_pad = _round_up(N, src_tile)
    adj_pad = np.zeros((n_dst_pad, n_src_pad), np.int8)
    adj_pad[:N, :N] = (adj_np > 0).astype(np.int8)

    n_dst = n_dst_pad // dst_tile
    n_src = n_src_pad // src_tile
    blk = adj_pad.reshape(n_dst, dst_tile, n_src, src_tile).any(axis=(1, 3))
    cnt = blk.sum(axis=1).astype(np.int32)
    max_nb = max(int(cnt.max()), 1)
    nbr = np.zeros((n_dst, max_nb), np.int32)
    for i in range(n_dst):
        idx = np.nonzero(blk[i])[0]
        if idx.size:
            nbr[i, :idx.size] = idx
            nbr[i, idx.size:] = idx[-1]   # repeat last -> pipeline re-uses the tile, no extra DMA
    return {
        "adj": jnp.asarray(adj_pad),
        "nbr": jnp.asarray(nbr),
        "cnt": jnp.asarray(cnt),
        "max_nb": max_nb,
        "n_dst": n_dst,
        "n_dst_pad": n_dst_pad,
        "n_src_pad": n_src_pad,
    }


# ------------------------------------------------------------ forward wrapper
def route_select_forward(x, adj_pad, nbr, cnt, prep, *, num_heads, out_feats,
                         seq_max_len, wx_col, dst_tile, src_tile,
                         n_dst, max_nb, n_dst_pad, n_src_pad):
    """Block-sparse tiled GATConv (online masked edge-softmax) fused with the
    node-feature projection, the MLP head and linear_trans.  `adj_pad` is the
    int8 padded dense adjacency (rows dst, cols src, self-loops included);
    node order is path-major (seq_max_len contiguous nodes per path)."""
    N, in_feats = x.shape
    H, F = num_heads, out_feats
    HF = H * F
    L = seq_max_len
    assert N % L == 0, "nodes must be path-major with seq_max_len nodes per path"
    P = N // L
    pb = dst_tile // L
    P_pad = n_dst_pad // L
    n_mlp = len(prep["mlp_w"])

    # Zero-padded node features (tiny: N x in_feats); src features are also
    # provided transposed so el^T comes out in (H, src) lane layout in-kernel.
    xb = x.astype(jnp.bfloat16)
    x_d = jnp.zeros((n_dst_pad, in_feats), jnp.bfloat16).at[:N].set(xb)
    x_s = jnp.zeros((n_src_pad, in_feats), jnp.bfloat16).at[:N].set(xb)
    x_t = x_s.T                                              # (in_feats, n_src_pad)

    mlp_args, mlp_specs = [], []
    for w, b in zip(prep["mlp_w"], prep["mlp_b"]):
        mlp_args += [w, b]
        mlp_specs += [pl.BlockSpec(w.shape, lambda i, j, nb, ct: (0, 0)),
                      pl.BlockSpec(b.shape, lambda i, j, nb, ct: (0, 0))]

    kernel = functools.partial(_gat_head_kernel, num_heads=H, out_feats=F,
                               seq_len=L, n_mlp=n_mlp, wx_col=wx_col)

    grid_spec = pltpu.PrefetchScalarGridSpec(
        num_scalar_prefetch=2,
        grid=(n_dst, max_nb),                               # src (reduction) axis last
        in_specs=[
            pl.BlockSpec((dst_tile, in_feats), lambda i, j, nb, ct: (i, 0)),        # x (dst)
            pl.BlockSpec((src_tile, in_feats), lambda i, j, nb, ct: (nb[i, j], 0)), # x (src)
            pl.BlockSpec((in_feats, src_tile), lambda i, j, nb, ct: (0, nb[i, j])), # x^T (src)
            pl.BlockSpec((dst_tile, src_tile), lambda i, j, nb, ct: (i, nb[i, j])), # adj (int8)
            pl.BlockSpec((in_feats, HF), lambda i, j, nb, ct: (0, 0)),              # W
            pl.BlockSpec((in_feats, H), lambda i, j, nb, ct: (0, 0)),               # W @ ar
            pl.BlockSpec((H, in_feats), lambda i, j, nb, ct: (0, 0)),               # (W @ al)^T
            pl.BlockSpec((1, HF), lambda i, j, nb, ct: (0, 0)),                     # GAT bias
            *mlp_specs],
        out_specs=pl.BlockSpec((pb, 1), lambda i, j, nb, ct: (i, 0)),
        scratch_shapes=[pltpu.VMEM((dst_tile, H), jnp.float32),    # er (dst attention term)
                        pltpu.VMEM((dst_tile, H), jnp.float32),    # running max
                        pltpu.VMEM((dst_tile, H), jnp.float32),    # running sum
                        pltpu.VMEM((dst_tile, HF), jnp.float32),   # running alpha @ feat
                        pltpu.VMEM((pb, L * HF), jnp.float32)])    # gatEmb staging slab

    out_pad = pl.pallas_call(
        kernel,
        grid_spec=grid_spec,
        out_shape=jax.ShapeDtypeStruct((P_pad, 1), jnp.float32),
        compiler_params=pltpu.CompilerParams(
            dimension_semantics=("parallel", "arbitrary"),
            vmem_limit_bytes=_VMEM_LIMIT_BYTES),
    )(nbr, cnt, x_d, x_s, x_t, adj_pad, prep["gat_w"], prep["w_ar"],
      prep["w_al_t"], prep["gat_b"], *mlp_args)

    return out_pad[:P]


# -------------------------------------------------------- pure-JAX reference
def route_select_reference(x, adj, params, *, num_heads, out_feats, seq_max_len):
    H, F = num_heads, out_feats
    N = x.shape[0]
    feat = x @ params["gat_w"]
    featH = feat.reshape(N, H, F)
    el = jnp.einsum("nhf,hf->nh", featH, params["attn_l"])
    er = jnp.einsum("nhf,hf->nh", featH, params["attn_r"])
    e = er[:, None, :] + el[None, :, :]                      # (dst, src, H)
    e = jnp.where(e > 0, e, NEG_SLOPE * e)
    mask = (adj > 0)[:, :, None]
    e = jnp.where(mask, e, -1e30)
    a = jax.nn.softmax(e, axis=1)
    rst = jnp.einsum("dsh,shf->dhf", a, featH).reshape(N, H * F) + params["gat_b"]
    emb = rst.reshape(-1, H * F * seq_max_len)
    h = emb
    n_layers = len(params["mlp_w"])
    for i, (w, b) in enumerate(zip(params["mlp_w"], params["mlp_b"])):
        h = h @ w + b
        if i < n_layers - 1:
            h = jnp.maximum(h, 0.0)
    return h + emb @ params["wt"]


# --------------------------------------------------------------------- main
if __name__ == "__main__":
    in_feats, out_feats, num_heads, seq_max_len = 8, 4, 2, 8
    num_paths = 2
    N = num_paths * seq_max_len
    D = out_feats * num_heads * seq_max_len                  # 64

    key = jax.random.PRNGKey(0)
    ks = iter(jax.random.split(key, 64))

    # Node embeddings ("routeLearningEmbed"), path-major node order.
    x = jax.random.normal(next(ks), (N, in_feats), jnp.float32)

    # Dense adjacency with self-loops (dgl.add_self_loop) + a bidirectional
    # chain inside each path's seq_max_len node group.
    adj = jnp.eye(N, dtype=jnp.float32)
    for p in range(num_paths):
        for i in range(seq_max_len - 1):
            a = p * seq_max_len + i
            adj = adj.at[a + 1, a].set(1.0)
            adj = adj.at[a, a + 1].set(1.0)

    # Deterministic synthetic parameters (not a checkpoint load).
    params = {
        "gat_w": 0.2 * jax.random.normal(next(ks), (in_feats, num_heads * out_feats), jnp.float32),
        "attn_l": 0.2 * jax.random.normal(next(ks), (num_heads, out_feats), jnp.float32),
        "attn_r": 0.2 * jax.random.normal(next(ks), (num_heads, out_feats), jnp.float32),
        "gat_b": 0.05 * jax.random.normal(next(ks), (num_heads * out_feats,), jnp.float32),
    }
    dims = [D, 180, 150, 128, 80, 64, 32, 1]
    mlp_w, mlp_b = [], []
    for i in range(len(dims) - 1):
        mlp_w.append(0.1 * jax.random.normal(next(ks), (dims[i], dims[i + 1]), jnp.float32))
        mlp_b.append(0.05 * jax.random.normal(next(ks), (1, dims[i + 1]), jnp.float32))
    params["mlp_w"] = mlp_w
    params["mlp_b"] = mlp_b
    params["wt"] = 0.1 * jax.random.normal(next(ks), (D, 1), jnp.float32)  # linear_trans (no bias)

    # One-time (numpy, non-traced) parameter + graph preprocessing.
    prep, wx_col = prepare_params(params, num_heads=num_heads, out_feats=out_feats)
    dst_tile, src_tile = choose_tiles(N, seq_max_len)
    g = prepare_graph(np.asarray(adj), seq_max_len=seq_max_len,
                      dst_tile=dst_tile, src_tile=src_tile)

    fwd = jax.jit(functools.partial(
        route_select_forward, num_heads=num_heads, out_feats=out_feats,
        seq_max_len=seq_max_len, wx_col=wx_col,
        dst_tile=dst_tile, src_tile=src_tile,
        n_dst=g["n_dst"], max_nb=g["max_nb"],
        n_dst_pad=g["n_dst_pad"], n_src_pad=g["n_src_pad"]))
    out = jax.block_until_ready(fwd(x, g["adj"], g["nbr"], g["cnt"], prep))

    ref = route_select_reference(x, adj, params, num_heads=num_heads,
                                 out_feats=out_feats, seq_max_len=seq_max_len)

    assert out.shape == (num_paths, 1)
    assert bool(jnp.all(jnp.isfinite(out)))
    err = float(jnp.max(jnp.abs(out - ref)))
    assert err < 1e-1, f"kernel vs reference mismatch: max abs err = {err}"
    # TODO(synk): dgl.metapath_reachable_graph / add_self_loop and writing the
    # result back into batch_graph.nodes['path'].data have no tensor/Pallas
    # equivalent; a dense self-looped adjacency stands in for the reachable
    # graph and the (num_paths, 1) scores are returned directly.
    print("KERNEL_OK")
</pallas_src>

<mosaic_0001>
module attributes {stable_mosaic.version = 11 : i64} {
  func.func @_gat_head_kernel(%arg0: i32, %arg1: i32, %arg2: memref<1x1xi32, #tpu.memory_space<smem>>, %arg3: memref<1xi32, #tpu.memory_space<smem>>, %arg4: memref<64x8xbf16, #tpu.memory_space<vmem>>, %arg5: memref<128x8xbf16, #tpu.memory_space<vmem>>, %arg6: memref<8x128xbf16, #tpu.memory_space<vmem>>, %arg7: memref<64x128xi8, #tpu.memory_space<vmem>>, %arg8: memref<8x8xbf16, #tpu.memory_space<vmem>>, %arg9: memref<8x2xbf16, #tpu.memory_space<vmem>>, %arg10: memref<2x8xbf16, #tpu.memory_space<vmem>>, %arg11: memref<1x8xf32, #tpu.memory_space<vmem>>, %arg12: memref<64x256xbf16, #tpu.memory_space<vmem>>, %arg13: memref<1x256xf32, #tpu.memory_space<vmem>>, %arg14: memref<256x256xbf16, #tpu.memory_space<vmem>>, %arg15: memref<1x256xf32, #tpu.memory_space<vmem>>, %arg16: memref<256x128xbf16, #tpu.memory_space<vmem>>, %arg17: memref<1x128xf32, #tpu.memory_space<vmem>>, %arg18: memref<128x128xbf16, #tpu.memory_space<vmem>>, %arg19: memref<1x128xf32, #tpu.memory_space<vmem>>, %arg20: memref<128x128xbf16, #tpu.memory_space<vmem>>, %arg21: memref<1x128xf32, #tpu.memory_space<vmem>>, %arg22: memref<128x128xbf16, #tpu.memory_space<vmem>>, %arg23: memref<1x128xf32, #tpu.memory_space<vmem>>, %arg24: memref<128x1xbf16, #tpu.memory_space<vmem>>, %arg25: memref<1x1xf32, #tpu.memory_space<vmem>>, %arg26: memref<8x1xf32, #tpu.memory_space<vmem>>, %arg27: memref<64x2xf32, #tpu.memory_space<vmem>>, %arg28: memref<64x2xf32, #tpu.memory_space<vmem>>, %arg29: memref<64x2xf32, #tpu.memory_space<vmem>>, %arg30: memref<64x8xf32, #tpu.memory_space<vmem>>, %arg31: memref<8x64xf32, #tpu.memory_space<vmem>>) attributes {dimension_semantics = [#tpu.dimension_semantics<parallel>, #tpu.dimension_semantics<arbitrary>], iteration_bounds = array<i64: 1, 1>, scalar_prefetch = 2 : i64, scratch_operands = 5 : i64, tpu.core_type = #tpu.core_type<tc>, window_params = [{transform_indices = @transform_0, window_bounds = array<i64: 64, 8>}, {transform_indices = @transform_1, window_bounds = array<i64: 128, 8>}, {transform_indices = @transform_2, window_bounds = array<i64: 8, 128>}, {transform_indices = @transform_3, window_bounds = array<i64: 64, 128>}, {pipeline_mode = #tpu.pipeline_mode<synchronous>, transform_indices = @transform_4, window_bounds = array<i64: 8, 8>}, {pipeline_mode = #tpu.pipeline_mode<synchronous>, transform_indices = @transform_5, window_bounds = array<i64: 8, 2>}, {pipeline_mode = #tpu.pipeline_mode<synchronous>, transform_indices = @transform_6, window_bounds = array<i64: 2, 8>}, {pipeline_mode = #tpu.pipeline_mode<synchronous>, transform_indices = @transform_7, window_bounds = array<i64: 1, 8>}, {pipeline_mode = #tpu.pipeline_mode<synchronous>, transform_indices = @transform_8, window_bounds = array<i64: 64, 256>}, {pipeline_mode = #tpu.pipeline_mode<synchronous>, transform_indices = @transform_9, window_bounds = array<i64: 1, 256>}, {pipeline_mode = #tpu.pipeline_mode<synchronous>, transform_indices = @transform_10, window_bounds = array<i64: 256, 256>}, {pipeline_mode = #tpu.pipeline_mode<synchronous>, transform_indices = @transform_11, window_bounds = array<i64: 1, 256>}, {pipeline_mode = #tpu.pipeline_mode<synchronous>, transform_indices = @transform_12, window_bounds = array<i64: 256, 128>}, {pipeline_mode = #tpu.pipeline_mode<synchronous>, transform_indices = @transform_13, window_bounds = array<i64: 1, 128>}, {pipeline_mode = #tpu.pipeline_mode<synchronous>, transform_indices = @transform_14, window_bounds = array<i64: 128, 128>}, {pipeline_mode = #tpu.pipeline_mode<synchronous>, transform_indices = @transform_15, window_bounds = array<i64: 1, 128>}, {pipeline_mode = #tpu.pipeline_mode<synchronous>, transform_indices = @transform_16, window_bounds = array<i64: 128, 128>}, {pipeline_mode = #tpu.pipeline_mode<synchronous>, transform_indices = @transform_17, window_bounds = array<i64: 1, 128>}, {pipeline_mode = #tpu.pipeline_mode<synchronous>, transform_indices = @transform_18, window_bounds = array<i64: 128, 128>}, {pipeline_mode = #tpu.pipeline_mode<synchronous>, transform_indices = @transform_19, window_bounds = array<i64: 1, 128>}, {pipeline_mode = #tpu.pipeline_mode<synchronous>, transform_indices = @transform_20, window_bounds = array<i64: 128, 1>}, {pipeline_mode = #tpu.pipeline_mode<synchronous>, transform_indices = @transform_21, window_bounds = array<i64: 1, 1>}, {transform_indices = @transform_22, window_bounds = array<i64: 8, 1>}]} {
    %c0_i32 = arith.constant 0 : i32
    %0 = arith.cmpi eq, %arg1, %c0_i32 : i32
    %1 = arith.extui %0 : i1 to i32
    %c0_i32_0 = arith.constant 0 : i32
    %2 = arith.cmpi ne, %1, %c0_i32_0 : i32
    scf.if %2 {
      %c0 = arith.constant 0 : index
      %c0_4 = arith.constant 0 : index
      %11 = vector.load %arg4[%c0, %c0_4] : memref<64x8xbf16, #tpu.memory_space<vmem>>, vector<64x8xbf16>
      %c0_5 = arith.constant 0 : index
      %c0_6 = arith.constant 0 : index
      %12 = vector.load %arg9[%c0_5, %c0_6] : memref<8x2xbf16, #tpu.memory_space<vmem>>, vector<8x2xbf16>
      %cst = arith.constant dense<0.000000e+00> : vector<64x2xf32>
      %13 = tpu.matmul %11, %12, %cst {dimension_numbers = #tpu.dot_dimension_numbers<[1], [0], [0], [1], [0, 0, 1, 1], [], []>} : vector<64x8xbf16>, vector<8x2xbf16>, vector<64x2xf32> -> vector<64x2xf32>
      %c0_7 = arith.constant 0 : index
      %c0_8 = arith.constant 0 : index
      %14 = vector.load %arg27[%c0_7, %c0_8] : memref<64x2xf32, #tpu.memory_space<vmem>>, vector<64x2xf32>
      tpu.vector_store %arg27[%c0_7, %c0_8], %13 {strides = array<i32>} : memref<64x2xf32, #tpu.memory_space<vmem>>, vector<64x2xf32>,
      %cst_9 = arith.constant -1.000000e+30 : f32
      %15 = vector.broadcast %cst_9 : f32 to vector<64x2xf32>
      %c0_10 = arith.constant 0 : index
      %c0_11 = arith.constant 0 : index
      %16 = vector.load %arg28[%c0_10, %c0_11] : memref<64x2xf32, #tpu.memory_space<vmem>>, vector<64x2xf32>
      tpu.vector_store %arg28[%c0_10, %c0_11], %15 {strides = array<i32>} : memref<64x2xf32, #tpu.memory_space<vmem>>, vector<64x2xf32>,
      %cst_12 = arith.constant 0.000000e+00 : f32
      %17 = vector.broadcast %cst_12 : f32 to vector<64x2xf32>
      %c0_13 = arith.constant 0 : index
      %c0_14 = arith.constant 0 : index
      %18 = vector.load %arg29[%c0_13, %c0_14] : memref<64x2xf32, #tpu.memory_space<vmem>>, vector<64x2xf32>
      tpu.vector_store %arg29[%c0_13, %c0_14], %17 {strides = array<i32>} : memref<64x2xf32, #tpu.memory_space<vmem>>, vector<64x2xf32>,
      %cst_15 = arith.constant 0.000000e+00 : f32
      %19 = vector.broadcast %cst_15 : f32 to vector<64x8xf32>
      %c0_16 = arith.constant 0 : index
      %c0_17 = arith.constant 0 : index
      %20 = vector.load %arg30[%c0_16, %c0_17] : memref<64x8xf32, #tpu.memory_space<vmem>>, vector<64x8xf32>
      tpu.vector_store %arg30[%c0_16, %c0_17], %19 {strides = array<i32>} : memref<64x8xf32, #tpu.memory_space<vmem>>, vector<64x8xf32>,
    } else {
    }
    %3 = arith.index_cast %arg0 : i32 to index
    %4 = memref.load %arg3[%3] : memref<1xi32, #tpu.memory_space<smem>>
    %5 = arith.cmpi slt, %arg1, %4 : i32
    %6 = arith.extui %5 : i1 to i32
    %c0_i32_1 = arith.constant 0 : i32
    %7 = arith.cmpi ne, %6, %c0_i32_1 : i32
    scf.if %7 {
      %c0 = arith.constant 0 : index
      %c0_4 = arith.constant 0 : index
      %11 = vector.load %arg5[%c0, %c0_4] : memref<128x8xbf16, #tpu.memory_space<vmem>>, vector<128x8xbf16>
      %c0_5 = arith.constant 0 : index
      %c0_6 = arith.constant 0 : index
      %12 = vector.load %arg8[%c0_5, %c0_6] : memref<8x8xbf16, #tpu.memory_space<vmem>>, vector<8x8xbf16>
      %cst = arith.constant dense<0.000000e+00> : vector<128x8xf32>
      %13 = tpu.matmul %11, %12, %cst {dimension_numbers = #tpu.dot_dimension_numbers<[1], [0], [0], [1], [0, 0, 1, 1], [], []>} : vector<128x8xbf16>, vector<8x8xbf16>, vector<128x8xf32> -> vector<128x8xf32>
      %14 = arith.truncf %13 : vector<128x8xf32> to vector<128x8xbf16>
      %c0_7 = arith.constant 0 : index
      %c0_8 = arith.constant 0 : index
      %15 = vector.load %arg10[%c0_7, %c0_8] : memref<2x8xbf16, #tpu.memory_space<vmem>>, vector<2x8xbf16>
      %c0_9 = arith.constant 0 : index
      %c0_10 = arith.constant 0 : index
      %16 = vector.load %arg6[%c0_9, %c0_10] : memref<8x128xbf16, #tpu.memory_space<vmem>>, vector<8x128xbf16>
      %cst_11 = arith.constant dense<0.000000e+00> : vector<2x128xf32>
      %17 = tpu.matmul %15, %16, %cst_11 {dimension_numbers = #tpu.dot_dimension_numbers<[1], [0], [0], [1], [0, 0, 1, 1], [], []>} : vector<2x8xbf16>, vector<8x128xbf16>, vector<2x128xf32> -> vector<2x128xf32>
      %c0_12 = arith.constant 0 : index
      %c0_13 = arith.constant 0 : index
      %18 = vector.load %arg7[%c0_12, %c0_13] : memref<64x128xi8, #tpu.memory_space<vmem>>, vector<64x128xi8>
      %19 = arith.sitofp %18 : vector<64x128xi8> to vector<64x128xf32>
      %c0_14 = arith.constant 0 : index
      %c0_15 = arith.constant 0 : index
      %20 = vector.load %arg27[%c0_14, %c0_15] : memref<64x2xf32, #tpu.memory_space<vmem>>, vector<64x2xf32>
      %21 = vector.extract_strided_slice %20 {offsets = [0, 0], sizes = [64, 1], strides = [1, 1]} : vector<64x2xf32> to vector<64x1xf32>
      %22 = vector.extract_strided_slice %17 {offsets = [0, 0], sizes = [1, 128], strides = [1, 1]} : vector<2x128xf32> to vector<1x128xf32>
      %23 = vector.broadcast %21 : vector<64x1xf32> to vector<64x128xf32>
      %24 = vector.broadcast %22 : vector<1x128xf32> to vector<64x128xf32>
      %25 = arith.addf %23, %24 : vector<64x128xf32>
      %cst_16 = arith.constant 2.000000e-01 : f32
      %26 = vector.broadcast %cst_16 : f32 to vector<64x128xf32>
      %27 = arith.mulf %26, %25 : vector<64x128xf32>
      %28 = arith.maximumf %25, %27 : vector<64x128xf32>
      %c0_17 = arith.constant 0 : index
      %c0_18 = arith.constant 0 : index
      %29 = vector.load %arg28[%c0_17, %c0_18] : memref<64x2xf32, #tpu.memory_space<vmem>>, vector<64x1xf32>
      %cst_19 = arith.constant dense<0xFF800000> : vector<64xf32>
      %30 = vector.multi_reduction <maximumf>, %28, %cst_19 [1] : vector<64x128xf32> to vector<64xf32>
      %31 = vector.shape_cast %30 : vector<64xf32> to vector<64x1xf32>
      %32 = arith.maximumf %29, %31 : vector<64x1xf32>
      %33 = arith.subf %29, %32 : vector<64x1xf32>
      %34 = math.exp %33 : vector<64x1xf32>
      %35 = vector.broadcast %32 : vector<64x1xf32> to vector<64x128xf32>
      %36 = arith.subf %28, %35 : vector<64x128xf32>
      %37 = math.exp %36 : vector<64x128xf32>
      %38 = arith.mulf %37, %19 : vector<64x128xf32>
      %c0_20 = arith.constant 0 : index
      %c0_21 = arith.constant 0 : index
      %39 = vector.load %arg29[%c0_20, %c0_21] : memref<64x2xf32, #tpu.memory_space<vmem>>, vector<64x1xf32>
      %40 = arith.mulf %34, %39 : vector<64x1xf32>
      %cst_22 = arith.constant dense<0.000000e+00> : vector<64xf32>
      %41 = vector.multi_reduction <add>, %38, %cst_22 [1] : vector<64x128xf32> to vector<64xf32>
      %42 = vector.shape_cast %41 : vector<64xf32> to vector<64x1xf32>
      %43 = arith.addf %40, %42 : vector<64x1xf32>
      %c0_23 = arith.constant 0 : index
      %c0_24 = arith.constant 0 : index
      %44 = vector.load %arg29[%c0_23, %c0_24] : memref<64x2xf32, #tpu.memory_space<vmem>>, vector<64x1xf32>
      tpu.vector_store %arg29[%c0_23, %c0_24], %43 {strides = array<i32>} : memref<64x2xf32, #tpu.memory_space<vmem>>, vector<64x1xf32>,
      %c0_25 = arith.constant 0 : index
      %c0_26 = arith.constant 0 : index
      %45 = vector.load %arg30[%c0_25, %c0_26] : memref<64x8xf32, #tpu.memory_space<vmem>>, vector<64x4xf32>
      %46 = vector.broadcast %34 : vector<64x1xf32> to vector<64x4xf32>
      %47 = arith.mulf %46, %45 : vector<64x4xf32>
      %48 = arith.truncf %38 : vector<64x128xf32> to vector<64x128xbf16>
      %49 = vector.extract_strided_slice %14 {offsets = [0, 0], sizes = [128, 4], strides = [1, 1]} : vector<128x8xbf16> to vector<128x4xbf16>
      %cst_27 = arith.constant dense<0.000000e+00> : vector<64x4xf32>
      %50 = tpu.matmul %48, %49, %cst_27 {dimension_numbers = #tpu.dot_dimension_numbers<[1], [0], [0], [1], [0, 0, 1, 1], [], []>} : vector<64x128xbf16>, vector<128x4xbf16>, vector<64x4xf32> -> vector<64x4xf32>
      %51 = arith.addf %47, %50 : vector<64x4xf32>
      %c0_28 = arith.constant 0 : index
      %c0_29 = arith.constant 0 : index
      %52 = vector.load %arg30[%c0_28, %c0_29] : memref<64x8xf32, #tpu.memory_space<vmem>>, vector<64x4xf32>
      tpu.vector_store %arg30[%c0_28, %c0_29], %51 {strides = array<i32>} : memref<64x8xf32, #tpu.memory_space<vmem>>, vector<64x4xf32>,
      %c0_30 = arith.constant 0 : index
      %c0_31 = arith.constant 0 : index
      %53 = vector.load %arg28[%c0_30, %c0_31] : memref<64x2xf32, #tpu.memory_space<vmem>>, vector<64x1xf32>
      tpu.vector_store %arg28[%c0_30, %c0_31], %32 {strides = array<i32>} : memref<64x2xf32, #tpu.memory_space<vmem>>, vector<64x1xf32>,
      %54 = vector.extract_strided_slice %20 {offsets = [0, 1], sizes = [64, 1], strides = [1, 1]} : vector<64x2xf32> to vector<64x1xf32>
      %55 = vector.extract_strided_slice %17 {offsets = [1, 0], sizes = [1, 128], strides = [1, 1]} : vector<2x128xf32> to vector<1x128xf32>
      %56 = vector.broadcast %54 : vector<64x1xf32> to vector<64x128xf32>
      %57 = vector.broadcast %55 : vector<1x128xf32> to vector<64x128xf32>
      %58 = arith.addf %56, %57 : vector<64x128xf32>
      %cst_32 = arith.constant 2.000000e-01 : f32
      %59 = vector.broadcast %cst_32 : f32 to vector<64x128xf32>
      %60 = arith.mulf %59, %58 : vector<64x128xf32>
      %61 = arith.maximumf %58, %60 : vector<64x128xf32>
      %c0_33 = arith.constant 0 : index
      %c1 = arith.constant 1 : index
      %62 = vector.load %arg28[%c0_33, %c1] : memref<64x2xf32, #tpu.memory_space<vmem>>, vector<64x1xf32>
      %cst_34 = arith.constant dense<0xFF800000> : vector<64xf32>
      %63 = vector.multi_reduction <maximumf>, %61, %cst_34 [1] : vector<64x128xf32> to vector<64xf32>
      %64 = vector.shape_cast %63 : vector<64xf32> to vector<64x1xf32>
      %65 = arith.maximumf %62, %64 : vector<64x1xf32>
      %66 = arith.subf %62, %65 : vector<64x1xf32>
      %67 = math.exp %66 : vector<64x1xf32>
      %68 = vector.broadcast %65 : vector<64x1xf32> to vector<64x128xf32>
      %69 = arith.subf %61, %68 : vector<64x128xf32>
      %70 = math.exp %69 : vector<64x128xf32>
      %71 = arith.mulf %70, %19 : vector<64x128xf32>
      %c0_35 = arith.constant 0 : index
      %c1_36 = arith.constant 1 : index
      %72 = vector.load %arg29[%c0_35, %c1_36] : memref<64x2xf32, #tpu.memory_space<vmem>>, vector<64x1xf32>
      %73 = arith.mulf %67, %72 : vector<64x1xf32>
      %cst_37 = arith.constant dense<0.000000e+00> : vector<64xf32>
      %74 = vector.multi_reduction <add>, %71, %cst_37 [1] : vector<64x128xf32> to vector<64xf32>
      %75 = vector.shape_cast %74 : vector<64xf32> to vector<64x1xf32>
      %76 = arith.addf %73, %75 : vector<64x1xf32>
      %c0_38 = arith.constant 0 : index
      %c1_39 = arith.constant 1 : index
      %77 = vector.load %arg29[%c0_38, %c1_39] : memref<64x2xf32, #tpu.memory_space<vmem>>, vector<64x1xf32>
      tpu.vector_store %arg29[%c0_38, %c1_39], %76 {strides = array<i32>} : memref<64x2xf32, #tpu.memory_space<vmem>>, vector<64x1xf32>,
      %c0_40 = arith.constant 0 : index
      %c4 = arith.constant 4 : index
      %78 = vector.load %arg30[%c0_40, %c4] : memref<64x8xf32, #tpu.memory_space<vmem>>, vector<64x4xf32>
      %79 = vector.broadcast %67 : vector<64x1xf32> to vector<64x4xf32>
      %80 = arith.mulf %79, %78 : vector<64x4xf32>
      %81 = arith.truncf %71 : vector<64x128xf32> to vector<64x128xbf16>
      %82 = vector.extract_strided_slice %14 {offsets = [0, 4], sizes = [128, 4], strides = [1, 1]} : vector<128x8xbf16> to vector<128x4xbf16>
      %cst_41 = arith.constant dense<0.000000e+00> : vector<64x4xf32>
      %83 = tpu.matmul %81, %82, %cst_41 {dimension_numbers = #tpu.dot_dimension_numbers<[1], [0], [0], [1], [0, 0, 1, 1], [], []>} : vector<64x128xbf16>, vector<128x4xbf16>, vector<64x4xf32> -> vector<64x4xf32>
      %84 = arith.addf %80, %83 : vector<64x4xf32>
      %c0_42 = arith.constant 0 : index
      %c4_43 = arith.constant 4 : index
      %85 = vector.load %arg30[%c0_42, %c4_43] : memref<64x8xf32, #tpu.memory_space<vmem>>, vector<64x4xf32>
      tpu.vector_store %arg30[%c0_42, %c4_43], %84 {strides = array<i32>} : memref<64x8xf32, #tpu.memory_space<vmem>>, vector<64x4xf32>,
      %c0_44 = arith.constant 0 : index
      %c1_45 = arith.constant 1 : index
      %86 = vector.load %arg28[%c0_44, %c1_45] : memref<64x2xf32, #tpu.memory_space<vmem>>, vector<64x1xf32>
      tpu.vector_store %arg28[%c0_44, %c1_45], %65 {strides = array<i32>} : memref<64x2xf32, #tpu.memory_space<vmem>>, vector<64x1xf32>,
    } else {
    }
    %c0_i32_2 = arith.constant 0 : i32
    %8 = arith.cmpi eq, %arg1, %c0_i32_2 : i32
    %9 = arith.extui %8 : i1 to i32
    %c0_i32_3 = arith.constant 0 : i32
    %10 = arith.cmpi ne, %9, %c0_i32_3 : i32
    scf.if %10 {
      %c0 = arith.constant 0 : index
      %c0_4 = arith.constant 0 : index
      %11 = vector.load %arg29[%c0, %c0_4] : memref<64x2xf32, #tpu.memory_space<vmem>>, vector<64x2xf32>
      %cst = arith.constant 1.000000e-30 : f32
      %12 = vector.broadcast %cst : f32 to vector<64x2xf32>
      %13 = arith.maximumf %11, %12 : vector<64x2xf32>
      %14 = tpu.reciprocal %13 {approx = true} : vector<64x2xf32> -> vector<64x2xf32>
      %c0_5 = arith.constant 0 : index
      %c0_6 = arith.constant 0 : index
      %15 = vector.load %arg11[%c0_5, %c0_6] : memref<1x8xf32, #tpu.memory_space<vmem>>, vector<1x8xf32>
      %c0_7 = arith.constant 0 : index
      %c0_8 = arith.constant 0 : index
      %16 = vector.load %arg30[%c0_7, %c0_8] : memref<64x8xf32, #tpu.memory_space<vmem>>, vector<64x4xf32>
      %17 = vector.extract_strided_slice %14 {offsets = [0, 0], sizes = [64, 1], strides = [1, 1]} : vector<64x2xf32> to vector<64x1xf32>
      %18 = vector.broadcast %17 : vector<64x1xf32> to vector<64x4xf32>
      %19 = arith.mulf %16, %18 : vector<64x4xf32>
      %20 = vector.extract_strided_slice %15 {offsets = [0, 0], sizes = [1, 4], strides = [1, 1]} : vector<1x8xf32> to vector<1x4xf32>
      %21 = vector.broadcast %20 : vector<1x4xf32> to vector<64x4xf32>
      %22 = arith.addf %19, %21 : vector<64x4xf32>
      %c0_9 = arith.constant 0 : index
      %c0_10 = arith.constant 0 : index
      %23 = vector.load %arg30[%c0_9, %c0_10] : memref<64x8xf32, #tpu.memory_space<vmem>>, vector<64x4xf32>
      tpu.vector_store %arg30[%c0_9, %c0_10], %22 {strides = array<i32>} : memref<64x8xf32, #tpu.memory_space<vmem>>, vector<64x4xf32>,
      %c0_11 = arith.constant 0 : index
      %c4 = arith.constant 4 : index
      %24 = vector.load %arg30[%c0_11, %c4] : memref<64x8xf32, #tpu.memory_space<vmem>>, vector<64x4xf32>
      %25 = vector.extract_strided_slice %14 {offsets = [0, 1], sizes = [64, 1], strides = [1, 1]} : vector<64x2xf32> to vector<64x1xf32>
      %26 = vector.broadcast %25 : vector<64x1xf32> to vector<64x4xf32>
      %27 = arith.mulf %24, %26 : vector<64x4xf32>
      %28 = vector.extract_strided_slice %15 {offsets = [0, 4], sizes = [1, 4], strides = [1, 1]} : vector<1x8xf32> to vector<1x4xf32>
      %29 = vector.broadcast %28 : vector<1x4xf32> to vector<64x4xf32>
      %30 = arith.addf %27, %29 : vector<64x4xf32>
      %c0_12 = arith.constant 0 : index
      %c4_13 = arith.constant 4 : index
      %31 = vector.load %arg30[%c0_12, %c4_13] : memref<64x8xf32, #tpu.memory_space<vmem>>, vector<64x4xf32>
      tpu.vector_store %arg30[%c0_12, %c4_13], %30 {strides = array<i32>} : memref<64x8xf32, #tpu.memory_space<vmem>>, vector<64x4xf32>,
      %c0_14 = arith.constant 0 : index
      %c0_15 = arith.constant 0 : index
      %32 = tpu.strided_load %arg30[%c0_14, %c0_15] {strides = array<i32: 8, 1>} : memref<64x8xf32, #tpu.memory_space<vmem>>, vector<8x8xf32>
      %c0_16 = arith.constant 0 : index
      %c0_17 = arith.constant 0 : index
      %33 = vector.load %arg31[%c0_16, %c0_17] : memref<8x64xf32, #tpu.memory_space<vmem>>, vector<8x8xf32>
      tpu.vector_store %arg31[%c0_16, %c0_17], %32 {strides = array<i32>} : memref<8x64xf32, #tpu.memory_space<vmem>>, vector<8x8xf32>,
      %c1 = arith.constant 1 : index
      %c0_18 = arith.constant 0 : index
      %34 = tpu.strided_load %arg30[%c1, %c0_18] {strides = array<i32: 8, 1>} : memref<64x8xf32, #tpu.memory_space<vmem>>, vector<8x8xf32>
      %c0_19 = arith.constant 0 : index
      %c8 = arith.constant 8 : index
      %35 = vector.load %arg31[%c0_19, %c8] : memref<8x64xf32, #tpu.memory_space<vmem>>, vector<8x8xf32>
      tpu.vector_store %arg31[%c0_19, %c8], %34 {strides = array<i32>} : memref<8x64xf32, #tpu.memory_space<vmem>>, vector<8x8xf32>,
      %c2 = arith.constant 2 : index
      %c0_20 = arith.constant 0 : index
      %36 = tpu.strided_load %arg30[%c2, %c0_20] {strides = array<i32: 8, 1>} : memref<64x8xf32, #tpu.memory_space<vmem>>, vector<8x8xf32>
      %c0_21 = arith.constant 0 : index
      %c16 = arith.constant 16 : index
      %37 = vector.load %arg31[%c0_21, %c16] : memref<8x64xf32, #tpu.memory_space<vmem>>, vector<8x8xf32>
      tpu.vector_store %arg31[%c0_21, %c16], %36 {strides = array<i32>} : memref<8x64xf32, #tpu.memory_space<vmem>>, vector<8x8xf32>,
      %c3 = arith.constant 3 : index
      %c0_22 = arith.constant 0 : index
      %38 = tpu.strided_load %arg30[%c3, %c0_22] {strides = array<i32: 8, 1>} : memref<64x8xf32, #tpu.memory_space<vmem>>, vector<8x8xf32>
      %c0_23 = arith.constant 0 : index
      %c24 = arith.constant 24 : index
      %39 = vector.load %arg31[%c0_23, %c24] : memref<8x64xf32, #tpu.memory_space<vmem>>, vector<8x8xf32>
      tpu.vector_store %arg31[%c0_23, %c24], %38 {strides = array<i32>} : memref<8x64xf32, #tpu.memory_space<vmem>>, vector<8x8xf32>,
      %c4_24 = arith.constant 4 : index
      %c0_25 = arith.constant 0 : index
      %40 = tpu.strided_load %arg30[%c4_24, %c0_25] {strides = array<i32: 8, 1>} : memref<64x8xf32, #tpu.memory_space<vmem>>, vector<8x8xf32>
      %c0_26 = arith.constant 0 : index
      %c32 = arith.constant 32 : index
      %41 = vector.load %arg31[%c0_26, %c32] : memref<8x64xf32, #tpu.memory_space<vmem>>, vector<8x8xf32>
      tpu.vector_store %arg31[%c0_26, %c32], %40 {strides = array<i32>} : memref<8x64xf32, #tpu.memory_space<vmem>>, vector<8x8xf32>,
      %c5 = arith.constant 5 : index
      %c0_27 = arith.constant 0 : index
      %42 = tpu.strided_load %arg30[%c5, %c0_27] {strides = array<i32: 8, 1>} : memref<64x8xf32, #tpu.memory_space<vmem>>, vector<8x8xf32>
      %c0_28 = arith.constant 0 : index
      %c40 = arith.constant 40 : index
      %43 = vector.load %arg31[%c0_28, %c40] : memref<8x64xf32, #tpu.memory_space<vmem>>, vector<8x8xf32>
      tpu.vector_store %arg31[%c0_28, %c40], %42 {strides = array<i32>} : memref<8x64xf32, #tpu.memory_space<vmem>>, vector<8x8xf32>,
      %c6 = arith.constant 6 : index
      %c0_29 = arith.constant 0 : index
      %44 = tpu.strided_load %arg30[%c6, %c0_29] {strides = array<i32: 8, 1>} : memref<64x8xf32, #tpu.memory_space<vmem>>, vector<8x8xf32>
      %c0_30 = arith.constant 0 : index
      %c48 = arith.constant 48 : index
      %45 = vector.load %arg31[%c0_30, %c48] : memref<8x64xf32, #tpu.memory_space<vmem>>, vector<8x8xf32>
      tpu.vector_store %arg31[%c0_30, %c48], %44 {strides = array<i32>} : memref<8x64xf32, #tpu.memory_space<vmem>>, vector<8x8xf32>,
      %c7 = arith.constant 7 : index
      %c0_31 = arith.constant 0 : index
      %46 = tpu.strided_load %arg30[%c7, %c0_31] {strides = array<i32: 8, 1>} : memref<64x8xf32, #tpu.memory_space<vmem>>, vector<8x8xf32>
      %c0_32 = arith.constant 0 : index
      %c56 = arith.constant 56 : index
      %47 = vector.load %arg31[%c0_32, %c56] : memref<8x64xf32, #tpu.memory_space<vmem>>, vector<8x8xf32>
      tpu.vector_store %arg31[%c0_32, %c56], %46 {strides = array<i32>} : memref<8x64xf32, #tpu.memory_space<vmem>>, vector<8x8xf32>,
      %c0_33 = arith.constant 0 : index
      %c0_34 = arith.constant 0 : index
      %48 = vector.load %arg31[%c0_33, %c0_34] : memref<8x64xf32, #tpu.memory_space<vmem>>, vector<8x64xf32>
      %49 = arith.truncf %48 : vector<8x64xf32> to vector<8x64xbf16>
      %c0_35 = arith.constant 0 : index
      %c0_36 = arith.constant 0 : index
      %50 = vector.load %arg12[%c0_35, %c0_36] : memref<64x256xbf16, #tpu.memory_space<vmem>>, vector<64x256xbf16>
      %cst_37 = arith.constant dense<0.000000e+00> : vector<8x256xf32>
      %51 = tpu.matmul %49, %50, %cst_37 {dimension_numbers = #tpu.dot_dimension_numbers<[1], [0], [0], [1], [0, 0, 1, 1], [], []>} : vector<8x64xbf16>, vector<64x256xbf16>, vector<8x256xf32> -> vector<8x256xf32>
      %52 = vector.extract_strided_slice %51 {offsets = [0, 180], sizes = [8, 1], strides = [1, 1]} : vector<8x256xf32> to vector<8x1xf32>
      %c0_38 = arith.constant 0 : index
      %c0_39 = arith.constant 0 : index
      %53 = vector.load %arg13[%c0_38, %c0_39] : memref<1x256xf32, #tpu.memory_space<vmem>>, vector<1x256xf32>
      %54 = vector.broadcast %53 : vector<1x256xf32> to vector<8x256xf32>
      %55 = arith.addf %51, %54 : vector<8x256xf32>
      %cst_40 = arith.constant 0.000000e+00 : f32
      %56 = vector.broadcast %cst_40 : f32 to vector<8x256xf32>
      %57 = arith.maximumf %55, %56 : vector<8x256xf32>
      %58 = arith.truncf %57 : vector<8x256xf32> to vector<8x256xbf16>
      %c0_41 = arith.constant 0 : index
      %c0_42 = arith.constant 0 : index
      %59 = vector.load %arg14[%c0_41, %c0_42] : memref<256x256xbf16, #tpu.memory_space<vmem>>, vector<256x256xbf16>
      %cst_43 = arith.constant dense<0.000000e+00> : vector<8x256xf32>
      %60 = tpu.matmul %58, %59, %cst_43 {dimension_numbers = #tpu.dot_dimension_numbers<[1], [0], [0], [1], [0, 0, 1, 1], [], []>} : vector<8x256xbf16>, vector<256x256xbf16>, vector<8x256xf32> -> vector<8x256xf32>
      %c0_44 = arith.constant 0 : index
      %c0_45 = arith.constant 0 : index
      %61 = vector.load %arg15[%c0_44, %c0_45] : memref<1x256xf32, #tpu.memory_space<vmem>>, vector<1x256xf32>
      %62 = vector.broadcast %61 : vector<1x256xf32> to vector<8x256xf32>
      %63 = arith.addf %60, %62 : vector<8x256xf32>
      %cst_46 = arith.constant 0.000000e+00 : f32
      %64 = vector.broadcast %cst_46 : f32 to vector<8x256xf32>
      %65 = arith.maximumf %63, %64 : vector<8x256xf32>
      %66 = arith.truncf %65 : vector<8x256xf32> to vector<8x256xbf16>
      %c0_47 = arith.constant 0 : index
      %c0_48 = arith.constant 0 : index
      %67 = vector.load %arg16[%c0_47, %c0_48] : memref<256x128xbf16, #tpu.memory_space<vmem>>, vector<256x128xbf16>
      %cst_49 = arith.constant dense<0.000000e+00> : vector<8x128xf32>
      %68 = tpu.matmul %66, %67, %cst_49 {dimension_numbers = #tpu.dot_dimension_numbers<[1], [0], [0], [1], [0, 0, 1, 1], [], []>} : vector<8x256xbf16>, vector<256x128xbf16>, vector<8x128xf32> -> vector<8x128xf32>
      %c0_50 = arith.constant 0 : index
      %c0_51 = arith.constant 0 : index
      %69 = vector.load %arg17[%c0_50, %c0_51] : memref<1x128xf32, #tpu.memory_space<vmem>>, vector<1x128xf32>
      %70 = vector.broadcast %69 : vector<1x128xf32> to vector<8x128xf32>
      %71 = arith.addf %68, %70 : vector<8x128xf32>
      %cst_52 = arith.constant 0.000000e+00 : f32
      %72 = vector.broadcast %cst_52 : f32 to vector<8x128xf32>
      %73 = arith.maximumf %71, %72 : vector<8x128xf32>
      %74 = arith.truncf %73 : vector<8x128xf32> to vector<8x128xbf16>
      %c0_53 = arith.constant 0 : index
      %c0_54 = arith.constant 0 : index
      %75 = vector.load %arg18[%c0_53, %c0_54] : memref<128x128xbf16, #tpu.memory_space<vmem>>, vector<128x128xbf16>
      %cst_55 = arith.constant dense<0.000000e+00> : vector<8x128xf32>
      %76 = tpu.matmul %74, %75, %cst_55 {dimension_numbers = #tpu.dot_dimension_numbers<[1], [0], [0], [1], [0, 0, 1, 1], [], []>} : vector<8x128xbf16>, vector<128x128xbf16>, vector<8x128xf32> -> vector<8x128xf32>
      %c0_56 = arith.constant 0 : index
      %c0_57 = arith.constant 0 : index
      %77 = vector.load %arg19[%c0_56, %c0_57] : memref<1x128xf32, #tpu.memory_space<vmem>>, vector<1x128xf32>
      %78 = vector.broadcast %77 : vector<1x128xf32> to vector<8x128xf32>
      %79 = arith.addf %76, %78 : vector<8x128xf32>
      %cst_58 = arith.constant 0.000000e+00 : f32
      %80 = vector.broadcast %cst_58 : f32 to vector<8x128xf32>
      %81 = arith.maximumf %79, %80 : vector<8x128xf32>
      %82 = arith.truncf %81 : vector<8x128xf32> to vector<8x128xbf16>
      %c0_59 = arith.constant 0 : index
      %c0_60 = arith.constant 0 : index
      %83 = vector.load %arg20[%c0_59, %c0_60] : memref<128x128xbf16, #tpu.memory_space<vmem>>, vector<128x128xbf16>
      %cst_61 = arith.constant dense<0.000000e+00> : vector<8x128xf32>
      %84 = tpu.matmul %82, %83, %cst_61 {dimension_numbers = #tpu.dot_dimension_numbers<[1], [0], [0], [1], [0, 0, 1, 1], [], []>} : vector<8x128xbf16>, vector<128x128xbf16>, vector<8x128xf32> -> vector<8x128xf32>
      %c0_62 = arith.constant 0 : index
      %c0_63 = arith.constant 0 : index
      %85 = vector.load %arg21[%c0_62, %c0_63] : memref<1x128xf32, #tpu.memory_space<vmem>>, vector<1x128xf32>
      %86 = vector.broadcast %85 : vector<1x128xf32> to vector<8x128xf32>
      %87 = arith.addf %84, %86 : vector<8x128xf32>
      %cst_64 = arith.constant 0.000000e+00 : f32
      %88 = vector.broadcast %cst_64 : f32 to vector<8x128xf32>
      %89 = arith.maximumf %87, %88 : vector<8x128xf32>
      %90 = arith.truncf %89 : vector<8x128xf32> to vector<8x128xbf16>
      %c0_65 = arith.constant 0 : index
      %c0_66 = arith.constant 0 : index
      %91 = vector.load %arg22[%c0_65, %c0_66] : memref<128x128xbf16, #tpu.memory_space<vmem>>, vector<128x128xbf16>
      %cst_67 = arith.constant dense<0.000000e+00> : vector<8x128xf32>
      %92 = tpu.matmul %90, %91, %cst_67 {dimension_numbers = #tpu.dot_dimension_numbers<[1], [0], [0], [1], [0, 0, 1, 1], [], []>} : vector<8x128xbf16>, vector<128x128xbf16>, vector<8x128xf32> -> vector<8x128xf32>
      %c0_68 = arith.constant 0 : index
      %c0_69 = arith.constant 0 : index
      %93 = vector.load %arg23[%c0_68, %c0_69] : memref<1x128xf32, #tpu.memory_space<vmem>>, vector<1x128xf32>
      %94 = vector.broadcast %93 : vector<1x128xf32> to vector<8x128xf32>
      %95 = arith.addf %92, %94 : vector<8x128xf32>
      %cst_70 = arith.constant 0.000000e+00 : f32
      %96 = vector.broadcast %cst_70 : f32 to vector<8x128xf32>
      %97 = arith.maximumf %95, %96 : vector<8x128xf32>
      %98 = arith.truncf %97 : vector<8x128xf32> to vector<8x128xbf16>
      %c0_71 = arith.constant 0 : index
      %c0_72 = arith.constant 0 : index
      %99 = vector.load %arg24[%c0_71, %c0_72] : memref<128x1xbf16, #tpu.memory_space<vmem>>, vector<128x1xbf16>
      %cst_73 = arith.constant dense<0.000000e+00> : vector<8x1xf32>
      %100 = tpu.matmul %98, %99, %cst_73 {dimension_numbers = #tpu.dot_dimension_numbers<[1], [0], [0], [1], [0, 0, 1, 1], [], []>} : vector<8x128xbf16>, vector<128x1xbf16>, vector<8x1xf32> -> vector<8x1xf32>
      %c0_74 = arith.constant 0 : index
      %c0_75 = arith.constant 0 : index
      %101 = vector.load %arg25[%c0_74, %c0_75] : memref<1x1xf32, #tpu.memory_space<vmem>>, vector<1x1xf32>
      %102 = vector.broadcast %101 : vector<1x1xf32> to vector<8x1xf32>
      %103 = arith.addf %100, %102 : vector<8x1xf32>
      %104 = arith.addf %103, %52 : vector<8x1xf32>
      %c0_76 = arith.constant 0 : index
      %c0_77 = arith.constant 0 : index
      %105 = vector.load %arg26[%c0_76, %c0_77] : memref<8x1xf32, #tpu.memory_space<vmem>>, vector<8x1xf32>
      tpu.vector_store %arg26[%c0_76, %c0_77], %104 {strides = array<i32>} : memref<8x1xf32, #tpu.memory_space<vmem>>, vector<8x1xf32>,
    } else {
    }
    return
  }
  func.func @transform_0(%arg0: i32, %arg1: i32, %arg2: memref<1x1xi32, #tpu.memory_space<smem>>, %arg3: memref<1xi32, #tpu.memory_space<smem>>) -> (i32, i32) {
    %c0_i32 = arith.constant 0 : i32
    %c0_i32_0 = arith.constant 0 : i32
    return %arg0, %c0_i32 : i32, i32
  }
  func.func @transform_1(%arg0: i32, %arg1: i32, %arg2: memref<1x1xi32, #tpu.memory_space<smem>>, %arg3: memref<1xi32, #tpu.memory_space<smem>>) -> (i32, i32) {
    %0 = arith.index_cast %arg0 : i32 to index
    %1 = arith.index_cast %arg1 : i32 to index
    %2 = memref.load %arg2[%0, %1] : memref<1x1xi32, #tpu.memory_space<smem>>
    %c0_i32 = arith.constant 0 : i32
    %c0_i32_0 = arith.constant 0 : i32
    return %2, %c0_i32 : i32, i32
  }
  func.func @transform_2(%arg0: i32, %arg1: i32, %arg2: memref<1x1xi32, #tpu.memory_space<smem>>, %arg3: memref<1xi32, #tpu.memory_space<smem>>) -> (i32, i32) {
    %0 = arith.index_cast %arg0 : i32 to index
    %1 = arith.index_cast %arg1 : i32 to index
    %2 = memref.load %arg2[%0, %1] : memref<1x1xi32, #tpu.memory_space<smem>>
    %c0_i32 = arith.constant 0 : i32
    %c0_i32_0 = arith.constant 0 : i32
    return %c0_i32, %2 : i32, i32
  }
  func.func @transform_3(%arg0: i32, %arg1: i32, %arg2: memref<1x1xi32, #tpu.memory_space<smem>>, %arg3: memref<1xi32, #tpu.memory_space<smem>>) -> (i32, i32) {
    %0 = arith.index_cast %arg0 : i32 to index
    %1 = arith.index_cast %arg1 : i32 to index
    %2 = memref.load %arg2[%0, %1] : memref<1x1xi32, #tpu.memory_space<smem>>
    %c0_i32 = arith.constant 0 : i32
    return %arg0, %2 : i32, i32
  }
  func.func @transform_4(%arg0: i32, %arg1: i32, %arg2: memref<1x1xi32, #tpu.memory_space<smem>>, %arg3: memref<1xi32, #tpu.memory_space<smem>>) -> (i32, i32) {
    %c0_i32 = arith.constant 0 : i32
    %c0_i32_0 = arith.constant 0 : i32
    %c0_i32_1 = arith.constant 0 : i32
    return %c0_i32, %c0_i32_0 : i32, i32
  }
  func.func @transform_5(%arg0: i32, %arg1: i32, %arg2: memref<1x1xi32, #tpu.memory_space<smem>>, %arg3: memref<1xi32, #tpu.memory_space<smem>>) -> (i32, i32) {
    %c0_i32 = arith.constant 0 : i32
    %c0_i32_0 = arith.constant 0 : i32
    %c0_i32_1 = arith.constant 0 : i32
    return %c0_i32, %c0_i32_0 : i32, i32
  }
  func.func @transform_6(%arg0: i32, %arg1: i32, %arg2: memref<1x1xi32, #tpu.memory_space<smem>>, %arg3: memref<1xi32, #tpu.memory_space<smem>>) -> (i32, i32) {
    %c0_i32 = arith.constant 0 : i32
    %c0_i32_0 = arith.constant 0 : i32
    %c0_i32_1 = arith.constant 0 : i32
    return %c0_i32, %c0_i32_0 : i32, i32
  }
  func.func @transform_7(%arg0: i32, %arg1: i32, %arg2: memref<1x1xi32, #tpu.memory_space<smem>>, %arg3: memref<1xi32, #tpu.memory_space<smem>>) -> (i32, i32) {
    %c0_i32 = arith.constant 0 : i32
    %c0_i32_0 = arith.constant 0 : i32
    %c0_i32_1 = arith.constant 0 : i32
    return %c0_i32, %c0_i32_0 : i32, i32
  }
  func.func @transform_8(%arg0: i32, %arg1: i32, %arg2: memref<1x1xi32, #tpu.memory_space<smem>>, %arg3: memref<1xi32, #tpu.memory_space<smem>>) -> (i32, i32) {
    %c0_i32 = arith.constant 0 : i32
    %c0_i32_0 = arith.constant 0 : i32
    %c0_i32_1 = arith.constant 0 : i32
    return %c0_i32, %c0_i32_0 : i32, i32
  }
  func.func @transform_9(%arg0: i32, %arg1: i32, %arg2: memref<1x1xi32, #tpu.memory_space<smem>>, %arg3: memref<1xi32, #tpu.memory_space<smem>>) -> (i32, i32) {
    %c0_i32 = arith.constant 0 : i32
    %c0_i32_0 = arith.constant 0 : i32
    %c0_i32_1 = arith.constant 0 : i32
    return %c0_i32, %c0_i32_0 : i32, i32
  }
  func.func @transform_10(%arg0: i32, %arg1: i32, %arg2: memref<1x1xi32, #tpu.memory_space<smem>>, %arg3: memref<1xi32, #tpu.memory_space<smem>>) -> (i32, i32) {
    %c0_i32 = arith.constant 0 : i32
    %c0_i32_0 = arith.constant 0 : i32
    %c0_i32_1 = arith.constant 0 : i32
    return %c0_i32, %c0_i32_0 : i32, i32
  }
  func.func @transform_11(%arg0: i32, %arg1: i32, %arg2: memref<1x1xi32, #tpu.memory_space<smem>>, %arg3: memref<1xi32, #tpu.memory_space<smem>>) -> (i32, i32) {
    %c0_i32 = arith.constant 0 : i32
    %c0_i32_0 = arith.constant 0 : i32
    %c0_i32_1 = arith.constant 0 : i32
    return %c0_i32, %c0_i32_0 : i32, i32
  }
  func.func @transform_12(%arg0: i32, %arg1: i32, %arg2: memref<1x1xi32, #tpu.memory_space<smem>>, %arg3: memref<1xi32, #tpu.memory_space<smem>>) -> (i32, i32) {
    %c0_i32 = arith.constant 0 : i32
    %c0_i32_0 = arith.constant 0 : i32
    %c0_i32_1 = arith.constant 0 : i32
    return %c0_i32, %c0_i32_0 : i32, i32
  }
  func.func @transform_13(%arg0: i32, %arg1: i32, %arg2: memref<1x1xi32, #tpu.memory_space<smem>>, %arg3: memref<1xi32, #tpu.memory_space<smem>>) -> (i32, i32) {
    %c0_i32 = arith.constant 0 : i32
    %c0_i32_0 = arith.constant 0 : i32
    %c0_i32_1 = arith.constant 0 : i32
    return %c0_i32, %c0_i32_0 : i32, i32
  }
  func.func @transform_14(%arg0: i32, %arg1: i32, %arg2: memref<1x1xi32, #tpu.memory_space<smem>>, %arg3: memref<1xi32, #tpu.memory_space<smem>>) -> (i32, i32) {
    %c0_i32 = arith.constant 0 : i32
    %c0_i32_0 = arith.constant 0 : i32
    %c0_i32_1 = arith.constant 0 : i32
    return %c0_i32, %c0_i32_0 : i32, i32
  }
  func.func @transform_15(%arg0: i32, %arg1: i32, %arg2: memref<1x1xi32, #tpu.memory_space<smem>>, %arg3: memref<1xi32, #tpu.memory_space<smem>>) -> (i32, i32) {
    %c0_i32 = arith.constant 0 : i32
    %c0_i32_0 = arith.constant 0 : i32
    %c0_i32_1 = arith.constant 0 : i32
    return %c0_i32, %c0_i32_0 : i32, i32
  }
  func.func @transform_16(%arg0: i32, %arg1: i32, %arg2: memref<1x1xi32, #tpu.memory_space<smem>>, %arg3: memref<1xi32, #tpu.memory_space<smem>>) -> (i32, i32) {
    %c0_i32 = arith.constant 0 : i32
    %c0_i32_0 = arith.constant 0 : i32
    %c0_i32_1 = arith.constant 0 : i32
    return %c0_i32, %c0_i32_0 : i32, i32
  }
  func.func @transform_17(%arg0: i32, %arg1: i32, %arg2: memref<1x1xi32, #tpu.memory_space<smem>>, %arg3: memref<1xi32, #tpu.memory_space<smem>>) -> (i32, i32) {
    %c0_i32 = arith.constant 0 : i32
    %c0_i32_0 = arith.constant 0 : i32
    %c0_i32_1 = arith.constant 0 : i32
    return %c0_i32, %c0_i32_0 : i32, i32
  }
  func.func @transform_18(%arg0: i32, %arg1: i32, %arg2: memref<1x1xi32, #tpu.memory_space<smem>>, %arg3: memref<1xi32, #tpu.memory_space<smem>>) -> (i32, i32) {
    %c0_i32 = arith.constant 0 : i32
    %c0_i32_0 = arith.constant 0 : i32
    %c0_i32_1 = arith.constant 0 : i32
    return %c0_i32, %c0_i32_0 : i32, i32
  }
  func.func @transform_19(%arg0: i32, %arg1: i32, %arg2: memref<1x1xi32, #tpu.memory_space<smem>>, %arg3: memref<1xi32, #tpu.memory_space<smem>>) -> (i32, i32) {
    %c0_i32 = arith.constant 0 : i32
    %c0_i32_0 = arith.constant 0 : i32
    %c0_i32_1 = arith.constant 0 : i32
    return %c0_i32, %c0_i32_0 : i32, i32
  }
  func.func @transform_20(%arg0: i32, %arg1: i32, %arg2: memref<1x1xi32, #tpu.memory_space<smem>>, %arg3: memref<1xi32, #tpu.memory_space<smem>>) -> (i32, i32) {
    %c0_i32 = arith.constant 0 : i32
    %c0_i32_0 = arith.constant 0 : i32
    %c0_i32_1 = arith.constant 0 : i32
    return %c0_i32, %c0_i32_0 : i32, i32
  }
  func.func @transform_21(%arg0: i32, %arg1: i32, %arg2: memref<1x1xi32, #tpu.memory_space<smem>>, %arg3: memref<1xi32, #tpu.memory_space<smem>>) -> (i32, i32) {
    %c0_i32 = arith.constant 0 : i32
    %c0_i32_0 = arith.constant 0 : i32
    %c0_i32_1 = arith.constant 0 : i32
    return %c0_i32, %c0_i32_0 : i32, i32
  }
  func.func @transform_22(%arg0: i32, %arg1: i32, %arg2: memref<1x1xi32, #tpu.memory_space<smem>>, %arg3: memref<1xi32, #tpu.memory_space<smem>>) -> (i32, i32) {
    %c0_i32 = arith.constant 0 : i32
    %c0_i32_0 = arith.constant 0 : i32
    return %arg0, %c0_i32 : i32, i32
  }
}

</mosaic_0001>

<llo_original>
// kernel: route_select_forward.1
$region0: #{route_select_forward.1}
  #allocation0 [shape = 'u32[]', space=smem, size = 0x4, offset = 0x4, fixed_abs, tag = 'smem constant byte address 0x4 - core index']
  #allocation1 [shape = 'u32[144,128]{1,0:T(1,128)}', space=vmem, size = 0x12000, scoped, tag = 'internal scratch']
  #allocation2 [shape = 'f32[64,2]{1,0:T(8,128)}', space=vmem, size = 0x8000, scoped, tag = 'scratch operand']
  #allocation3 [shape = 'f32[64,2]{1,0:T(8,128)}', space=vmem, size = 0x8000, scoped, tag = 'scratch operand']
  #allocation4 [shape = 'f32[64,2]{1,0:T(8,128)}', space=vmem, size = 0x8000, scoped, tag = 'scratch operand']
  #allocation5 [shape = 'f32[64,8]{1,0:T(8,128)}', space=vmem, size = 0x8000, scoped, tag = 'scratch operand']
  #allocation6 [shape = 'f32[8,64]{1,0:T(8,128)}', space=vmem, size = 0x1000, scoped, tag = 'scratch operand']
  #allocation7 [shape = 's32[1]{0}', space=sflag, size = 0x4, scoped, tag = 'scoped memory for route_select_forward.1']
  #allocation8 [shape = 's32[1,1]{1,0:T(1,128)S(6)}', space=smem, size = 0x200, scoped, tag = 'prefetched SMEM operand 0']
  #allocation9 [shape = 's32[1]{0:T(128)S(6)}', space=smem, size = 0x200, scoped, tag = 'prefetched SMEM operand 1']
  #allocation10 [shape = 'f32[1,1]{1,0:T(1,128)S(1)}', space=vmem, size = 0x200, scoped, tag = 'scoped memory for route_select_forward.1']
  %s0 = inlined_call_operand.<no memory space> [shape: s32[1,1], index: 0, kind: input, shape index: {}]
  %s1 = inlined_call_operand.<no memory space> [shape: s32[1], index: 1, kind: input, shape index: {}]
  %s2 = inlined_call_operand.vmem [shape: bf16[64,8], index: 2, kind: input, shape index: {}]
  %s3 = inlined_call_operand.vmem [shape: bf16[128,8], index: 3, kind: input, shape index: {}]
  %s4 = inlined_call_operand.vmem [shape: bf16[8,128], index: 4, kind: input, shape index: {}]
  %s5 = inlined_call_operand.vmem [shape: s8[64,128], index: 5, kind: input, shape index: {}]
  %s6 = inlined_call_operand.vmem [shape: bf16[8,8], index: 6, kind: input, shape index: {}]
  %s7 = inlined_call_operand.vmem [shape: bf16[8,2], index: 7, kind: input, shape index: {}]
  %s8 = inlined_call_operand.vmem [shape: bf16[2,8], index: 8, kind: input, shape index: {}]
  %s9 = inlined_call_operand.vmem [shape: f32[1,8], index: 9, kind: input, shape index: {}]
  %s10 = inlined_call_operand.vmem [shape: bf16[64,256], index: 10, kind: input, shape index: {}]
  %s11 = inlined_call_operand.vmem [shape: f32[1,256], index: 11, kind: input, shape index: {}]
  %s12 = inlined_call_operand.hbm [shape: bf16[256,256], index: 12, kind: input, shape index: {}]
  %s13 = inlined_call_operand.vmem [shape: f32[1,256], index: 13, kind: input, shape index: {}]
  %s14 = inlined_call_operand.vmem [shape: bf16[256,128], index: 14, kind: input, shape index: {}]
  %s15 = inlined_call_operand.vmem [shape: f32[1,128], index: 15, kind: input, shape index: {}]
  %s16 = inlined_call_operand.hbm [shape: bf16[128,128], index: 16, kind: input, shape index: {}]
  %s17 = inlined_call_operand.vmem [shape: f32[1,128], index: 17, kind: input, shape index: {}]
  %s18 = inlined_call_operand.hbm [shape: bf16[128,128], index: 18, kind: input, shape index: {}]
  %s19 = inlined_call_operand.vmem [shape: f32[1,128], index: 19, kind: input, shape index: {}]
  %s20 = inlined_call_operand.hbm [shape: bf16[128,128], index: 20, kind: input, shape index: {}]
  %s21 = inlined_call_operand.vmem [shape: f32[1,128], index: 21, kind: input, shape index: {}]
  %s22 = inlined_call_operand.vmem [shape: bf16[128,1], index: 22, kind: input, shape index: {}]
  %s23 = inlined_call_operand.<no memory space> [shape: f32[1,1], index: 23, kind: input, shape index: {}]
  %s24 = inlined_call_operand.vmem [shape: f32[8,1], index: 24, kind: output, shape index: {}]
  %s25 = sld [smem:[#allocation0]]
  $region126: #{route_select_forward.1} parent=0
    _
  %s27 = ssub.s32 1, %s25
  %s28 = scalar_select 0, %s27, %s25
  %29 = sst [smem:[#allocation8]] %s0
  %30 = sst [smem:[#allocation9]] %s1
  %v31 = vstv %s23
  %32 = vst [vmem:[#allocation10] sm:$0x1] %v31
  $region1: #{route_select_forward.1} parent=0
    #allocation11 [shape = 'u8[131072]{0}', space=vmem, size = 0x20000, scoped, tag = 'input window, operand 12, single buffered']
    #allocation12 [shape = 's32[1]{0}', space=sflag, size = 0x4, scoped, tag = 'scoped memory for route_select_forward.1']
    #allocation13 [shape = 'u8[32768]{0}', space=vmem, size = 0x8000, scoped, tag = 'input window, operand 16, single buffered']
    #allocation14 [shape = 's32[1]{0}', space=sflag, size = 0x4, scoped, tag = 'scoped memory for route_select_forward.1']
    #allocation15 [shape = 'u8[32768]{0}', space=vmem, size = 0x8000, scoped, tag = 'input window, operand 18, single buffered']
    #allocation16 [shape = 'u8[32768]{0}', space=vmem, size = 0x8000, scoped, tag = 'input window, operand 20, single buffered']
    #allocation17 [shape = 's32[1]{0}', space=sflag, size = 0x4, scoped, tag = 'scoped memory for route_select_forward.1']
    %33 = vsyncpa [#allocation12], 0
    %34 = vsyncpa [#allocation14], 0
    %35 = vsyncpa [#allocation17], 0
    // Predicated region
    $region2: #{route_select_forward.1} parent=1 // pred_check
      _
    $region3: #{route_select_forward.1} parent=1 // pred_check_branch
      %37 = sbr.rel (0) target = $region5
    $region4: #{route_select_forward.1} parent=1 // pred_region
      _
    $region5: #{route_select_forward.1} parent=1 // pred_fallthru
      _
    // Predicated region
    $region6: #{route_select_forward.1} parent=1 // pred_check
      _
    $region7: #{route_select_forward.1} parent=1 // pred_check_branch
      %39 = sbr.rel (0) target = $region9
    $region8: #{route_select_forward.1} parent=1 // pred_region
      %s40 = sadd.s32 0, 0
      %s41 = smul.u32 %s40, 128
      %s42 = sadd.s32 %s41, 0
      %s43 = sld [smem:[#allocation8 + %s42]]
      %s44 = smul.u32 16, %s43
      %p45 = scmp.lt.s32.totalorder %s44, 15
      %s46 = scalar_select %p45, %s44, 15
      %s47 = smul.addr %s46, 4
      %s48 = scalar_lea.vmem %s3, %s47
      %s49 = sadd.s32 0, 0
      %s50 = smul.u32 %s49, 128
      %s51 = sadd.s32 %s50, 0
      %s52 = sld [smem:[#allocation8 + %s51]]
      %s53 = smul.u32 16, %s52
    $region9: #{route_select_forward.1} parent=1 // pred_fallthru
      _
    // Predicated region
    $region10: #{route_select_forward.1} parent=1 // pred_check
      _
    $region11: #{route_select_forward.1} parent=1 // pred_check_branch
      %55 = sbr.rel (0) target = $region13
    $region12: #{route_select_forward.1} parent=1 // pred_region
      %s56 = sadd.s32 0, 0
      %s57 = smul.u32 %s56, 128
      %s58 = sadd.s32 %s57, 0
      %s59 = sld [smem:[#allocation8 + %s58]]
      %p60 = scmp.lt.s32.totalorder %s59, 0
      %s61 = scalar_select %p60, %s59, 0
      %s62 = smul.addr %s61, 4
      %s63 = scalar_lea.vmem %s4, %s62
      %s64 = sadd.s32 0, 0
      %s65 = smul.u32 %s64, 128
      %s66 = sadd.s32 %s65, 0
      %s67 = sld [smem:[#allocation8 + %s66]]
    $region13: #{route_select_forward.1} parent=1 // pred_fallthru
      _
    // Predicated region
    $region14: #{route_select_forward.1} parent=1 // pred_check
      _
    $region15: #{route_select_forward.1} parent=1 // pred_check_branch
      %69 = sbr.rel (0) target = $region17
    $region16: #{route_select_forward.1} parent=1 // pred_region
      %s70 = sadd.s32 0, 0
      %s71 = smul.u32 %s70, 128
      %s72 = sadd.s32 %s71, 0
      %s73 = sld [smem:[#allocation8 + %s72]]
      %p74 = scmp.lt.s32.totalorder %s73, 0
      %s75 = scalar_select %p74, %s73, 0
      %s76 = smul.addr %s75, 8
      %s77 = scalar_lea.vmem %s5, %s76
      %s78 = sadd.s32 0, 0
      %s79 = smul.u32 %s78, 128
      %s80 = sadd.s32 %s79, 0
      %s81 = sld [smem:[#allocation8 + %s80]]
    $region17: #{route_select_forward.1} parent=1 // pred_fallthru
      _
    // Predicated region
    $region18: #{route_select_forward.1} parent=1 // pred_check
      _
    $region19: #{route_select_forward.1} parent=1 // pred_check_branch
      %83 = sbr.rel (0) target = $region21
    $region20: #{route_select_forward.1} parent=1 // pred_region
      _
    $region21: #{route_select_forward.1} parent=1 // pred_fallthru
      _
    // Predicated region
    $region22: #{route_select_forward.1} parent=1 // pred_check
      _
    $region23: #{route_select_forward.1} parent=1 // pred_check_branch
      %85 = sbr.rel (0) target = $region25
    $region24: #{route_select_forward.1} parent=1 // pred_region
      _
    $region25: #{route_select_forward.1} parent=1 // pred_fallthru
      _
    // Predicated region
    $region26: #{route_select_forward.1} parent=1 // pred_check
      _
    $region27: #{route_select_forward.1} parent=1 // pred_check_branch
      %87 = sbr.rel (0) target = $region29
    $region28: #{route_select_forward.1} parent=1 // pred_region
      _
    $region29: #{route_select_forward.1} parent=1 // pred_fallthru
      _
    // Predicated region
    $region30: #{route_select_forward.1} parent=1 // pred_check
      _
    $region31: #{route_select_forward.1} parent=1 // pred_check_branch
      %89 = sbr.rel (0) target = $region33
    $region32: #{route_select_forward.1} parent=1 // pred_region
      _
    $region33: #{route_select_forward.1} parent=1 // pred_fallthru
      _
    // Predicated region
    $region34: #{route_select_forward.1} parent=1 // pred_check
      _
    $region35: #{route_select_forward.1} parent=1 // pred_check_branch
      %91 = sbr.rel (0) target = $region37
    $region36: #{route_select_forward.1} parent=1 // pred_region
      _
    $region37: #{route_select_forward.1} parent=1 // pred_fallthru
      _
    // Predicated region
    $region38: #{route_select_forward.1} parent=1 // pred_check
      _
    $region39: #{route_select_forward.1} parent=1 // pred_check_branch
      %93 = sbr.rel (0) target = $region41
    $region40: #{route_select_forward.1} parent=1 // pred_region
      _
    $region41: #{route_select_forward.1} parent=1 // pred_fallthru
      _
    // Predicated region
    $region42: #{route_select_forward.1} parent=1 // pred_check
      _
    $region43: #{route_select_forward.1} parent=1 // pred_check_branch
      %95 = sbr.rel (0) target = $region45
    $region44: #{route_select_forward.1} parent=1 // pred_region
      %s97 = ssub.s32 4096, 4096
      %98 = vsyncadd [#allocation12], %s97
      %s99 = sshll.u32 [#allocation11], 4
      %s100 = int_to_ptr.vmem [resolvable:$true] %s99
      %105 = dma.hbm_to_vmem [thread:$0]  %s12, 4096, %s100, [#allocation12], 128, 128, 8
    $region45: #{route_select_forward.1} parent=1 // pred_fallthru
      _
    // Predicated region
    $region46: #{route_select_forward.1} parent=1 // pred_check
      _
    $region47: #{route_select_forward.1} parent=1 // pred_check_branch
      %107 = sbr.rel (0) target = $region49
    $region48: #{route_select_forward.1} parent=1 // pred_region
      _
    $region49: #{route_select_forward.1} parent=1 // pred_fallthru
      _
    // Predicated region
    $region50: #{route_select_forward.1} parent=1 // pred_check
      _
    $region51: #{route_select_forward.1} parent=1 // pred_check_branch
      %109 = sbr.rel (0) target = $region53
    $region52: #{route_select_forward.1} parent=1 // pred_region
      _
    $region53: #{route_select_forward.1} parent=1 // pred_fallthru
      _
    // Predicated region
    $region54: #{route_select_forward.1} parent=1 // pred_check
      _
    $region55: #{route_select_forward.1} parent=1 // pred_check_branch
      %111 = sbr.rel (0) target = $region57
    $region56: #{route_select_forward.1} parent=1 // pred_region
      _
    $region57: #{route_select_forward.1} parent=1 // pred_fallthru
      _
    // Predicated region
    $region58: #{route_select_forward.1} parent=1 // pred_check
      _
    $region59: #{route_select_forward.1} parent=1 // pred_check_branch
      %113 = sbr.rel (0) target = $region61
    $region60: #{route_select_forward.1} parent=1 // pred_region
      %s115 = ssub.s32 1024, 1024
      %116 = vsyncadd [#allocation14], %s115
      %s117 = sshll.u32 [#allocation13], 4
      %s118 = int_to_ptr.vmem [resolvable:$true] %s117
      %123 = dma.hbm_to_vmem [thread:$0]  %s16, 1024, %s118, [#allocation14], 64, 64, 4
    $region61: #{route_select_forward.1} parent=1 // pred_fallthru
      _
    // Predicated region
    $region62: #{route_select_forward.1} parent=1 // pred_check
      _
    $region63: #{route_select_forward.1} parent=1 // pred_check_branch
      %125 = sbr.rel (0) target = $region65
    $region64: #{route_select_forward.1} parent=1 // pred_region
      _
    $region65: #{route_select_forward.1} parent=1 // pred_fallthru
      _
    // Predicated region
    $region66: #{route_select_forward.1} parent=1 // pred_check
      _
    $region67: #{route_select_forward.1} parent=1 // pred_check_branch
      %127 = sbr.rel (0) target = $region69
    $region68: #{route_select_forward.1} parent=1 // pred_region
      %s129 = ssub.s32 1024, 1024
      %130 = vsyncadd [#allocation14], %s129
      %s131 = sshll.u32 [#allocation15], 4
      %s132 = int_to_ptr.vmem [resolvable:$true] %s131
      %137 = dma.hbm_to_vmem [thread:$0]  %s18, 1024, %s132, [#allocation14], 64, 64, 4
    $region69: #{route_select_forward.1} parent=1 // pred_fallthru
      _
    // Predicated region
    $region70: #{route_select_forward.1} parent=1 // pred_check
      _
    $region71: #{route_select_forward.1} parent=1 // pred_check_branch
      %139 = sbr.rel (0) target = $region73
    $region72: #{route_select_forward.1} parent=1 // pred_region
      _
    $region73: #{route_select_forward.1} parent=1 // pred_fallthru
      _
    // Predicated region
    $region74: #{route_select_forward.1} parent=1 // pred_check
      _
    $region75: #{route_select_forward.1} parent=1 // pred_check_branch
      %141 = sbr.rel (0) target = $region77
    $region76: #{route_select_forward.1} parent=1 // pred_region
      %s143 = ssub.s32 1024, 1024
      %144 = vsyncadd [#allocation17], %s143
      %s145 = sshll.u32 [#allocation16], 4
      %s146 = int_to_ptr.vmem [resolvable:$true] %s145
      %151 = dma.hbm_to_vmem [thread:$0]  %s20, 1024, %s146, [#allocation17], 64, 64, 4
    $region77: #{route_select_forward.1} parent=1 // pred_fallthru
      _
    // Predicated region
    $region78: #{route_select_forward.1} parent=1 // pred_check
      _
    $region79: #{route_select_forward.1} parent=1 // pred_check_branch
      %153 = sbr.rel (0) target = $region81
    $region80: #{route_select_forward.1} parent=1 // pred_region
      _
    $region81: #{route_select_forward.1} parent=1 // pred_fallthru
      _
    // Predicated region
    $region82: #{route_select_forward.1} parent=1 // pred_check
      _
    $region83: #{route_select_forward.1} parent=1 // pred_check_branch
      %155 = sbr.rel (0) target = $region85
    $region84: #{route_select_forward.1} parent=1 // pred_region
      _
    $region85: #{route_select_forward.1} parent=1 // pred_fallthru
      _
    // Predicated region
    $region86: #{route_select_forward.1} parent=1 // pred_check
      _
    $region87: #{route_select_forward.1} parent=1 // pred_check_branch
      %157 = sbr.rel (0) target = $region89
    $region88: #{route_select_forward.1} parent=1 // pred_region
      _
    $region89: #{route_select_forward.1} parent=1 // pred_fallthru
      _
    // Predicated region
    $region90: #{route_select_forward.1} parent=1 // pred_check
      _
    $region91: #{route_select_forward.1} parent=1 // pred_check_branch
      %159 = sbr.rel (0) target = $region93
    $region92: #{route_select_forward.1} parent=1 // pred_region
      %160 = dma.done [#allocation12], 4096
    $region93: #{route_select_forward.1} parent=1 // pred_fallthru
      _
    // Predicated region
    $region94: #{route_select_forward.1} parent=1 // pred_check
      _
    $region95: #{route_select_forward.1} parent=1 // pred_check_branch
      %162 = sbr.rel (0) target = $region97
    $region96: #{route_select_forward.1} parent=1 // pred_region
      %163 = dma.done [#allocation14], 1024
    $region97: #{route_select_forward.1} parent=1 // pred_fallthru
      _
    // Predicated region
    $region98: #{route_select_forward.1} parent=1 // pred_check
      _
    $region99: #{route_select_forward.1} parent=1 // pred_check_branch
      %165 = sbr.rel (0) target = $region101
    $region100: #{route_select_forward.1} parent=1 // pred_region
      %166 = dma.done [#allocation14], 1024
    $region101: #{route_select_forward.1} parent=1 // pred_fallthru
      _
    // Predicated region
    $region102: #{route_select_forward.1} parent=1 // pred_check
      _
    $region103: #{route_select_forward.1} parent=1 // pred_check_branch
      %168 = sbr.rel (0) target = $region105
    $region104: #{route_select_forward.1} parent=1 // pred_region
      %169 = dma.done [#allocation17], 1024
    $region105: #{route_select_forward.1} parent=1 // pred_fallthru
      _
    %s170 = sadd.s32 0, 0
    %s171 = smul.u32 %s170, 128
    %s172 = sadd.s32 %s171, 0
    %s173 = sld [smem:[#allocation8 + %s172]]
    %s174 = smul.u32 16, %s173
    %p175 = scmp.lt.s32.totalorder %s174, 15
    %s176 = scalar_select %p175, %s174, 15
    %s177 = smul.addr %s176, 4
    %s178 = scalar_lea.vmem %s3, %s177
    %s179 = sadd.s32 0, 0
    %s180 = smul.u32 %s179, 128
    %s181 = sadd.s32 %s180, 0
    %s182 = sld [smem:[#allocation8 + %s181]]
    %p183 = scmp.lt.s32.totalorder %s182, 0
    %s184 = scalar_select %p183, %s182, 0
    %s185 = smul.addr %s184, 4
    %s186 = scalar_lea.vmem %s4, %s185
    %s187 = sadd.s32 0, 0
    %s188 = smul.u32 %s187, 128
    %s189 = sadd.s32 %s188, 0
    %s190 = sld [smem:[#allocation8 + %s189]]
    %p191 = scmp.lt.s32.totalorder %s190, 0
    %s192 = scalar_select %p191, %s190, 0
    %s193 = smul.addr %s192, 8
    %s194 = scalar_lea.vmem %s5, %s193
    %s195 = sadd.s32 0, 0
    %s196 = smul.u32 %s195, 128
    %s197 = sadd.s32 %s196, 0
    %s198 = sld [smem:[#allocation8 + %s197]]
    %s199 = smul.u32 16, %s198
    %p200 = scmp.lt.s32.totalorder %s199, 15
    %s201 = scalar_select %p200, %s199, 15
    %s202 = smul.addr %s201, 4
    %s203 = scalar_lea.vmem %s3, %s202
    %s204 = sadd.s32 0, 0
    %s205 = smul.u32 %s204, 128
    %s206 = sadd.s32 %s205, 0
    %s207 = sld [smem:[#allocation8 + %s206]]
    %s208 = smul.u32 16, %s207
    %s209 = sadd.s32 0, 0
    %s210 = smul.u32 %s209, 128
    %s211 = sadd.s32 %s210, 0
    %s212 = sld [smem:[#allocation8 + %s211]]
    %p213 = scmp.lt.s32.totalorder %s212, 0
    %s214 = scalar_select %p213, %s212, 0
    %s215 = smul.addr %s214, 4
    %s216 = scalar_lea.vmem %s4, %s215
    %s217 = sadd.s32 0, 0
    %s218 = smul.u32 %s217, 128
    %s219 = sadd.s32 %s218, 0
    %s220 = sld [smem:[#allocation8 + %s219]]
    %s221 = sadd.s32 0, 0
    %s222 = smul.u32 %s221, 128
    %s223 = sadd.s32 %s222, 0
    %s224 = sld [smem:[#allocation8 + %s223]]
    %p225 = scmp.lt.s32.totalorder %s224, 0
    %s226 = scalar_select %p225, %s224, 0
    %s227 = smul.addr %s226, 8
    %s228 = scalar_lea.vmem %s5, %s227
    %s229 = sadd.s32 0, 0
    %s230 = smul.u32 %s229, 128
    %s231 = sadd.s32 %s230, 0
    %s232 = sld [smem:[#allocation8 + %s231]]
    %p234 = scmp.eq.s32.totalorder 0, 0
    // Predicated region
    $region106: #{route_select_forward.1} parent=1 // pred_check
      %p235 = pneg %p234
    $region107: #{route_select_forward.1} parent=1 // pred_check_branch
      %237 = sbr.rel (%p235) target = $region109
    $region108: #{route_select_forward.1} parent=1 // pred_region
      %v238 = vld [vmem:[%s2] sm:$0xf]
      %v239 = vld [vmem:[%s2 + $0x4] sm:$0xf]
      %v240 = vld [vmem:[%s2 + $0x8] sm:$0xf]
      %v241 = vld [vmem:[%s2 + $0xc] sm:$0xf]
      %v242 = vld [vmem:[%s2 + $0x10] sm:$0xf]
      %v243 = vld [vmem:[%s2 + $0x14] sm:$0xf]
      %v244 = vld [vmem:[%s2 + $0x18] sm:$0xf]
      %v245 = vld [vmem:[%s2 + $0x1c] sm:$0xf]
      %v246 = vld [vmem:[%s7] sm:$0xf]
      %v255 = vunpack.c.l.b16 %v238
      %v256 = vunpack.c.l.b16 %v239
      %v257 = vunpack.c.l.b16 %v240
      %v258 = vunpack.c.l.b16 %v241
      %v259 = vunpack.c.l.b16 %v242
      %v260 = vunpack.c.l.b16 %v243
      %v261 = vunpack.c.l.b16 %v244
      %v262 = vunpack.c.l.b16 %v245
      %v263 = vpack.c.b16 %v256, %v255
      %v264 = vpack.c.b16 %v258, %v257
      %v265 = vpack.c.b16 %v260, %v259
      %v266 = vpack.c.b16 %v262, %v261
      %vm267 = vcmask 64512
      %v269 = vsel %vm267, %v263, 0
      %v272 = vsel %vm267, %v264, 0
      %v275 = vsel %vm267, %v265, 0
      %v278 = vsel %vm267, %v266, 0
      %vm280 = vcmask 1043456
      %v282 = vsel %vm280, %v246, 0
      %284 = vmatprep.subr.bf16.mxu0 0
      %285 = vmatpush1.bf16.msra.mxu0 0
      %286 = vmatprep.subr.bf16.mxu0 0
      %287 = vmatpush1.bf16.msra.mxu0 0
      %288 = vmatprep.subr.bf16.mxu0 0
      %289 = vmatpush1.bf16.msra.mxu0 0
      %290 = vmatprep.subr.bf16.mxu0 0
      %291 = vmatpush1.bf16.msra.mxu0 0
      %292 = vmatprep.subr.bf16.mxu0 0
      %293 = vmatpush1.bf16.msra.mxu0 0
      %294 = vmatprep.subr.bf16.mxu0 0
      %295 = vmatpush1.bf16.msra.mxu0 0
      %296 = vmatprep.subr.bf16.mxu0 0
      %297 = vmatpush1.bf16.msra.mxu0 0
      %298 = vmatprep.subr.bf16.mxu0 0
      %299 = vmatpush1.bf16.msra.mxu0 %v282
      %300 = vmatprep.subr.bf16.mxu0 0
      %301 = vmatpush2.bf16.msra.mxu0 0
      %302 = vmatprep.subr.bf16.mxu0 0
      %303 = vmatpush2.bf16.msra.mxu0 0
      %304 = vmatprep.subr.bf16.mxu0 0
      %305 = vmatpush2.bf16.msra.mxu0 0
      %306 = vmatprep.subr.bf16.mxu0 0
      %307 = vmatpush2.bf16.msra.mxu0 0
      %308 = vmatprep.subr.bf16.mxu0 0
      %309 = vmatpush2.bf16.msra.mxu0 0
      %310 = vmatprep.subr.bf16.mxu0 0
      %311 = vmatpush2.bf16.msra.mxu0 0
      %312 = vmatprep.subr.bf16.mxu0 0
      %313 = vmatpush2.bf16.msra.mxu0 0
      %314 = vmatprep.subr.bf16.mxu0 0
      %315 = vmatpush2.bf16.msra.mxu0 0
      %316 = vmatprep.mubr.bf16.mxu0 0
      %317 = vmatmul.mubr.bf16.gmra.mxu0 %v269
      %v318 = vpop.f32.mrf.mxu0
      %v319 = vadd.f32 0.0, %v318
      %v320 = vpop.f32.mrf.mxu0
      %v321 = vpop.f32.mrf.mxu0
      %v322 = vadd.f32 0.0, %v321
      %v323 = vpop.f32.mrf.mxu0
      %324 = vmatprep.mubr.bf16.mxu0 0
      %325 = vmatmul.mubr.bf16.gmra.mxu0 %v272
      %v326 = vpop.f32.mrf.mxu0
      %v327 = vadd.f32 0.0, %v326
      %v328 = vpop.f32.mrf.mxu0
      %v329 = vpop.f32.mrf.mxu0
      %v330 = vadd.f32 0.0, %v329
      %v331 = vpop.f32.mrf.mxu0
      %332 = vmatprep.mubr.bf16.mxu0 0
      %333 = vmatmul.mubr.bf16.gmra.mxu0 %v275
      %v334 = vpop.f32.mrf.mxu0
      %v335 = vadd.f32 0.0, %v334
      %v336 = vpop.f32.mrf.mxu0
      %v337 = vpop.f32.mrf.mxu0
      %v338 = vadd.f32 0.0, %v337
      %v339 = vpop.f32.mrf.mxu0
      %340 = vmatprep.mubr.bf16.mxu0 0
      %341 = vmatmul.mubr.bf16.gmra.mxu0 %v278
      %v342 = vpop.f32.mrf.mxu0
      %v343 = vadd.f32 0.0, %v342
      %v344 = vpop.f32.mrf.mxu0
      %v345 = vpop.f32.mrf.mxu0
      %v346 = vadd.f32 0.0, %v345
      %v347 = vpop.f32.mrf.mxu0
      %348 = vdwg.mxu0
      %vm349 = vcmask 15360
      %350 = vst.msk [vmem:[#allocation2] sm:$0xff] %vm349, %v319
      %351 = vst.msk [vmem:[#allocation2 + $0x8] sm:$0xff] %vm349, %v322
      %352 = vst.msk [vmem:[#allocation2 + $0x10] sm:$0xff] %vm349, %v327
      %353 = vst.msk [vmem:[#allocation2 + $0x18] sm:$0xff] %vm349, %v330
      %354 = vst.msk [vmem:[#allocation2 + $0x20] sm:$0xff] %vm349, %v335
      %355 = vst.msk [vmem:[#allocation2 + $0x28] sm:$0xff] %vm349, %v338
      %356 = vst.msk [vmem:[#allocation2 + $0x30] sm:$0xff] %vm349, %v343
      %357 = vst.msk [vmem:[#allocation2 + $0x38] sm:$0xff] %vm349, %v346
      %358 = vst.msk [vmem:[#allocation3] sm:$0xff] %vm349, -1e+30
      %359 = vst.msk [vmem:[#allocation3 + $0x8] sm:$0xff] %vm349, -1e+30
      %360 = vst.msk [vmem:[#allocation3 + $0x10] sm:$0xff] %vm349, -1e+30
      %361 = vst.msk [vmem:[#allocation3 + $0x18] sm:$0xff] %vm349, -1e+30
      %362 = vst.msk [vmem:[#allocation3 + $0x20] sm:$0xff] %vm349, -1e+30
      %363 = vst.msk [vmem:[#allocation3 + $0x28] sm:$0xff] %vm349, -1e+30
      %364 = vst.msk [vmem:[#allocation3 + $0x30] sm:$0xff] %vm349, -1e+30
      %365 = vst.msk [vmem:[#allocation3 + $0x38] sm:$0xff] %vm349, -1e+30
      %366 = vst.msk [vmem:[#allocation4] sm:$0xff] %vm349, 0.0
      %367 = vst.msk [vmem:[#allocation4 + $0x8] sm:$0xff] %vm349, 0.0
      %368 = vst.msk [vmem:[#allocation4 + $0x10] sm:$0xff] %vm349, 0.0
      %369 = vst.msk [vmem:[#allocation4 + $0x18] sm:$0xff] %vm349, 0.0
      %370 = vst.msk [vmem:[#allocation4 + $0x20] sm:$0xff] %vm349, 0.0
      %371 = vst.msk [vmem:[#allocation4 + $0x28] sm:$0xff] %vm349, 0.0
      %372 = vst.msk [vmem:[#allocation4 + $0x30] sm:$0xff] %vm349, 0.0
      %373 = vst.msk [vmem:[#allocation4 + $0x38] sm:$0xff] %vm349, 0.0
      %374 = vst.msk [vmem:[#allocation5] sm:$0xff] %vm267, 0.0
      %375 = vst.msk [vmem:[#allocation5 + $0x8] sm:$0xff] %vm267, 0.0
      %376 = vst.msk [vmem:[#allocation5 + $0x10] sm:$0xff] %vm267, 0.0
      %377 = vst.msk [vmem:[#allocation5 + $0x18] sm:$0xff] %vm267, 0.0
      %378 = vst.msk [vmem:[#allocation5 + $0x20] sm:$0xff] %vm267, 0.0
      %379 = vst.msk [vmem:[#allocation5 + $0x28] sm:$0xff] %vm267, 0.0
      %380 = vst.msk [vmem:[#allocation5 + $0x30] sm:$0xff] %vm267, 0.0
      %381 = vst.msk [vmem:[#allocation5 + $0x38] sm:$0xff] %vm267, 0.0
    $region109: #{route_select_forward.1} parent=1 // pred_fallthru
      _
    %s382 = sld [smem:[#allocation9]]
    %p383 = scmp.lt.s32.totalorder 0, %s382
    // Predicated region
    $region110: #{route_select_forward.1} parent=1 // pred_check
      %p384 = pneg %p383
    $region111: #{route_select_forward.1} parent=1 // pred_check_branch
      %386 = sbr.rel (%p384) target = $region113
    $region112: #{route_select_forward.1} parent=1 // pred_region
      %v387 = vld [vmem:[%s203] sm:$0xf]
      %v388 = vld [vmem:[%s203 + $0x4] sm:$0xf]
      %v389 = vld [vmem:[%s203 + $0x8] sm:$0xf]
      %v390 = vld [vmem:[%s203 + $0xc] sm:$0xf]
      %v391 = vld [vmem:[%s203 + $0x10] sm:$0xf]
      %v392 = vld [vmem:[%s203 + $0x14] sm:$0xf]
      %v393 = vld [vmem:[%s203 + $0x18] sm:$0xf]
      %v394 = vld [vmem:[%s203 + $0x1c] sm:$0xf]
      %v395 = vld [vmem:[%s203 + $0x20] sm:$0xf]
      %v396 = vld [vmem:[%s203 + $0x24] sm:$0xf]
      %v397 = vld [vmem:[%s203 + $0x28] sm:$0xf]
      %v398 = vld [vmem:[%s203 + $0x2c] sm:$0xf]
      %v399 = vld [vmem:[%s203 + $0x30] sm:$0xf]
      %v400 = vld [vmem:[%s203 + $0x34] sm:$0xf]
      %v401 = vld [vmem:[%s203 + $0x38] sm:$0xf]
      %v402 = vld [vmem:[%s203 + $0x3c] sm:$0xf]
      %v403 = vld [vmem:[%s6] sm:$0xf]
      %v420 = vunpack.c.l.b16 %v387
      %v421 = vunpack.c.l.b16 %v388
      %v422 = vunpack.c.l.b16 %v389
      %v423 = vunpack.c.l.b16 %v390
      %v424 = vunpack.c.l.b16 %v391
      %v425 = vunpack.c.l.b16 %v392
      %v426 = vunpack.c.l.b16 %v393
      %v427 = vunpack.c.l.b16 %v394
      %v428 = vunpack.c.l.b16 %v395
      %v429 = vunpack.c.l.b16 %v396
      %v430 = vunpack.c.l.b16 %v397
      %v431 = vunpack.c.l.b16 %v398
      %v432 = vunpack.c.l.b16 %v399
      %v433 = vunpack.c.l.b16 %v400
      %v434 = vunpack.c.l.b16 %v401
      %v435 = vunpack.c.l.b16 %v402
      %v436 = vpack.c.b16 %v421, %v420
      %v437 = vpack.c.b16 %v423, %v422
      %v438 = vpack.c.b16 %v425, %v424
      %v439 = vpack.c.b16 %v427, %v426
      %v440 = vpack.c.b16 %v429, %v428
      %v441 = vpack.c.b16 %v431, %v430
      %v442 = vpack.c.b16 %v433, %v432
      %v443 = vpack.c.b16 %v435, %v434
      %vm444 = vcmask 64512
      %v446 = vsel %vm444, %v436, 0
      %v449 = vsel %vm444, %v437, 0
      %v452 = vsel %vm444, %v438, 0
      %v455 = vsel %vm444, %v439, 0
      %v458 = vsel %vm444, %v440, 0
      %v461 = vsel %vm444, %v441, 0
      %v464 = vsel %vm444, %v442, 0
      %v467 = vsel %vm444, %v443, 0
      %vm469 = vcmask 1043456
      %v471 = vsel %vm469, %v403, 0
      %473 = vmatprep.subr.bf16.mxu0 0
      %474 = vmatpush1.bf16.msra.mxu0 0
      %475 = vmatprep.subr.bf16.mxu0 0
      %476 = vmatpush1.bf16.msra.mxu0 0
      %477 = vmatprep.subr.bf16.mxu0 0
      %478 = vmatpush1.bf16.msra.mxu0 0
      %479 = vmatprep.subr.bf16.mxu0 0
      %480 = vmatpush1.bf16.msra.mxu0 0
      %481 = vmatprep.subr.bf16.mxu0 0
      %482 = vmatpush1.bf16.msra.mxu0 0
      %483 = vmatprep.subr.bf16.mxu0 0
      %484 = vmatpush1.bf16.msra.mxu0 0
      %485 = vmatprep.subr.bf16.mxu0 0
      %486 = vmatpush1.bf16.msra.mxu0 0
      %487 = vmatprep.subr.bf16.mxu0 0
      %488 = vmatpush1.bf16.msra.mxu0 %v471
      %489 = vmatprep.subr.bf16.mxu0 0
      %490 = vmatpush2.bf16.msra.mxu0 0
      %491 = vmatprep.subr.bf16.mxu0 0
      %492 = vmatpush2.bf16.msra.mxu0 0
      %493 = vmatprep.subr.bf16.mxu0 0
      %494 = vmatpush2.bf16.msra.mxu0 0
      %495 = vmatprep.subr.bf16.mxu0 0
      %496 = vmatpush2.bf16.msra.mxu0 0
      %497 = vmatprep.subr.bf16.mxu0 0
      %498 = vmatpush2.bf16.msra.mxu0 0
      %499 = vmatprep.subr.bf16.mxu0 0
      %500 = vmatpush2.bf16.msra.mxu0 0
      %501 = vmatprep.subr.bf16.mxu0 0
      %502 = vmatpush2.bf16.msra.mxu0 0
      %503 = vmatprep.subr.bf16.mxu0 0
      %504 = vmatpush2.bf16.msra.mxu0 0
      %505 = vmatprep.mubr.bf16.mxu0 0
      %506 = vmatmul.mubr.bf16.gmra.mxu0 %v446
      %v507 = vpop.f32.mrf.mxu0
      %v508 = vadd.f32 0.0, %v507
      %v509 = vpop.f32.mrf.mxu0
      %v510 = vpop.f32.mrf.mxu0
      %v511 = vadd.f32 0.0, %v510
      %v512 = vpop.f32.mrf.mxu0
      %513 = vmatprep.mubr.bf16.mxu0 0
      %514 = vmatmul.mubr.bf16.gmra.mxu0 %v449
      %v515 = vpop.f32.mrf.mxu0
      %v516 = vadd.f32 0.0, %v515
      %v517 = vpop.f32.mrf.mxu0
      %v518 = vpop.f32.mrf.mxu0
      %v519 = vadd.f32 0.0, %v518
      %v520 = vpop.f32.mrf.mxu0
      %521 = vmatprep.mubr.bf16.mxu0 0
      %522 = vmatmul.mubr.bf16.gmra.mxu0 %v452
      %v523 = vpop.f32.mrf.mxu0
      %v524 = vadd.f32 0.0, %v523
      %v525 = vpop.f32.mrf.mxu0
      %v526 = vpop.f32.mrf.mxu0
      %v527 = vadd.f32 0.0, %v526
      %v528 = vpop.f32.mrf.mxu0
      %529 = vmatprep.mubr.bf16.mxu0 0
      %530 = vmatmul.mubr.bf16.gmra.mxu0 %v455
      %v531 = vpop.f32.mrf.mxu0
      %v532 = vadd.f32 0.0, %v531
      %v533 = vpop.f32.mrf.mxu0
      %v534 = vpop.f32.mrf.mxu0
      %v535 = vadd.f32 0.0, %v534
      %v536 = vpop.f32.mrf.mxu0
      %537 = vmatprep.mubr.bf16.mxu0 0
      %538 = vmatmul.mubr.bf16.gmra.mxu0 %v458
      %v539 = vpop.f32.mrf.mxu0
      %v540 = vadd.f32 0.0, %v539
      %v541 = vpop.f32.mrf.mxu0
      %v542 = vpop.f32.mrf.mxu0
      %v543 = vadd.f32 0.0, %v542
      %v544 = vpop.f32.mrf.mxu0
      %545 = vmatprep.mubr.bf16.mxu0 0
      %546 = vmatmul.mubr.bf16.gmra.mxu0 %v461
      %v547 = vpop.f32.mrf.mxu0
      %v548 = vadd.f32 0.0, %v547
      %v549 = vpop.f32.mrf.mxu0
      %v550 = vpop.f32.mrf.mxu0
      %v551 = vadd.f32 0.0, %v550
      %v552 = vpop.f32.mrf.mxu0
      %553 = vmatprep.mubr.bf16.mxu0 0
      %554 = vmatmul.mubr.bf16.gmra.mxu0 %v464
      %v555 = vpop.f32.mrf.mxu0
      %v556 = vadd.f32 0.0, %v555
      %v557 = vpop.f32.mrf.mxu0
      %v558 = vpop.f32.mrf.mxu0
      %v559 = vadd.f32 0.0, %v558
      %v560 = vpop.f32.mrf.mxu0
      %561 = vmatprep.mubr.bf16.mxu0 0
      %562 = vmatmul.mubr.bf16.gmra.mxu0 %v467
      %v563 = vpop.f32.mrf.mxu0
      %v564 = vadd.f32 0.0, %v563
      %v565 = vpop.f32.mrf.mxu0
      %v566 = vpop.f32.mrf.mxu0
      %v567 = vadd.f32 0.0, %v566
      %v568 = vpop.f32.mrf.mxu0
      %569 = vdwg.mxu0
      %v570 = vpack.c.bf16 %v511, %v508
      %v571 = vpack.c.bf16 %v519, %v516
      %v572 = vpack.c.bf16 %v527, %v524
      %v573 = vpack.c.bf16 %v535, %v532
      %v574 = vpack.c.bf16 %v543, %v540
      %v575 = vpack.c.bf16 %v551, %v548
      %v576 = vpack.c.bf16 %v559, %v556
      %v577 = vpack.c.bf16 %v567, %v564
      %v578 = vld [vmem:[%s8] sm:$0x1]
      %v579 = vld [vmem:[%s216] sm:$0xf]
      %v581 = vsel %vm444, %v578, 0
      %v584 = vsel %vm469, %v579, 0
      %586 = vmatprep.subr.bf16.mxu0 0
      %587 = vmatpush1.bf16.msra.mxu0 0
      %588 = vmatprep.subr.bf16.mxu0 0
      %589 = vmatpush1.bf16.msra.mxu0 0
      %590 = vmatprep.subr.bf16.mxu0 0
      %591 = vmatpush1.bf16.msra.mxu0 0
      %592 = vmatprep.subr.bf16.mxu0 0
      %593 = vmatpush1.bf16.msra.mxu0 0
      %594 = vmatprep.subr.bf16.mxu0 0
      %595 = vmatpush1.bf16.msra.mxu0 0
      %596 = vmatprep.subr.bf16.mxu0 0
      %597 = vmatpush1.bf16.msra.mxu0 0
      %598 = vmatprep.subr.bf16.mxu0 0
      %599 = vmatpush1.bf16.msra.mxu0 0
      %600 = vmatprep.subr.bf16.mxu0 0
      %601 = vmatpush1.bf16.msra.mxu0 %v584
      %602 = vmatprep.subr.bf16.mxu0 0
      %603 = vmatpush2.bf16.msra.mxu0 0
      %604 = vmatprep.subr.bf16.mxu0 0
      %605 = vmatpush2.bf16.msra.mxu0 0
      %606 = vmatprep.subr.bf16.mxu0 0
      %607 = vmatpush2.bf16.msra.mxu0 0
      %608 = vmatprep.subr.bf16.mxu0 0
      %609 = vmatpush2.bf16.msra.mxu0 0
      %610 = vmatprep.subr.bf16.mxu0 0
      %611 = vmatpush2.bf16.msra.mxu0 0
      %612 = vmatprep.subr.bf16.mxu0 0
      %613 = vmatpush2.bf16.msra.mxu0 0
      %614 = vmatprep.subr.bf16.mxu0 0
      %615 = vmatpush2.bf16.msra.mxu0 0
      %616 = vmatprep.subr.bf16.mxu0 0
      %617 = vmatpush2.bf16.msra.mxu0 0
      %618 = vmatprep.mubr.bf16.mxu0 0
      %619 = vmatmul.mubr.bf16.gmra.mxu0 %v581
      %v620 = vpop.f32.mrf.mxu0
      %v621 = vadd.f32 0.0, %v620
      %v622 = vpop.f32.mrf.mxu0
      %v623 = vpop.f32.mrf.mxu0
      %v624 = vpop.f32.mrf.mxu0
      %625 = vdwg.mxu0
      %v626 = vld [vmem:[%s228] sm:$0xff]
      %v627 = vld [vmem:[%s228 + $0x8] sm:$0xff]
      %v628 = vunpack.c.0.s8 %v626
      %v629 = vunpack.c.1.s8 %v626
      %v630 = vunpack.c.2.s8 %v626
      %v631 = vunpack.c.3.s8 %v626
      %v632 = vunpack.c.0.s8 %v627
      %v633 = vunpack.c.1.s8 %v627
      %v634 = vunpack.c.2.s8 %v627
      %v635 = vunpack.c.3.s8 %v627
      %v636 = vcvt.s32.f32 %v628
      %v637 = vcvt.s32.f32 %v629
      %v638 = vcvt.s32.f32 %v630
      %v639 = vcvt.s32.f32 %v631
      %v640 = vcvt.s32.f32 %v632
      %v641 = vcvt.s32.f32 %v633
      %v642 = vcvt.s32.f32 %v634
      %v643 = vcvt.s32.f32 %v635
      %v644 = vld [vmem:[#allocation2] sm:$0xff]
      %v645 = vld [vmem:[#allocation2 + $0x8] sm:$0xff]
      %v646 = vld [vmem:[#allocation2 + $0x10] sm:$0xff]
      %v647 = vld [vmem:[#allocation2 + $0x18] sm:$0xff]
      %v648 = vld [vmem:[#allocation2 + $0x20] sm:$0xff]
      %v649 = vld [vmem:[#allocation2 + $0x28] sm:$0xff]
      %v650 = vld [vmem:[#allocation2 + $0x30] sm:$0xff]
      %v651 = vld [vmem:[#allocation2 + $0x38] sm:$0xff]
      %653 = vset.pattern.permute.xlu0 0
      %654 = vperm.xlu0 %653, %v644
      %v655 = vpop.permute.xlu0 %654
      %658 = vset.pattern.permute.xlu0 0
      %659 = vperm.xlu0 %658, %v645
      %v660 = vpop.permute.xlu0 %659
      %663 = vset.pattern.permute.xlu0 0
      %664 = vperm.xlu0 %663, %v646
      %v665 = vpop.permute.xlu0 %664
      %668 = vset.pattern.permute.xlu0 0
      %669 = vperm.xlu0 %668, %v647
      %v670 = vpop.permute.xlu0 %669
      %673 = vset.pattern.permute.xlu0 0
      %674 = vperm.xlu0 %673, %v648
      %v675 = vpop.permute.xlu0 %674
      %678 = vset.pattern.permute.xlu0 0
      %679 = vperm.xlu0 %678, %v649
      %v680 = vpop.permute.xlu0 %679
      %683 = vset.pattern.permute.xlu0 0
      %684 = vperm.xlu0 %683, %v650
      %v685 = vpop.permute.xlu0 %684
      %688 = vset.pattern.permute.xlu0 0
      %689 = vperm.xlu0 %688, %v651
      %v690 = vpop.permute.xlu0 %689
      %v692 = vlaneseq
      %v693 = vshrl.u32 %v692, 7
      %v694 = vsub.s32 0, %v693
      %v695 = vrot.slane %v621, %v694
      %v696 = vadd.f32 %v655, %v695
      %v697 = vadd.f32 %v660, %v695
      %v698 = vadd.f32 %v665, %v695
      %v699 = vadd.f32 %v670, %v695
      %v700 = vadd.f32 %v675, %v695
      %v701 = vadd.f32 %v680, %v695
      %v702 = vadd.f32 %v685, %v695
      %v703 = vadd.f32 %v690, %v695
      %v704 = vmul.f32 %v696, 0.2
      %v705 = vmul.f32 %v697, 0.2
      %v706 = vmul.f32 %v698, 0.2
      %v707 = vmul.f32 %v699, 0.2
      %v708 = vmul.f32 %v700, 0.2
      %v709 = vmul.f32 %v701, 0.2
      %v710 = vmul.f32 %v702, 0.2
      %v711 = vmul.f32 %v703, 0.2
      %v712 = vmax.f32 %v696, %v704
      %v713 = vmax.f32 %v697, %v705
      %v714 = vmax.f32 %v698, %v706
      %v715 = vmax.f32 %v699, %v707
      %v716 = vmax.f32 %v700, %v708
      %v717 = vmax.f32 %v701, %v709
      %v718 = vmax.f32 %v702, %v710
      %v719 = vmax.f32 %v703, %v711
      %v720 = vld [vmem:[#allocation3] sm:$0xff]
      %v721 = vld [vmem:[#allocation3 + $0x8] sm:$0xff]
      %v722 = vld [vmem:[#allocation3 + $0x10] sm:$0xff]
      %v723 = vld [vmem:[#allocation3 + $0x18] sm:$0xff]
      %v724 = vld [vmem:[#allocation3 + $0x20] sm:$0xff]
      %v725 = vld [vmem:[#allocation3 + $0x28] sm:$0xff]
      %v726 = vld [vmem:[#allocation3 + $0x30] sm:$0xff]
      %v727 = vld [vmem:[#allocation3 + $0x38] sm:$0xff]
      %728 = vmax.xlane.f32.xlu0 %v712
      %v729 = vpop.xlane.xlu0 %728
      %730 = vmax.xlane.f32.xlu0 %v713
      %v731 = vpop.xlane.xlu0 %730
      %732 = vmax.xlane.f32.xlu0 %v714
      %v733 = vpop.xlane.xlu0 %732
      %734 = vmax.xlane.f32.xlu0 %v715
      %v735 = vpop.xlane.xlu0 %734
      %736 = vmax.xlane.f32.xlu0 %v716
      %v737 = vpop.xlane.xlu0 %736
      %738 = vmax.xlane.f32.xlu0 %v717
      %v739 = vpop.xlane.xlu0 %738
      %740 = vmax.xlane.f32.xlu0 %v718
      %v741 = vpop.xlane.xlu0 %740
      %742 = vmax.xlane.f32.xlu0 %v719
      %v743 = vpop.xlane.xlu0 %742
      %v744 = vmax.f32 %v720, %v729
      %v745 = vmax.f32 %v721, %v731
      %v746 = vmax.f32 %v722, %v733
      %v747 = vmax.f32 %v723, %v735
      %v748 = vmax.f32 %v724, %v737
      %v749 = vmax.f32 %v725, %v739
      %v750 = vmax.f32 %v726, %v741
      %v751 = vmax.f32 %v727, %v743
      %v752 = vsub.f32 %v720, %v744
      %v753 = vsub.f32 %v721, %v745
      %v754 = vsub.f32 %v722, %v746
      %v755 = vsub.f32 %v723, %v747
      %v756 = vsub.f32 %v724, %v748
      %v757 = vsub.f32 %v725, %v749
      %v758 = vsub.f32 %v726, %v750
      %v759 = vsub.f32 %v727, %v751
      %v760 = vmul.f32 %v752, 1.442695
      %v761 = vpow.pop %v760
      %v762 = vmul.f32 %v753, 1.442695
      %v763 = vpow.pop %v762
      %v764 = vmul.f32 %v754, 1.442695
      %v765 = vpow.pop %v764
      %v766 = vmul.f32 %v755, 1.442695
      %v767 = vpow.pop %v766
      %v768 = vmul.f32 %v756, 1.442695
      %v769 = vpow.pop %v768
      %v770 = vmul.f32 %v757, 1.442695
      %v771 = vpow.pop %v770
      %v772 = vmul.f32 %v758, 1.442695
      %v773 = vpow.pop %v772
      %v774 = vmul.f32 %v759, 1.442695
      %v775 = vpow.pop %v774
      %777 = vset.pattern.permute.xlu0 0
      %778 = vperm.xlu0 %777, %v744
      %v779 = vpop.permute.xlu0 %778
      %782 = vset.pattern.permute.xlu0 0
      %783 = vperm.xlu0 %782, %v745
      %v784 = vpop.permute.xlu0 %783
      %787 = vset.pattern.permute.xlu0 0
      %788 = vperm.xlu0 %787, %v746
      %v789 = vpop.permute.xlu0 %788
      %792 = vset.pattern.permute.xlu0 0
      %793 = vperm.xlu0 %792, %v747
      %v794 = vpop.permute.xlu0 %793
      %797 = vset.pattern.permute.xlu0 0
      %798 = vperm.xlu0 %797, %v748
      %v799 = vpop.permute.xlu0 %798
      %802 = vset.pattern.permute.xlu0 0
      %803 = vperm.xlu0 %802, %v749
      %v804 = vpop.permute.xlu0 %803
      %807 = vset.pattern.permute.xlu0 0
      %808 = vperm.xlu0 %807, %v750
      %v809 = vpop.permute.xlu0 %808
      %812 = vset.pattern.permute.xlu0 0
      %813 = vperm.xlu0 %812, %v751
      %v814 = vpop.permute.xlu0 %813
      %v816 = vsub.f32 %v712, %v779
      %v817 = vsub.f32 %v713, %v784
      %v818 = vsub.f32 %v714, %v789
      %v819 = vsub.f32 %v715, %v794
      %v820 = vsub.f32 %v716, %v799
      %v821 = vsub.f32 %v717, %v804
      %v822 = vsub.f32 %v718, %v809
      %v823 = vsub.f32 %v719, %v814
      %v824 = vmul.f32 %v816, 1.442695
      %v825 = vpow.pop %v824
      %v826 = vmul.f32 %v817, 1.442695
      %v827 = vpow.pop %v826
      %v828 = vmul.f32 %v818, 1.442695
      %v829 = vpow.pop %v828
      %v830 = vmul.f32 %v819, 1.442695
      %v831 = vpow.pop %v830
      %v832 = vmul.f32 %v820, 1.442695
      %v833 = vpow.pop %v832
      %v834 = vmul.f32 %v821, 1.442695
      %v835 = vpow.pop %v834
      %v836 = vmul.f32 %v822, 1.442695
      %v837 = vpow.pop %v836
      %v838 = vmul.f32 %v823, 1.442695
      %v839 = vpow.pop %v838
      %v840 = vmul.f32 %v825, %v636
      %v841 = vmul.f32 %v827, %v637
      %v842 = vmul.f32 %v829, %v638
      %v843 = vmul.f32 %v831, %v639
      %v844 = vmul.f32 %v833, %v640
      %v845 = vmul.f32 %v835, %v641
      %v846 = vmul.f32 %v837, %v642
      %v847 = vmul.f32 %v839, %v643
      %v848 = vld [vmem:[#allocation4] sm:$0xff]
      %v849 = vld [vmem:[#allocation4 + $0x8] sm:$0xff]
      %v850 = vld [vmem:[#allocation4 + $0x10] sm:$0xff]
      %v851 = vld [vmem:[#allocation4 + $0x18] sm:$0xff]
      %v852 = vld [vmem:[#allocation4 + $0x20] sm:$0xff]
      %v853 = vld [vmem:[#allocation4 + $0x28] sm:$0xff]
      %v854 = vld [vmem:[#allocation4 + $0x30] sm:$0xff]
      %v855 = vld [vmem:[#allocation4 + $0x38] sm:$0xff]
      %v856 = vmul.f32 %v761, %v848
      %v857 = vmul.f32 %v763, %v849
      %v858 = vmul.f32 %v765, %v850
      %v859 = vmul.f32 %v767, %v851
      %v860 = vmul.f32 %v769, %v852
      %v861 = vmul.f32 %v771, %v853
      %v862 = vmul.f32 %v773, %v854
      %v863 = vmul.f32 %v775, %v855
      %864 = vadd.xlane.f32.xlu0 %v840
      %v865 = vpop.xlane.xlu0 %864
      %866 = vadd.xlane.f32.xlu0 %v841
      %v867 = vpop.xlane.xlu0 %866
      %868 = vadd.xlane.f32.xlu0 %v842
      %v869 = vpop.xlane.xlu0 %868
      %870 = vadd.xlane.f32.xlu0 %v843
      %v871 = vpop.xlane.xlu0 %870
      %872 = vadd.xlane.f32.xlu0 %v844
      %v873 = vpop.xlane.xlu0 %872
      %874 = vadd.xlane.f32.xlu0 %v845
      %v875 = vpop.xlane.xlu0 %874
      %876 = vadd.xlane.f32.xlu0 %v846
      %v877 = vpop.xlane.xlu0 %876
      %878 = vadd.xlane.f32.xlu0 %v847
      %v879 = vpop.xlane.xlu0 %878
      %v880 = vadd.f32 %v856, %v865
      %v881 = vadd.f32 %v857, %v867
      %v882 = vadd.f32 %v858, %v869
      %v883 = vadd.f32 %v859, %v871
      %v884 = vadd.f32 %v860, %v873
      %v885 = vadd.f32 %v861, %v875
      %v886 = vadd.f32 %v862, %v877
      %v887 = vadd.f32 %v863, %v879
      %vm888 = vcmask 7168
      %889 = vst.msk [vmem:[#allocation4] sm:$0xff] %vm888, %v880
      %890 = vst.msk [vmem:[#allocation4 + $0x8] sm:$0xff] %vm888, %v881
      %891 = vst.msk [vmem:[#allocation4 + $0x10] sm:$0xff] %vm888, %v882
      %892 = vst.msk [vmem:[#allocation4 + $0x18] sm:$0xff] %vm888, %v883
      %893 = vst.msk [vmem:[#allocation4 + $0x20] sm:$0xff] %vm888, %v884
      %894 = vst.msk [vmem:[#allocation4 + $0x28] sm:$0xff] %vm888, %v885
      %895 = vst.msk [vmem:[#allocation4 + $0x30] sm:$0xff] %vm888, %v886
      %896 = vst.msk [vmem:[#allocation4 + $0x38] sm:$0xff] %vm888, %v887
      %v897 = vld [vmem:[#allocation5] sm:$0xff]
      %v898 = vld [vmem:[#allocation5 + $0x8] sm:$0xff]
      %v899 = vld [vmem:[#allocation5 + $0x10] sm:$0xff]
      %v900 = vld [vmem:[#allocation5 + $0x18] sm:$0xff]
      %v901 = vld [vmem:[#allocation5 + $0x20] sm:$0xff]
      %v902 = vld [vmem:[#allocation5 + $0x28] sm:$0xff]
      %v903 = vld [vmem:[#allocation5 + $0x30] sm:$0xff]
      %v904 = vld [vmem:[#allocation5 + $0x38] sm:$0xff]
      %906 = vset.pattern.permute.xlu0 0
      %907 = vperm.xlu0 %906, %v761
      %v908 = vpop.permute.xlu0 %907
      %911 = vset.pattern.permute.xlu0 0
      %912 = vperm.xlu0 %911, %v763
      %v913 = vpop.permute.xlu0 %912
      %916 = vset.pattern.permute.xlu0 0
      %917 = vperm.xlu0 %916, %v765
      %v918 = vpop.permute.xlu0 %917
      %921 = vset.pattern.permute.xlu0 0
      %922 = vperm.xlu0 %921, %v767
      %v923 = vpop.permute.xlu0 %922
      %926 = vset.pattern.permute.xlu0 0
      %927 = vperm.xlu0 %926, %v769
      %v928 = vpop.permute.xlu0 %927
      %931 = vset.pattern.permute.xlu0 0
      %932 = vperm.xlu0 %931, %v771
      %v933 = vpop.permute.xlu0 %932
      %936 = vset.pattern.permute.xlu0 0
      %937 = vperm.xlu0 %936, %v773
      %v938 = vpop.permute.xlu0 %937
      %941 = vset.pattern.permute.xlu0 0
      %942 = vperm.xlu0 %941, %v775
      %v943 = vpop.permute.xlu0 %942
      %v945 = vmul.f32 %v908, %v897
      %v946 = vmul.f32 %v913, %v898
      %v947 = vmul.f32 %v918, %v899
      %v948 = vmul.f32 %v923, %v900
      %v949 = vmul.f32 %v928, %v901
      %v950 = vmul.f32 %v933, %v902
      %v951 = vmul.f32 %v938, %v903
      %v952 = vmul.f32 %v943, %v904
      %v953 = vpack.c.bf16 %v841, %v840
      %v954 = vpack.c.bf16 %v843, %v842
      %v955 = vpack.c.bf16 %v845, %v844
      %v956 = vpack.c.bf16 %v847, %v846
      %957 = vmatprep.subr.bf16.mxu0 0
      %958 = vmatpush1.bf16.msra.mxu0 %v577
      %959 = vmatprep.subr.bf16.mxu0 0
      %960 = vmatpush1.bf16.msra.mxu0 %v576
      %961 = vmatprep.subr.bf16.mxu0 0
      %962 = vmatpush1.bf16.msra.mxu0 %v575
      %963 = vmatprep.subr.bf16.mxu0 0
      %964 = vmatpush1.bf16.msra.mxu0 %v574
      %965 = vmatprep.subr.bf16.mxu0 0
      %966 = vmatpush1.bf16.msra.mxu0 %v573
      %967 = vmatprep.subr.bf16.mxu0 0
      %968 = vmatpush1.bf16.msra.mxu0 %v572
      %969 = vmatprep.subr.bf16.mxu0 0
      %970 = vmatpush1.bf16.msra.mxu0 %v571
      %971 = vmatprep.subr.bf16.mxu0 0
      %972 = vmatpush1.bf16.msra.mxu0 %v570
      %973 = vmatprep.subr.bf16.mxu0 0
      %974 = vmatpush2.bf16.msra.mxu0 0
      %975 = vmatprep.subr.bf16.mxu0 0
      %976 = vmatpush2.bf16.msra.mxu0 0
      %977 = vmatprep.subr.bf16.mxu0 0
      %978 = vmatpush2.bf16.msra.mxu0 0
      %979 = vmatprep.subr.bf16.mxu0 0
      %980 = vmatpush2.bf16.msra.mxu0 0
      %981 = vmatprep.subr.bf16.mxu0 0
      %982 = vmatpush2.bf16.msra.mxu0 0
      %983 = vmatprep.subr.bf16.mxu0 0
      %984 = vmatpush2.bf16.msra.mxu0 0
      %985 = vmatprep.subr.bf16.mxu0 0
      %986 = vmatpush2.bf16.msra.mxu0 0
      %987 = vmatprep.subr.bf16.mxu0 0
      %988 = vmatpush2.bf16.msra.mxu0 0
      %989 = vmatprep.mubr.bf16.mxu0 0
      %990 = vmatmul.mubr.bf16.gmra.mxu0 %v953
      %v991 = vpop.f32.mrf.mxu0
      %v992 = vadd.f32 0.0, %v991
      %v993 = vpop.f32.mrf.mxu0
      %v994 = vpop.f32.mrf.mxu0
      %v995 = vadd.f32 0.0, %v994
      %v996 = vpop.f32.mrf.mxu0
      %997 = vmatprep.mubr.bf16.mxu0 0
      %998 = vmatmul.mubr.bf16.gmra.mxu0 %v954
      %v999 = vpop.f32.mrf.mxu0
      %v1000 = vadd.f32 0.0, %v999
      %v1001 = vpop.f32.mrf.mxu0
      %v1002 = vpop.f32.mrf.mxu0
      %v1003 = vadd.f32 0.0, %v1002
      %v1004 = vpop.f32.mrf.mxu0
      %1005 = vmatprep.mubr.bf16.mxu0 0
      %1006 = vmatmul.mubr.bf16.gmra.mxu0 %v955
      %v1007 = vpop.f32.mrf.mxu0
      %v1008 = vadd.f32 0.0, %v1007
      %v1009 = vpop.f32.mrf.mxu0
      %v1010 = vpop.f32.mrf.mxu0
      %v1011 = vadd.f32 0.0, %v1010
      %v1012 = vpop.f32.mrf.mxu0
      %1013 = vmatprep.mubr.bf16.mxu0 0
      %1014 = vmatmul.mubr.bf16.gmra.mxu0 %v956
      %v1015 = vpop.f32.mrf.mxu0
      %v1016 = vadd.f32 0.0, %v1015
      %v1017 = vpop.f32.mrf.mxu0
      %v1018 = vpop.f32.mrf.mxu0
      %v1019 = vadd.f32 0.0, %v1018
      %v1020 = vpop.f32.mrf.mxu0
      %1021 = vdwg.mxu0
      %v1022 = vadd.f32 %v945, %v992
      %v1023 = vadd.f32 %v946, %v995
      %v1024 = vadd.f32 %v947, %v1000
      %v1025 = vadd.f32 %v948, %v1003
      %v1026 = vadd.f32 %v949, %v1008
      %v1027 = vadd.f32 %v950, %v1011
      %v1028 = vadd.f32 %v951, %v1016
      %v1029 = vadd.f32 %v952, %v1019
      %vm1030 = vcmask 31744
      %1031 = vst.msk [vmem:[#allocation5] sm:$0xff] %vm1030, %v1022
      %1032 = vst.msk [vmem:[#allocation5 + $0x8] sm:$0xff] %vm1030, %v1023
      %1033 = vst.msk [vmem:[#allocation5 + $0x10] sm:$0xff] %vm1030, %v1024
      %1034 = vst.msk [vmem:[#allocation5 + $0x18] sm:$0xff] %vm1030, %v1025
      %1035 = vst.msk [vmem:[#allocation5 + $0x20] sm:$0xff] %vm1030, %v1026
      %1036 = vst.msk [vmem:[#allocation5 + $0x28] sm:$0xff] %vm1030, %v1027
      %1037 = vst.msk [vmem:[#allocation5 + $0x30] sm:$0xff] %vm1030, %v1028
      %1038 = vst.msk [vmem:[#allocation5 + $0x38] sm:$0xff] %vm1030, %v1029
      %1039 = vst.msk [vmem:[#allocation3] sm:$0xff] %vm888, %v744
      %1040 = vst.msk [vmem:[#allocation3 + $0x8] sm:$0xff] %vm888, %v745
      %1041 = vst.msk [vmem:[#allocation3 + $0x10] sm:$0xff] %vm888, %v746
      %1042 = vst.msk [vmem:[#allocation3 + $0x18] sm:$0xff] %vm888, %v747
      %1043 = vst.msk [vmem:[#allocation3 + $0x20] sm:$0xff] %vm888, %v748
      %1044 = vst.msk [vmem:[#allocation3 + $0x28] sm:$0xff] %vm888, %v749
      %1045 = vst.msk [vmem:[#allocation3 + $0x30] sm:$0xff] %vm888, %v750
      %1046 = vst.msk [vmem:[#allocation3 + $0x38] sm:$0xff] %vm888, %v751
      %1047 = vset.pattern.permute.xlu0 1
      %1048 = vperm.xlu0 %1047, %v644
      %v1049 = vpop.permute.xlu0 %1048
      %1051 = vset.pattern.permute.xlu0 1
      %1052 = vperm.xlu0 %1051, %v645
      %v1053 = vpop.permute.xlu0 %1052
      %1055 = vset.pattern.permute.xlu0 1
      %1056 = vperm.xlu0 %1055, %v646
      %v1057 = vpop.permute.xlu0 %1056
      %1059 = vset.pattern.permute.xlu0 1
      %1060 = vperm.xlu0 %1059, %v647
      %v1061 = vpop.permute.xlu0 %1060
      %1063 = vset.pattern.permute.xlu0 1
      %1064 = vperm.xlu0 %1063, %v648
      %v1065 = vpop.permute.xlu0 %1064
      %1067 = vset.pattern.permute.xlu0 1
      %1068 = vperm.xlu0 %1067, %v649
      %v1069 = vpop.permute.xlu0 %1068
      %1071 = vset.pattern.permute.xlu0 1
      %1072 = vperm.xlu0 %1071, %v650
      %v1073 = vpop.permute.xlu0 %1072
      %1075 = vset.pattern.permute.xlu0 1
      %1076 = vperm.xlu0 %1075, %v651
      %v1077 = vpop.permute.xlu0 %1076
      %v1079 = vlaneseq
      %v1080 = vshrl.u32 %v1079, 7
      %v1081 = vsub.s32 1, %v1080
      %v1082 = vrot.slane %v621, %v1081
      %v1083 = vadd.f32 %v1049, %v1082
      %v1084 = vadd.f32 %v1053, %v1082
      %v1085 = vadd.f32 %v1057, %v1082
      %v1086 = vadd.f32 %v1061, %v1082
      %v1087 = vadd.f32 %v1065, %v1082
      %v1088 = vadd.f32 %v1069, %v1082
      %v1089 = vadd.f32 %v1073, %v1082
      %v1090 = vadd.f32 %v1077, %v1082
      %v1091 = vmul.f32 %v1083, 0.2
      %v1092 = vmul.f32 %v1084, 0.2
      %v1093 = vmul.f32 %v1085, 0.2
      %v1094 = vmul.f32 %v1086, 0.2
      %v1095 = vmul.f32 %v1087, 0.2
      %v1096 = vmul.f32 %v1088, 0.2
      %v1097 = vmul.f32 %v1089, 0.2
      %v1098 = vmul.f32 %v1090, 0.2
      %v1099 = vmax.f32 %v1083, %v1091
      %v1100 = vmax.f32 %v1084, %v1092
      %v1101 = vmax.f32 %v1085, %v1093
      %v1102 = vmax.f32 %v1086, %v1094
      %v1103 = vmax.f32 %v1087, %v1095
      %v1104 = vmax.f32 %v1088, %v1096
      %v1105 = vmax.f32 %v1089, %v1097
      %v1106 = vmax.f32 %v1090, %v1098
      %v1107 = vld [vmem:[#allocation3] sm:$0xff]
      %v1108 = vld [vmem:[#allocation3 + $0x8] sm:$0xff]
      %v1109 = vld [vmem:[#allocation3 + $0x10] sm:$0xff]
      %v1110 = vld [vmem:[#allocation3 + $0x18] sm:$0xff]
      %v1111 = vld [vmem:[#allocation3 + $0x20] sm:$0xff]
      %v1112 = vld [vmem:[#allocation3 + $0x28] sm:$0xff]
      %v1113 = vld [vmem:[#allocation3 + $0x30] sm:$0xff]
      %v1114 = vld [vmem:[#allocation3 + $0x38] sm:$0xff]
      %1115 = vmax.xlane.f32.xlu0 %v1099
      %v1116 = vpop.xlane.xlu0 %1115
      %1117 = vmax.xlane.f32.xlu0 %v1100
      %v1118 = vpop.xlane.xlu0 %1117
      %1119 = vmax.xlane.f32.xlu0 %v1101
      %v1120 = vpop.xlane.xlu0 %1119
      %1121 = vmax.xlane.f32.xlu0 %v1102
      %v1122 = vpop.xlane.xlu0 %1121
      %1123 = vmax.xlane.f32.xlu0 %v1103
      %v1124 = vpop.xlane.xlu0 %1123
      %1125 = vmax.xlane.f32.xlu0 %v1104
      %v1126 = vpop.xlane.xlu0 %1125
      %1127 = vmax.xlane.f32.xlu0 %v1105
      %v1128 = vpop.xlane.xlu0 %1127
      %1129 = vmax.xlane.f32.xlu0 %v1106
      %v1130 = vpop.xlane.xlu0 %1129
      %v1131 = vmax.f32 %v1107, %v1116
      %v1132 = vmax.f32 %v1108, %v1118
      %v1133 = vmax.f32 %v1109, %v1120
      %v1134 = vmax.f32 %v1110, %v1122
      %v1135 = vmax.f32 %v1111, %v1124
      %v1136 = vmax.f32 %v1112, %v1126
      %v1137 = vmax.f32 %v1113, %v1128
      %v1138 = vmax.f32 %v1114, %v1130
      %v1139 = vsub.f32 %v1107, %v1131
      %v1140 = vsub.f32 %v1108, %v1132
      %v1141 = vsub.f32 %v1109, %v1133
      %v1142 = vsub.f32 %v1110, %v1134
      %v1143 = vsub.f32 %v1111, %v1135
      %v1144 = vsub.f32 %v1112, %v1136
      %v1145 = vsub.f32 %v1113, %v1137
      %v1146 = vsub.f32 %v1114, %v1138
      %v1147 = vmul.f32 %v1139, 1.442695
      %v1148 = vpow.pop %v1147
      %v1149 = vmul.f32 %v1140, 1.442695
      %v1150 = vpow.pop %v1149
      %v1151 = vmul.f32 %v1141, 1.442695
      %v1152 = vpow.pop %v1151
      %v1153 = vmul.f32 %v1142, 1.442695
      %v1154 = vpow.pop %v1153
      %v1155 = vmul.f32 %v1143, 1.442695
      %v1156 = vpow.pop %v1155
      %v1157 = vmul.f32 %v1144, 1.442695
      %v1158 = vpow.pop %v1157
      %v1159 = vmul.f32 %v1145, 1.442695
      %v1160 = vpow.pop %v1159
      %v1161 = vmul.f32 %v1146, 1.442695
      %v1162 = vpow.pop %v1161
      %1164 = vset.pattern.permute.xlu0 1
      %1165 = vperm.xlu0 %1164, %v1131
      %v1166 = vpop.permute.xlu0 %1165
      %1169 = vset.pattern.permute.xlu0 1
      %1170 = vperm.xlu0 %1169, %v1132
      %v1171 = vpop.permute.xlu0 %1170
      %1174 = vset.pattern.permute.xlu0 1
      %1175 = vperm.xlu0 %1174, %v1133
      %v1176 = vpop.permute.xlu0 %1175
      %1179 = vset.pattern.permute.xlu0 1
      %1180 = vperm.xlu0 %1179, %v1134
      %v1181 = vpop.permute.xlu0 %1180
      %1184 = vset.pattern.permute.xlu0 1
      %1185 = vperm.xlu0 %1184, %v1135
      %v1186 = vpop.permute.xlu0 %1185
      %1189 = vset.pattern.permute.xlu0 1
      %1190 = vperm.xlu0 %1189, %v1136
      %v1191 = vpop.permute.xlu0 %1190
      %1194 = vset.pattern.permute.xlu0 1
      %1195 = vperm.xlu0 %1194, %v1137
      %v1196 = vpop.permute.xlu0 %1195
      %1199 = vset.pattern.permute.xlu0 1
      %1200 = vperm.xlu0 %1199, %v1138
      %v1201 = vpop.permute.xlu0 %1200
      %v1203 = vsub.f32 %v1099, %v1166
      %v1204 = vsub.f32 %v1100, %v1171
      %v1205 = vsub.f32 %v1101, %v1176
      %v1206 = vsub.f32 %v1102, %v1181
      %v1207 = vsub.f32 %v1103, %v1186
      %v1208 = vsub.f32 %v1104, %v1191
      %v1209 = vsub.f32 %v1105, %v1196
      %v1210 = vsub.f32 %v1106, %v1201
      %v1211 = vmul.f32 %v1203, 1.442695
      %v1212 = vpow.pop %v1211
      %v1213 = vmul.f32 %v1204, 1.442695
      %v1214 = vpow.pop %v1213
      %v1215 = vmul.f32 %v1205, 1.442695
      %v1216 = vpow.pop %v1215
      %v1217 = vmul.f32 %v1206, 1.442695
      %v1218 = vpow.pop %v1217
      %v1219 = vmul.f32 %v1207, 1.442695
      %v1220 = vpow.pop %v1219
      %v1221 = vmul.f32 %v1208, 1.442695
      %v1222 = vpow.pop %v1221
      %v1223 = vmul.f32 %v1209, 1.442695
      %v1224 = vpow.pop %v1223
      %v1225 = vmul.f32 %v1210, 1.442695
      %v1226 = vpow.pop %v1225
      %v1227 = vmul.f32 %v1212, %v636
      %v1228 = vmul.f32 %v1214, %v637
      %v1229 = vmul.f32 %v1216, %v638
      %v1230 = vmul.f32 %v1218, %v639
      %v1231 = vmul.f32 %v1220, %v640
      %v1232 = vmul.f32 %v1222, %v641
      %v1233 = vmul.f32 %v1224, %v642
      %v1234 = vmul.f32 %v1226, %v643
      %v1235 = vld [vmem:[#allocation4] sm:$0xff]
      %v1236 = vld [vmem:[#allocation4 + $0x8] sm:$0xff]
      %v1237 = vld [vmem:[#allocation4 + $0x10] sm:$0xff]
      %v1238 = vld [vmem:[#allocation4 + $0x18] sm:$0xff]
      %v1239 = vld [vmem:[#allocation4 + $0x20] sm:$0xff]
      %v1240 = vld [vmem:[#allocation4 + $0x28] sm:$0xff]
      %v1241 = vld [vmem:[#allocation4 + $0x30] sm:$0xff]
      %v1242 = vld [vmem:[#allocation4 + $0x38] sm:$0xff]
      %v1243 = vmul.f32 %v1148, %v1235
      %v1244 = vmul.f32 %v1150, %v1236
      %v1245 = vmul.f32 %v1152, %v1237
      %v1246 = vmul.f32 %v1154, %v1238
      %v1247 = vmul.f32 %v1156, %v1239
      %v1248 = vmul.f32 %v1158, %v1240
      %v1249 = vmul.f32 %v1160, %v1241
      %v1250 = vmul.f32 %v1162, %v1242
      %1251 = vadd.xlane.f32.xlu0 %v1227
      %v1252 = vpop.xlane.xlu0 %1251
      %1253 = vadd.xlane.f32.xlu0 %v1228
      %v1254 = vpop.xlane.xlu0 %1253
      %1255 = vadd.xlane.f32.xlu0 %v1229
      %v1256 = vpop.xlane.xlu0 %1255
      %1257 = vadd.xlane.f32.xlu0 %v1230
      %v1258 = vpop.xlane.xlu0 %1257
      %1259 = vadd.xlane.f32.xlu0 %v1231
      %v1260 = vpop.xlane.xlu0 %1259
      %1261 = vadd.xlane.f32.xlu0 %v1232
      %v1262 = vpop.xlane.xlu0 %1261
      %1263 = vadd.xlane.f32.xlu0 %v1233
      %v1264 = vpop.xlane.xlu0 %1263
      %1265 = vadd.xlane.f32.xlu0 %v1234
      %v1266 = vpop.xlane.xlu0 %1265
      %v1267 = vadd.f32 %v1243, %v1252
      %v1268 = vadd.f32 %v1244, %v1254
      %v1269 = vadd.f32 %v1245, %v1256
      %v1270 = vadd.f32 %v1246, %v1258
      %v1271 = vadd.f32 %v1247, %v1260
      %v1272 = vadd.f32 %v1248, %v1262
      %v1273 = vadd.f32 %v1249, %v1264
      %v1274 = vadd.f32 %v1250, %v1266
      %vm1275 = vcmask 15368
      %1276 = vst.msk [vmem:[#allocation4] sm:$0xff] %vm1275, %v1267
      %1277 = vst.msk [vmem:[#allocation4 + $0x8] sm:$0xff] %vm1275, %v1268
      %1278 = vst.msk [vmem:[#allocation4 + $0x10] sm:$0xff] %vm1275, %v1269
      %1279 = vst.msk [vmem:[#allocation4 + $0x18] sm:$0xff] %vm1275, %v1270
      %1280 = vst.msk [vmem:[#allocation4 + $0x20] sm:$0xff] %vm1275, %v1271
      %1281 = vst.msk [vmem:[#allocation4 + $0x28] sm:$0xff] %vm1275, %v1272
      %1282 = vst.msk [vmem:[#allocation4 + $0x30] sm:$0xff] %vm1275, %v1273
      %1283 = vst.msk [vmem:[#allocation4 + $0x38] sm:$0xff] %vm1275, %v1274
      %v1284 = vld [vmem:[#allocation5] sm:$0xff]
      %v1285 = vld [vmem:[#allocation5 + $0x8] sm:$0xff]
      %v1286 = vld [vmem:[#allocation5 + $0x10] sm:$0xff]
      %v1287 = vld [vmem:[#allocation5 + $0x18] sm:$0xff]
      %v1288 = vld [vmem:[#allocation5 + $0x20] sm:$0xff]
      %v1289 = vld [vmem:[#allocation5 + $0x28] sm:$0xff]
      %v1290 = vld [vmem:[#allocation5 + $0x30] sm:$0xff]
      %v1291 = vld [vmem:[#allocation5 + $0x38] sm:$0xff]
      %1293 = vset.pattern.permute.xlu0 1
      %1294 = vperm.xlu0 %1293, %v1148
      %v1295 = vpop.permute.xlu0 %1294
      %1298 = vset.pattern.permute.xlu0 1
      %1299 = vperm.xlu0 %1298, %v1150
      %v1300 = vpop.permute.xlu0 %1299
      %1303 = vset.pattern.permute.xlu0 1
      %1304 = vperm.xlu0 %1303, %v1152
      %v1305 = vpop.permute.xlu0 %1304
      %1308 = vset.pattern.permute.xlu0 1
      %1309 = vperm.xlu0 %1308, %v1154
      %v1310 = vpop.permute.xlu0 %1309
      %1313 = vset.pattern.permute.xlu0 1
      %1314 = vperm.xlu0 %1313, %v1156
      %v1315 = vpop.permute.xlu0 %1314
      %1318 = vset.pattern.permute.xlu0 1
      %1319 = vperm.xlu0 %1318, %v1158
      %v1320 = vpop.permute.xlu0 %1319
      %1323 = vset.pattern.permute.xlu0 1
      %1324 = vperm.xlu0 %1323, %v1160
      %v1325 = vpop.permute.xlu0 %1324
      %1328 = vset.pattern.permute.xlu0 1
      %1329 = vperm.xlu0 %1328, %v1162
      %v1330 = vpop.permute.xlu0 %1329
      %v1332 = vmul.f32 %v1295, %v1284
      %v1333 = vmul.f32 %v1300, %v1285
      %v1334 = vmul.f32 %v1305, %v1286
      %v1335 = vmul.f32 %v1310, %v1287
      %v1336 = vmul.f32 %v1315, %v1288
      %v1337 = vmul.f32 %v1320, %v1289
      %v1338 = vmul.f32 %v1325, %v1290
      %v1339 = vmul.f32 %v1330, %v1291
      %v1340 = vpack.c.bf16 %v1228, %v1227
      %v1341 = vpack.c.bf16 %v1230, %v1229
      %v1342 = vpack.c.bf16 %v1232, %v1231
      %v1343 = vpack.c.bf16 %v1234, %v1233
      %1352 = vrot.lane.b32.xlu0 %v570, 124
      %v1353 = vpop.permute.xlu0 %1352
      %1354 = vrot.lane.b32.xlu0 %v571, 124
      %v1355 = vpop.permute.xlu0 %1354
      %1356 = vrot.lane.b32.xlu0 %v572, 124
      %v1357 = vpop.permute.xlu0 %1356
      %1358 = vrot.lane.b32.xlu0 %v573, 124
      %v1359 = vpop.permute.xlu0 %1358
      %1360 = vrot.lane.b32.xlu0 %v574, 124
      %v1361 = vpop.permute.xlu0 %1360
      %1362 = vrot.lane.b32.xlu0 %v575, 124
      %v1363 = vpop.permute.xlu0 %1362
      %1364 = vrot.lane.b32.xlu0 %v576, 124
      %v1365 = vpop.permute.xlu0 %1364
      %1366 = vrot.lane.b32.xlu0 %v577, 124
      %v1367 = vpop.permute.xlu0 %1366
      %1376 = vmatprep.subr.bf16.mxu0 0
      %1377 = vmatpush1.bf16.msra.mxu0 %v1367
      %1378 = vmatprep.subr.bf16.mxu0 0
      %1379 = vmatpush1.bf16.msra.mxu0 %v1365
      %1380 = vmatprep.subr.bf16.mxu0 0
      %1381 = vmatpush1.bf16.msra.mxu0 %v1363
      %1382 = vmatprep.subr.bf16.mxu0 0
      %1383 = vmatpush1.bf16.msra.mxu0 %v1361
      %1384 = vmatprep.subr.bf16.mxu0 0
      %1385 = vmatpush1.bf16.msra.mxu0 %v1359
      %1386 = vmatprep.subr.bf16.mxu0 0
      %1387 = vmatpush1.bf16.msra.mxu0 %v1357
      %1388 = vmatprep.subr.bf16.mxu0 0
      %1389 = vmatpush1.bf16.msra.mxu0 %v1355
      %1390 = vmatprep.subr.bf16.mxu0 0
      %1391 = vmatpush1.bf16.msra.mxu0 %v1353
      %1392 = vmatprep.subr.bf16.mxu0 0
      %1393 = vmatpush2.bf16.msra.mxu0 0
      %1394 = vmatprep.subr.bf16.mxu0 0
      %1395 = vmatpush2.bf16.msra.mxu0 0
      %1396 = vmatprep.subr.bf16.mxu0 0
      %1397 = vmatpush2.bf16.msra.mxu0 0
      %1398 = vmatprep.subr.bf16.mxu0 0
      %1399 = vmatpush2.bf16.msra.mxu0 0
      %1400 = vmatprep.subr.bf16.mxu0 0
      %1401 = vmatpush2.bf16.msra.mxu0 0
      %1402 = vmatprep.subr.bf16.mxu0 0
      %1403 = vmatpush2.bf16.msra.mxu0 0
      %1404 = vmatprep.subr.bf16.mxu0 0
      %1405 = vmatpush2.bf16.msra.mxu0 0
      %1406 = vmatprep.subr.bf16.mxu0 0
      %1407 = vmatpush2.bf16.msra.mxu0 0
      %1408 = vmatprep.mubr.bf16.mxu0 0
      %1409 = vmatmul.mubr.bf16.gmra.mxu0 %v1340
      %v1410 = vpop.f32.mrf.mxu0
      %v1411 = vadd.f32 0.0, %v1410
      %v1412 = vpop.f32.mrf.mxu0
      %v1413 = vpop.f32.mrf.mxu0
      %v1414 = vadd.f32 0.0, %v1413
      %v1415 = vpop.f32.mrf.mxu0
      %1416 = vmatprep.mubr.bf16.mxu0 0
      %1417 = vmatmul.mubr.bf16.gmra.mxu0 %v1341
      %v1418 = vpop.f32.mrf.mxu0
      %v1419 = vadd.f32 0.0, %v1418
      %v1420 = vpop.f32.mrf.mxu0
      %v1421 = vpop.f32.mrf.mxu0
      %v1422 = vadd.f32 0.0, %v1421
      %v1423 = vpop.f32.mrf.mxu0
      %1424 = vmatprep.mubr.bf16.mxu0 0
      %1425 = vmatmul.mubr.bf16.gmra.mxu0 %v1342
      %v1426 = vpop.f32.mrf.mxu0
      %v1427 = vadd.f32 0.0, %v1426
      %v1428 = vpop.f32.mrf.mxu0
      %v1429 = vpop.f32.mrf.mxu0
      %v1430 = vadd.f32 0.0, %v1429
      %v1431 = vpop.f32.mrf.mxu0
      %1432 = vmatprep.mubr.bf16.mxu0 0
      %1433 = vmatmul.mubr.bf16.gmra.mxu0 %v1343
      %v1434 = vpop.f32.mrf.mxu0
      %v1435 = vadd.f32 0.0, %v1434
      %v1436 = vpop.f32.mrf.mxu0
      %v1437 = vpop.f32.mrf.mxu0
      %v1438 = vadd.f32 0.0, %v1437
      %v1439 = vpop.f32.mrf.mxu0
      %1440 = vdwg.mxu0
      %1449 = vrot.lane.b32.xlu0 %v1411, 4
      %v1450 = vpop.permute.xlu0 %1449
      %1451 = vrot.lane.b32.xlu0 %v1414, 4
      %v1452 = vpop.permute.xlu0 %1451
      %1453 = vrot.lane.b32.xlu0 %v1419, 4
      %v1454 = vpop.permute.xlu0 %1453
      %1455 = vrot.lane.b32.xlu0 %v1422, 4
      %v1456 = vpop.permute.xlu0 %1455
      %1457 = vrot.lane.b32.xlu0 %v1427, 4
      %v1458 = vpop.permute.xlu0 %1457
      %1459 = vrot.lane.b32.xlu0 %v1430, 4
      %v1460 = vpop.permute.xlu0 %1459
      %1461 = vrot.lane.b32.xlu0 %v1435, 4
      %v1462 = vpop.permute.xlu0 %1461
      %1463 = vrot.lane.b32.xlu0 %v1438, 4
      %v1464 = vpop.permute.xlu0 %1463
      %v1473 = vadd.f32 %v1332, %v1450
      %v1474 = vadd.f32 %v1333, %v1452
      %v1475 = vadd.f32 %v1334, %v1454
      %v1476 = vadd.f32 %v1335, %v1456
      %v1477 = vadd.f32 %v1336, %v1458
      %v1478 = vadd.f32 %v1337, %v1460
      %v1479 = vadd.f32 %v1338, %v1462
      %v1480 = vadd.f32 %v1339, %v1464
      %vm1481 = vcmask 64544
      %1482 = vst.msk [vmem:[#allocation5] sm:$0xff] %vm1481, %v1473
      %1483 = vst.msk [vmem:[#allocation5 + $0x8] sm:$0xff] %vm1481, %v1474
      %1484 = vst.msk [vmem:[#allocation5 + $0x10] sm:$0xff] %vm1481, %v1475
      %1485 = vst.msk [vmem:[#allocation5 + $0x18] sm:$0xff] %vm1481, %v1476
      %1486 = vst.msk [vmem:[#allocation5 + $0x20] sm:$0xff] %vm1481, %v1477
      %1487 = vst.msk [vmem:[#allocation5 + $0x28] sm:$0xff] %vm1481, %v1478
      %1488 = vst.msk [vmem:[#allocation5 + $0x30] sm:$0xff] %vm1481, %v1479
      %1489 = vst.msk [vmem:[#allocation5 + $0x38] sm:$0xff] %vm1481, %v1480
      %1490 = vst.msk [vmem:[#allocation3] sm:$0xff] %vm1275, %v1131
      %1491 = vst.msk [vmem:[#allocation3 + $0x8] sm:$0xff] %vm1275, %v1132
      %1492 = vst.msk [vmem:[#allocation3 + $0x10] sm:$0xff] %vm1275, %v1133
      %1493 = vst.msk [vmem:[#allocation3 + $0x18] sm:$0xff] %vm1275, %v1134
      %1494 = vst.msk [vmem:[#allocation3 + $0x20] sm:$0xff] %vm1275, %v1135
      %1495 = vst.msk [vmem:[#allocation3 + $0x28] sm:$0xff] %vm1275, %v1136
      %1496 = vst.msk [vmem:[#allocation3 + $0x30] sm:$0xff] %vm1275, %v1137
      %1497 = vst.msk [vmem:[#allocation3 + $0x38] sm:$0xff] %vm1275, %v1138
    $region113: #{route_select_forward.1} parent=1 // pred_fallthru
      _
    // Predicated region
    $region114: #{route_select_forward.1} parent=1 // pred_check
      %p1498 = pneg %p234
    $region115: #{route_select_forward.1} parent=1 // pred_check_branch
      %1500 = sbr.rel (%p1498) target = $region117
    $region116: #{route_select_forward.1} parent=1 // pred_region
      %v1501 = vld [vmem:[#allocation4] sm:$0xff]
      %v1502 = vld [vmem:[#allocation4 + $0x8] sm:$0xff]
      %v1503 = vld [vmem:[#allocation4 + $0x10] sm:$0xff]
      %v1504 = vld [vmem:[#allocation4 + $0x18] sm:$0xff]
      %v1505 = vld [vmem:[#allocation4 + $0x20] sm:$0xff]
      %v1506 = vld [vmem:[#allocation4 + $0x28] sm:$0xff]
      %v1507 = vld [vmem:[#allocation4 + $0x30] sm:$0xff]
      %v1508 = vld [vmem:[#allocation4 + $0x38] sm:$0xff]
      %v1509 = vmax.f32 %v1501, 1e-30
      %v1510 = vmax.f32 %v1502, 1e-30
      %v1511 = vmax.f32 %v1503, 1e-30
      %v1512 = vmax.f32 %v1504, 1e-30
      %v1513 = vmax.f32 %v1505, 1e-30
      %v1514 = vmax.f32 %v1506, 1e-30
      %v1515 = vmax.f32 %v1507, 1e-30
      %v1516 = vmax.f32 %v1508, 1e-30
      %v1517 = vrcp.pop %v1509
      %v1518 = vrcp.pop %v1510
      %v1519 = vrcp.pop %v1511
      %v1520 = vrcp.pop %v1512
      %v1521 = vrcp.pop %v1513
      %v1522 = vrcp.pop %v1514
      %v1523 = vrcp.pop %v1515
      %v1524 = vrcp.pop %v1516
      %v1525 = vld [vmem:[%s9] sm:$0x1]
      %v1526 = vld [vmem:[#allocation5] sm:$0xff]
      %v1527 = vld [vmem:[#allocation5 + $0x8] sm:$0xff]
      %v1528 = vld [vmem:[#allocation5 + $0x10] sm:$0xff]
      %v1529 = vld [vmem:[#allocation5 + $0x18] sm:$0xff]
      %v1530 = vld [vmem:[#allocation5 + $0x20] sm:$0xff]
      %v1531 = vld [vmem:[#allocation5 + $0x28] sm:$0xff]
      %v1532 = vld [vmem:[#allocation5 + $0x30] sm:$0xff]
      %v1533 = vld [vmem:[#allocation5 + $0x38] sm:$0xff]
      %1535 = vset.pattern.permute.xlu0 0
      %1536 = vperm.xlu0 %1535, %v1517
      %v1537 = vpop.permute.xlu0 %1536
      %1540 = vset.pattern.permute.xlu0 0
      %1541 = vperm.xlu0 %1540, %v1518
      %v1542 = vpop.permute.xlu0 %1541
      %1545 = vset.pattern.permute.xlu0 0
      %1546 = vperm.xlu0 %1545, %v1519
      %v1547 = vpop.permute.xlu0 %1546
      %1550 = vset.pattern.permute.xlu0 0
      %1551 = vperm.xlu0 %1550, %v1520
      %v1552 = vpop.permute.xlu0 %1551
      %1555 = vset.pattern.permute.xlu0 0
      %1556 = vperm.xlu0 %1555, %v1521
      %v1557 = vpop.permute.xlu0 %1556
      %1560 = vset.pattern.permute.xlu0 0
      %1561 = vperm.xlu0 %1560, %v1522
      %v1562 = vpop.permute.xlu0 %1561
      %1565 = vset.pattern.permute.xlu0 0
      %1566 = vperm.xlu0 %1565, %v1523
      %v1567 = vpop.permute.xlu0 %1566
      %1570 = vset.pattern.permute.xlu0 0
      %1571 = vperm.xlu0 %1570, %v1524
      %v1572 = vpop.permute.xlu0 %1571
      %v1574 = vmul.f32 %v1526, %v1537
      %v1575 = vmul.f32 %v1527, %v1542
      %v1576 = vmul.f32 %v1528, %v1547
      %v1577 = vmul.f32 %v1529, %v1552
      %v1578 = vmul.f32 %v1530, %v1557
      %v1579 = vmul.f32 %v1531, %v1562
      %v1580 = vmul.f32 %v1532, %v1567
      %v1581 = vmul.f32 %v1533, %v1572
      %v1583 = vlaneseq
      %v1584 = vshrl.u32 %v1583, 7
      %v1585 = vsub.s32 0, %v1584
      %v1586 = vrot.slane %v1525, %v1585
      %v1588 = vadd.f32 %v1574, %v1586
      %v1589 = vadd.f32 %v1575, %v1586
      %v1590 = vadd.f32 %v1576, %v1586
      %v1591 = vadd.f32 %v1577, %v1586
      %v1592 = vadd.f32 %v1578, %v1586
      %v1593 = vadd.f32 %v1579, %v1586
      %v1594 = vadd.f32 %v1580, %v1586
      %v1595 = vadd.f32 %v1581, %v1586
      %vm1596 = vcmask 31744
      %1597 = vst.msk [vmem:[#allocation5] sm:$0xff] %vm1596, %v1588
      %1598 = vst.msk [vmem:[#allocation5 + $0x8] sm:$0xff] %vm1596, %v1589
      %1599 = vst.msk [vmem:[#allocation5 + $0x10] sm:$0xff] %vm1596, %v1590
      %1600 = vst.msk [vmem:[#allocation5 + $0x18] sm:$0xff] %vm1596, %v1591
      %1601 = vst.msk [vmem:[#allocation5 + $0x20] sm:$0xff] %vm1596, %v1592
      %1602 = vst.msk [vmem:[#allocation5 + $0x28] sm:$0xff] %vm1596, %v1593
      %1603 = vst.msk [vmem:[#allocation5 + $0x30] sm:$0xff] %vm1596, %v1594
      %1604 = vst.msk [vmem:[#allocation5 + $0x38] sm:$0xff] %vm1596, %v1595
      %v1605 = vld [vmem:[#allocation5] sm:$0xff]
      %v1606 = vld [vmem:[#allocation5 + $0x8] sm:$0xff]
      %v1607 = vld [vmem:[#allocation5 + $0x10] sm:$0xff]
      %v1608 = vld [vmem:[#allocation5 + $0x18] sm:$0xff]
      %v1609 = vld [vmem:[#allocation5 + $0x20] sm:$0xff]
      %v1610 = vld [vmem:[#allocation5 + $0x28] sm:$0xff]
      %v1611 = vld [vmem:[#allocation5 + $0x30] sm:$0xff]
      %v1612 = vld [vmem:[#allocation5 + $0x38] sm:$0xff]
      %1613 = vset.pattern.permute.xlu0 1
      %1614 = vperm.xlu0 %1613, %v1517
      %v1615 = vpop.permute.xlu0 %1614
      %1617 = vset.pattern.permute.xlu0 1
      %1618 = vperm.xlu0 %1617, %v1518
      %v1619 = vpop.permute.xlu0 %1618
      %1621 = vset.pattern.permute.xlu0 1
      %1622 = vperm.xlu0 %1621, %v1519
      %v1623 = vpop.permute.xlu0 %1622
      %1625 = vset.pattern.permute.xlu0 1
      %1626 = vperm.xlu0 %1625, %v1520
      %v1627 = vpop.permute.xlu0 %1626
      %1629 = vset.pattern.permute.xlu0 1
      %1630 = vperm.xlu0 %1629, %v1521
      %v1631 = vpop.permute.xlu0 %1630
      %1633 = vset.pattern.permute.xlu0 1
      %1634 = vperm.xlu0 %1633, %v1522
      %v1635 = vpop.permute.xlu0 %1634
      %1637 = vset.pattern.permute.xlu0 1
      %1638 = vperm.xlu0 %1637, %v1523
      %v1639 = vpop.permute.xlu0 %1638
      %1641 = vset.pattern.permute.xlu0 1
      %1642 = vperm.xlu0 %1641, %v1524
      %v1643 = vpop.permute.xlu0 %1642
      %v1645 = vmul.f32 %v1605, %v1615
      %v1646 = vmul.f32 %v1606, %v1619
      %v1647 = vmul.f32 %v1607, %v1623
      %v1648 = vmul.f32 %v1608, %v1627
      %v1649 = vmul.f32 %v1609, %v1631
      %v1650 = vmul.f32 %v1610, %v1635
      %v1651 = vmul.f32 %v1611, %v1639
      %v1652 = vmul.f32 %v1612, %v1643
      %v1653 = vadd.f32 %v1645, %v1586
      %v1654 = vadd.f32 %v1646, %v1586
      %v1655 = vadd.f32 %v1647, %v1586
      %v1656 = vadd.f32 %v1648, %v1586
      %v1657 = vadd.f32 %v1649, %v1586
      %v1658 = vadd.f32 %v1650, %v1586
      %v1659 = vadd.f32 %v1651, %v1586
      %v1660 = vadd.f32 %v1652, %v1586
      %vm1661 = vcmask 64544
      %1662 = vst.msk [vmem:[#allocation5] sm:$0xff] %vm1661, %v1653
      %1663 = vst.msk [vmem:[#allocation5 + $0x8] sm:$0xff] %vm1661, %v1654
      %1664 = vst.msk [vmem:[#allocation5 + $0x10] sm:$0xff] %vm1661, %v1655
      %1665 = vst.msk [vmem:[#allocation5 + $0x18] sm:$0xff] %vm1661, %v1656
      %1666 = vst.msk [vmem:[#allocation5 + $0x20] sm:$0xff] %vm1661, %v1657
      %1667 = vst.msk [vmem:[#allocation5 + $0x28] sm:$0xff] %vm1661, %v1658
      %1668 = vst.msk [vmem:[#allocation5 + $0x30] sm:$0xff] %vm1661, %v1659
      %1669 = vst.msk [vmem:[#allocation5 + $0x38] sm:$0xff] %vm1661, %v1660
      %v1670 = vld [vmem:[#allocation5] ss:$8 sm:$0xf]
      %v1671 = vld [vmem:[#allocation5] ss:$8 sm:$0xf0]
      %v1672 = vor.u32 %v1670, %v1671
      %vm1673 = vcmask 64512
      %1674 = vst.msk [vmem:[#allocation6] sm:$0xff] %vm1673, %v1672
      %s1675 = scalar_lea.vmem [#allocation5], 1
      %v1676 = vld [vmem:[%s1675] ss:$8 sm:$0xf]
      %v1677 = vld [vmem:[%s1675] ss:$8 sm:$0xf0]
      %v1678 = vor.u32 %v1676, %v1677
      %1680 = vrot.lane.b32.xlu0 %v1678, 8
      %v1681 = vpop.permute.xlu0 %1680
      %vm1683 = vcmask 130112
      %1684 = vst.msk [vmem:[#allocation6] sm:$0xff] %vm1683, %v1681
      %s1685 = scalar_lea.vmem [#allocation5], 2
      %v1686 = vld [vmem:[%s1685] ss:$8 sm:$0xf]
      %v1687 = vld [vmem:[%s1685] ss:$8 sm:$0xf0]
      %v1688 = vor.u32 %v1686, %v1687
      %1690 = vrot.lane.b32.xlu0 %v1688, 16
      %v1691 = vpop.permute.xlu0 %1690
      %vm1693 = vcmask 195712
      %1694 = vst.msk [vmem:[#allocation6] sm:$0xff] %vm1693, %v1691
      %s1695 = scalar_lea.vmem [#allocation5], 3
      %v1696 = vld [vmem:[%s1695] ss:$8 sm:$0xf]
      %v1697 = vld [vmem:[%s1695] ss:$8 sm:$0xf0]
      %v1698 = vor.u32 %v1696, %v1697
      %1700 = vrot.lane.b32.xlu0 %v1698, 24
      %v1701 = vpop.permute.xlu0 %1700
      %vm1703 = vcmask 261312
      %1704 = vst.msk [vmem:[#allocation6] sm:$0xff] %vm1703, %v1701
      %s1705 = scalar_lea.vmem [#allocation5], 4
      %v1706 = vld [vmem:[%s1705] ss:$8 sm:$0xf]
      %v1707 = vld [vmem:[%s1705] ss:$8 sm:$0xf0]
      %v1708 = vor.u32 %v1706, %v1707
      %1710 = vrot.lane.b32.xlu0 %v1708, 32
      %v1711 = vpop.permute.xlu0 %1710
      %vm1713 = vcmask 326912
      %1714 = vst.msk [vmem:[#allocation6] sm:$0xff] %vm1713, %v1711
      %s1715 = scalar_lea.vmem [#allocation5], 5
      %v1716 = vld [vmem:[%s1715] ss:$8 sm:$0xf]
      %v1717 = vld [vmem:[%s1715] ss:$8 sm:$0xf0]
      %v1718 = vor.u32 %v1716, %v1717
      %1720 = vrot.lane.b32.xlu0 %v1718, 40
      %v1721 = vpop.permute.xlu0 %1720
      %vm1723 = vcmask 392512
      %1724 = vst.msk [vmem:[#allocation6] sm:$0xff] %vm1723, %v1721
      %s1725 = scalar_lea.vmem [#allocation5], 6
      %v1726 = vld [vmem:[%s1725] ss:$8 sm:$0xf]
      %v1727 = vld [vmem:[%s1725] ss:$8 sm:$0xf0]
      %v1728 = vor.u32 %v1726, %v1727
      %1730 = vrot.lane.b32.xlu0 %v1728, 48
      %v1731 = vpop.permute.xlu0 %1730
      %vm1733 = vcmask 458112
      %1734 = vst.msk [vmem:[#allocation6] sm:$0xff] %vm1733, %v1731
      %s1735 = scalar_lea.vmem [#allocation5], 7
      %v1736 = vld [vmem:[%s1735] ss:$8 sm:$0xf]
      %v1737 = vld [vmem:[%s1735] ss:$8 sm:$0xf0]
      %v1738 = vor.u32 %v1736, %v1737
      %1740 = vrot.lane.b32.xlu0 %v1738, 56
      %v1741 = vpop.permute.xlu0 %1740
      %vm1743 = vcmask 523712
      %1744 = vst.msk [vmem:[#allocation6] sm:$0xff] %vm1743, %v1741
      %v1745 = vld [vmem:[#allocation6] sm:$0xff]
      %v1746 = vpack.c.bf16 %v1745, %v1745
      %v1747 = vld [vmem:[%s10] sm:$0xff]
      %v1748 = vld [vmem:[%s10 + $0x8] sm:$0xff]
      %v1749 = vld [vmem:[%s10 + $0x10] sm:$0xff]
      %v1750 = vld [vmem:[%s10 + $0x18] sm:$0xff]
      %v1751 = vld [vmem:[%s10 + $0x20] sm:$0xff]
      %v1752 = vld [vmem:[%s10 + $0x28] sm:$0xff]
      %v1753 = vld [vmem:[%s10 + $0x30] sm:$0xff]
      %v1754 = vld [vmem:[%s10 + $0x38] sm:$0xff]
      %v1763 = vunpack.c.l.b16 %v1747
      %v1764 = vunpack.c.h.b16 %v1747
      %v1765 = vunpack.c.l.b16 %v1748
      %v1766 = vunpack.c.h.b16 %v1748
      %v1767 = vunpack.c.l.b16 %v1749
      %v1768 = vunpack.c.h.b16 %v1749
      %v1769 = vunpack.c.l.b16 %v1750
      %v1770 = vunpack.c.h.b16 %v1750
      %v1771 = vunpack.c.l.b16 %v1751
      %v1772 = vunpack.c.h.b16 %v1751
      %v1773 = vunpack.c.l.b16 %v1752
      %v1774 = vunpack.c.h.b16 %v1752
      %v1775 = vunpack.c.l.b16 %v1753
      %v1776 = vunpack.c.h.b16 %v1753
      %v1777 = vunpack.c.l.b16 %v1754
      %v1778 = vunpack.c.h.b16 %v1754
      %v1779 = vpack.c.b16 %v1765, %v1763
      %v1780 = vpack.c.b16 %v1766, %v1764
      %v1781 = vpack.c.b16 %v1769, %v1767
      %v1782 = vpack.c.b16 %v1770, %v1768
      %v1783 = vpack.c.b16 %v1773, %v1771
      %v1784 = vpack.c.b16 %v1774, %v1772
      %v1785 = vpack.c.b16 %v1777, %v1775
      %v1786 = vpack.c.b16 %v1778, %v1776
      %vm1795 = vcmask 523264
      %v1797 = vsel %vm1795, %v1746, 0
      %1799 = vmatprep.subr.bf16.mxu0 0
      %1800 = vmatpush1.bf16.msra.mxu0 0
      %1801 = vmatprep.subr.bf16.mxu0 0
      %1802 = vmatpush1.bf16.msra.mxu0 0
      %1803 = vmatprep.subr.bf16.mxu0 0
      %1804 = vmatpush1.bf16.msra.mxu0 0
      %1805 = vmatprep.subr.bf16.mxu0 0
      %1806 = vmatpush1.bf16.msra.mxu0 0
      %1807 = vmatprep.subr.bf16.mxu0 %v1786
      %1808 = vmatpush1.bf16.msra.mxu0 %v1785
      %1809 = vmatprep.subr.bf16.mxu0 %v1784
      %1810 = vmatpush1.bf16.msra.mxu0 %v1783
      %1811 = vmatprep.subr.bf16.mxu0 %v1782
      %1812 = vmatpush1.bf16.msra.mxu0 %v1781
      %1813 = vmatprep.subr.bf16.mxu0 %v1780
      %1814 = vmatpush1.bf16.msra.mxu0 %v1779
      %1815 = vmatprep.subr.bf16.mxu0 0
      %1816 = vmatpush2.bf16.msra.mxu0 0
      %1817 = vmatprep.subr.bf16.mxu0 0
      %1818 = vmatpush2.bf16.msra.mxu0 0
      %1819 = vmatprep.subr.bf16.mxu0 0
      %1820 = vmatpush2.bf16.msra.mxu0 0
      %1821 = vmatprep.subr.bf16.mxu0 0
      %1822 = vmatpush2.bf16.msra.mxu0 0
      %1823 = vmatprep.subr.bf16.mxu0 0
      %1824 = vmatpush2.bf16.msra.mxu0 0
      %1825 = vmatprep.subr.bf16.mxu0 0
      %1826 = vmatpush2.bf16.msra.mxu0 0
      %1827 = vmatprep.subr.bf16.mxu0 0
      %1828 = vmatpush2.bf16.msra.mxu0 0
      %1829 = vmatprep.subr.bf16.mxu0 0
      %1830 = vmatpush2.bf16.msra.mxu0 0
      %1831 = vmatprep.mubr.bf16.mxu0 0
      %1832 = vmatmul.mubr.bf16.gmra.mxu0 %v1797
      %v1833 = vpop.f32.mrf.mxu0
      %v1834 = vadd.f32 0.0, %v1833
      %v1835 = vpop.f32.mrf.mxu0
      %v1836 = vadd.f32 0.0, %v1835
      %v1837 = vpop.f32.mrf.mxu0
      %v1838 = vpop.f32.mrf.mxu0
      %1839 = vdwg.mxu0
      %v1840 = vld [vmem:[%s11] sm:$0x3]
      %v1842 = vlaneseq
      %v1843 = vshrl.u32 %v1842, 7
      %v1844 = vsub.s32 0, %v1843
      %v1845 = vrot.slane %v1840, %v1844
      %v1846 = vlaneseq
      %v1847 = vshrl.u32 %v1846, 7
      %v1848 = vsub.s32 1, %v1847
      %v1849 = vrot.slane %v1840, %v1848
      %v1852 = vadd.f32 %v1834, %v1845
      %v1853 = vadd.f32 %v1836, %v1849
      %v1854 = vmax.f32 %v1852, 0.0
      %v1855 = vmax.f32 %v1853, 0.0
      %v1856 = vpack.c.bf16 %v1854, %v1854
      %v1857 = vpack.c.bf16 %v1855, %v1855
      %v1858 = vld [vmem:[#allocation11] sm:$0xff]
      %v1859 = vld [vmem:[#allocation11 + $0x8] sm:$0xff]
      %v1860 = vld [vmem:[#allocation11 + $0x10] sm:$0xff]
      %v1861 = vld [vmem:[#allocation11 + $0x18] sm:$0xff]
      %v1862 = vld [vmem:[#allocation11 + $0x20] sm:$0xff]
      %v1863 = vld [vmem:[#allocation11 + $0x28] sm:$0xff]
      %v1864 = vld [vmem:[#allocation11 + $0x30] sm:$0xff]
      %v1865 = vld [vmem:[#allocation11 + $0x38] sm:$0xff]
      %v1866 = vld [vmem:[#allocation11 + $0x40] sm:$0xff]
      %v1867 = vld [vmem:[#allocation11 + $0x48] sm:$0xff]
      %v1868 = vld [vmem:[#allocation11 + $0x50] sm:$0xff]
      %v1869 = vld [vmem:[#allocation11 + $0x58] sm:$0xff]
      %v1870 = vld [vmem:[#allocation11 + $0x60] sm:$0xff]
      %v1871 = vld [vmem:[#allocation11 + $0x68] sm:$0xff]
      %v1872 = vld [vmem:[#allocation11 + $0x70] sm:$0xff]
      %v1873 = vld [vmem:[#allocation11 + $0x78] sm:$0xff]
      %v1874 = vld [vmem:[#allocation11 + $0x80] sm:$0xff]
      %v1875 = vld [vmem:[#allocation11 + $0x88] sm:$0xff]
      %v1876 = vld [vmem:[#allocation11 + $0x90] sm:$0xff]
      %v1877 = vld [vmem:[#allocation11 + $0x98] sm:$0xff]
      %v1878 = vld [vmem:[#allocation11 + $0xa0] sm:$0xff]
      %v1879 = vld [vmem:[#allocation11 + $0xa8] sm:$0xff]
      %v1880 = vld [vmem:[#allocation11 + $0xb0] sm:$0xff]
      %v1881 = vld [vmem:[#allocation11 + $0xb8] sm:$0xff]
      %v1882 = vld [vmem:[#allocation11 + $0xc0] sm:$0xff]
      %v1883 = vld [vmem:[#allocation11 + $0xc8] sm:$0xff]
      %v1884 = vld [vmem:[#allocation11 + $0xd0] sm:$0xff]
      %v1885 = vld [vmem:[#allocation11 + $0xd8] sm:$0xff]
      %v1886 = vld [vmem:[#allocation11 + $0xe0] sm:$0xff]
      %v1887 = vld [vmem:[#allocation11 + $0xe8] sm:$0xff]
      %v1888 = vld [vmem:[#allocation11 + $0xf0] sm:$0xff]
      %v1889 = vld [vmem:[#allocation11 + $0xf8] sm:$0xff]
      %v1890 = vld [vmem:[%s13] sm:$0x3]
      %v1892 = vlaneseq
      %v1893 = vshrl.u32 %v1892, 7
      %v1894 = vsub.s32 0, %v1893
      %v1895 = vrot.slane %v1890, %v1894
      %v1896 = vlaneseq
      %v1897 = vshrl.u32 %v1896, 7
      %v1898 = vsub.s32 1, %v1897
      %v1899 = vrot.slane %v1890, %v1898
      %v1934 = vunpack.c.l.b16 %v1858
      %v1935 = vunpack.c.h.b16 %v1858
      %v1936 = vunpack.c.l.b16 %v1859
      %v1937 = vunpack.c.h.b16 %v1859
      %v1938 = vunpack.c.l.b16 %v1860
      %v1939 = vunpack.c.h.b16 %v1860
      %v1940 = vunpack.c.l.b16 %v1861
      %v1941 = vunpack.c.h.b16 %v1861
      %v1942 = vunpack.c.l.b16 %v1862
      %v1943 = vunpack.c.h.b16 %v1862
      %v1944 = vunpack.c.l.b16 %v1863
      %v1945 = vunpack.c.h.b16 %v1863
      %v1946 = vunpack.c.l.b16 %v1864
      %v1947 = vunpack.c.h.b16 %v1864
      %v1948 = vunpack.c.l.b16 %v1865
      %v1949 = vunpack.c.h.b16 %v1865
      %v1950 = vunpack.c.l.b16 %v1866
      %v1951 = vunpack.c.h.b16 %v1866
      %v1952 = vunpack.c.l.b16 %v1867
      %v1953 = vunpack.c.h.b16 %v1867
      %v1954 = vunpack.c.l.b16 %v1868
      %v1955 = vunpack.c.h.b16 %v1868
      %v1956 = vunpack.c.l.b16 %v1869
      %v1957 = vunpack.c.h.b16 %v1869
      %v1958 = vunpack.c.l.b16 %v1870
      %v1959 = vunpack.c.h.b16 %v1870
      %v1960 = vunpack.c.l.b16 %v1871
      %v1961 = vunpack.c.h.b16 %v1871
      %v1962 = vunpack.c.l.b16 %v1872
      %v1963 = vunpack.c.h.b16 %v1872
      %v1964 = vunpack.c.l.b16 %v1873
      %v1965 = vunpack.c.h.b16 %v1873
      %v1966 = vunpack.c.l.b16 %v1874
      %v1967 = vunpack.c.h.b16 %v1874
      %v1968 = vunpack.c.l.b16 %v1875
      %v1969 = vunpack.c.h.b16 %v1875
      %v1970 = vunpack.c.l.b16 %v1876
      %v1971 = vunpack.c.h.b16 %v1876
      %v1972 = vunpack.c.l.b16 %v1877
      %v1973 = vunpack.c.h.b16 %v1877
      %v1974 = vunpack.c.l.b16 %v1878
      %v1975 = vunpack.c.h.b16 %v1878
      %v1976 = vunpack.c.l.b16 %v1879
      %v1977 = vunpack.c.h.b16 %v1879
      %v1978 = vunpack.c.l.b16 %v1880
      %v1979 = vunpack.c.h.b16 %v1880
      %v1980 = vunpack.c.l.b16 %v1881
      %v1981 = vunpack.c.h.b16 %v1881
      %v1982 = vunpack.c.l.b16 %v1882
      %v1983 = vunpack.c.h.b16 %v1882
      %v1984 = vunpack.c.l.b16 %v1883
      %v1985 = vunpack.c.h.b16 %v1883
      %v1986 = vunpack.c.l.b16 %v1884
      %v1987 = vunpack.c.h.b16 %v1884
      %v1988 = vunpack.c.l.b16 %v1885
      %v1989 = vunpack.c.h.b16 %v1885
      %v1990 = vunpack.c.l.b16 %v1886
      %v1991 = vunpack.c.h.b16 %v1886
      %v1992 = vunpack.c.l.b16 %v1887
      %v1993 = vunpack.c.h.b16 %v1887
      %v1994 = vunpack.c.l.b16 %v1888
      %v1995 = vunpack.c.h.b16 %v1888
      %v1996 = vunpack.c.l.b16 %v1889
      %v1997 = vunpack.c.h.b16 %v1889
      %v1998 = vpack.c.b16 %v1936, %v1934
      %v1999 = vpack.c.b16 %v1937, %v1935
      %v2000 = vpack.c.b16 %v1940, %v1938
      %v2001 = vpack.c.b16 %v1941, %v1939
      %v2002 = vpack.c.b16 %v1944, %v1942
      %v2003 = vpack.c.b16 %v1945, %v1943
      %v2004 = vpack.c.b16 %v1948, %v1946
      %v2005 = vpack.c.b16 %v1949, %v1947
      %v2006 = vpack.c.b16 %v1952, %v1950
      %v2007 = vpack.c.b16 %v1953, %v1951
      %v2008 = vpack.c.b16 %v1956, %v1954
      %v2009 = vpack.c.b16 %v1957, %v1955
      %v2010 = vpack.c.b16 %v1960, %v1958
      %v2011 = vpack.c.b16 %v1961, %v1959
      %v2012 = vpack.c.b16 %v1964, %v1962
      %v2013 = vpack.c.b16 %v1965, %v1963
      %v2014 = vpack.c.b16 %v1968, %v1966
      %v2015 = vpack.c.b16 %v1969, %v1967
      %v2016 = vpack.c.b16 %v1972, %v1970
      %v2017 = vpack.c.b16 %v1973, %v1971
      %v2018 = vpack.c.b16 %v1976, %v1974
      %v2019 = vpack.c.b16 %v1977, %v1975
      %v2020 = vpack.c.b16 %v1980, %v1978
      %v2021 = vpack.c.b16 %v1981, %v1979
      %v2022 = vpack.c.b16 %v1984, %v1982
      %v2023 = vpack.c.b16 %v1985, %v1983
      %v2024 = vpack.c.b16 %v1988, %v1986
      %v2025 = vpack.c.b16 %v1989, %v1987
      %v2026 = vpack.c.b16 %v1992, %v1990
      %v2027 = vpack.c.b16 %v1993, %v1991
      %v2028 = vpack.c.b16 %v1996, %v1994
      %v2029 = vpack.c.b16 %v1997, %v1995
      %2062 = vmatprep.subr.bf16.mxu0 %v2013
      %2063 = vmatpush1.bf16.msra.mxu0 %v2012
      %2064 = vmatprep.subr.bf16.mxu0 %v2011
      %2065 = vmatpush1.bf16.msra.mxu0 %v2010
      %2066 = vmatprep.subr.bf16.mxu0 %v2009
      %2067 = vmatpush1.bf16.msra.mxu0 %v2008
      %2068 = vmatprep.subr.bf16.mxu0 %v2007
      %2069 = vmatpush1.bf16.msra.mxu0 %v2006
      %2070 = vmatprep.subr.bf16.mxu0 %v2005
      %2071 = vmatpush1.bf16.msra.mxu0 %v2004
      %2072 = vmatprep.subr.bf16.mxu0 %v2003
      %2073 = vmatpush1.bf16.msra.mxu0 %v2002
      %2074 = vmatprep.subr.bf16.mxu0 %v2001
      %2075 = vmatpush1.bf16.msra.mxu0 %v2000
      %2076 = vmatprep.subr.bf16.mxu0 %v1999
      %2077 = vmatpush1.bf16.msra.mxu0 %v1998
      %2078 = vmatprep.subr.bf16.mxu0 %v2029
      %2079 = vmatpush2.bf16.msra.mxu0 %v2028
      %2080 = vmatprep.subr.bf16.mxu0 %v2027
      %2081 = vmatpush2.bf16.msra.mxu0 %v2026
      %2082 = vmatprep.subr.bf16.mxu0 %v2025
      %2083 = vmatpush2.bf16.msra.mxu0 %v2024
      %2084 = vmatprep.subr.bf16.mxu0 %v2023
      %2085 = vmatpush2.bf16.msra.mxu0 %v2022
      %2086 = vmatprep.subr.bf16.mxu0 %v2021
      %2087 = vmatpush2.bf16.msra.mxu0 %v2020
      %2088 = vmatprep.subr.bf16.mxu0 %v2019
      %2089 = vmatpush2.bf16.msra.mxu0 %v2018
      %2090 = vmatprep.subr.bf16.mxu0 %v2017
      %2091 = vmatpush2.bf16.msra.mxu0 %v2016
      %2092 = vmatprep.subr.bf16.mxu0 %v2015
      %2093 = vmatpush2.bf16.msra.mxu0 %v2014
      %2094 = vmatprep.mubr.bf16.mxu0 %v1857
      %2095 = vmatmul.mubr.bf16.gmra.mxu0 %v1856
      %v2096 = vpop.f32.mrf.mxu0
      %v2097 = vadd.f32 %v1895, %v2096
      %v2098 = vpop.f32.mrf.mxu0
      %v2099 = vadd.f32 %v1899, %v2098
      %v2100 = vpop.f32.mrf.mxu0
      %v2101 = vpop.f32.mrf.mxu0
      %2102 = vdwg.mxu0
      %v2103 = vmax.f32 %v2097, 0.0
      %v2104 = vmax.f32 %v2099, 0.0
      %v2105 = vpack.c.bf16 %v2103, %v2103
      %v2106 = vpack.c.bf16 %v2104, %v2104
      %v2107 = vld [vmem:[%s14] sm:$0xf]
      %v2108 = vld [vmem:[%s14 + $0x4] sm:$0xf]
      %v2109 = vld [vmem:[%s14 + $0x8] sm:$0xf]
      %v2110 = vld [vmem:[%s14 + $0xc] sm:$0xf]
      %v2111 = vld [vmem:[%s14 + $0x10] sm:$0xf]
      %v2112 = vld [vmem:[%s14 + $0x14] sm:$0xf]
      %v2113 = vld [vmem:[%s14 + $0x18] sm:$0xf]
      %v2114 = vld [vmem:[%s14 + $0x1c] sm:$0xf]
      %v2115 = vld [vmem:[%s14 + $0x20] sm:$0xf]
      %v2116 = vld [vmem:[%s14 + $0x24] sm:$0xf]
      %v2117 = vld [vmem:[%s14 + $0x28] sm:$0xf]
      %v2118 = vld [vmem:[%s14 + $0x2c] sm:$0xf]
      %v2119 = vld [vmem:[%s14 + $0x30] sm:$0xf]
      %v2120 = vld [vmem:[%s14 + $0x34] sm:$0xf]
      %v2121 = vld [vmem:[%s14 + $0x38] sm:$0xf]
      %v2122 = vld [vmem:[%s14 + $0x3c] sm:$0xf]
      %v2123 = vld [vmem:[%s14 + $0x40] sm:$0xf]
      %v2124 = vld [vmem:[%s14 + $0x44] sm:$0xf]
      %v2125 = vld [vmem:[%s14 + $0x48] sm:$0xf]
      %v2126 = vld [vmem:[%s14 + $0x4c] sm:$0xf]
      %v2127 = vld [vmem:[%s14 + $0x50] sm:$0xf]
      %v2128 = vld [vmem:[%s14 + $0x54] sm:$0xf]
      %v2129 = vld [vmem:[%s14 + $0x58] sm:$0xf]
      %v2130 = vld [vmem:[%s14 + $0x5c] sm:$0xf]
      %v2131 = vld [vmem:[%s14 + $0x60] sm:$0xf]
      %v2132 = vld [vmem:[%s14 + $0x64] sm:$0xf]
      %v2133 = vld [vmem:[%s14 + $0x68] sm:$0xf]
      %v2134 = vld [vmem:[%s14 + $0x6c] sm:$0xf]
      %v2135 = vld [vmem:[%s14 + $0x70] sm:$0xf]
      %v2136 = vld [vmem:[%s14 + $0x74] sm:$0xf]
      %v2137 = vld [vmem:[%s14 + $0x78] sm:$0xf]
      %v2138 = vld [vmem:[%s14 + $0x7c] sm:$0xf]
      %v2139 = vld [vmem:[%s15] sm:$0x1]
      %v2141 = vlaneseq
      %v2142 = vshrl.u32 %v2141, 7
      %v2143 = vsub.s32 0, %v2142
      %v2144 = vrot.slane %v2139, %v2143
      %v2178 = vunpack.c.l.b16 %v2107
      %v2179 = vunpack.c.l.b16 %v2108
      %v2180 = vunpack.c.l.b16 %v2109
      %v2181 = vunpack.c.l.b16 %v2110
      %v2182 = vunpack.c.l.b16 %v2111
      %v2183 = vunpack.c.l.b16 %v2112
      %v2184 = vunpack.c.l.b16 %v2113
      %v2185 = vunpack.c.l.b16 %v2114
      %v2186 = vunpack.c.l.b16 %v2115
      %v2187 = vunpack.c.l.b16 %v2116
      %v2188 = vunpack.c.l.b16 %v2117
      %v2189 = vunpack.c.l.b16 %v2118
      %v2190 = vunpack.c.l.b16 %v2119
      %v2191 = vunpack.c.l.b16 %v2120
      %v2192 = vunpack.c.l.b16 %v2121
      %v2193 = vunpack.c.l.b16 %v2122
      %v2194 = vunpack.c.l.b16 %v2123
      %v2195 = vunpack.c.l.b16 %v2124
      %v2196 = vunpack.c.l.b16 %v2125
      %v2197 = vunpack.c.l.b16 %v2126
      %v2198 = vunpack.c.l.b16 %v2127
      %v2199 = vunpack.c.l.b16 %v2128
      %v2200 = vunpack.c.l.b16 %v2129
      %v2201 = vunpack.c.l.b16 %v2130
      %v2202 = vunpack.c.l.b16 %v2131
      %v2203 = vunpack.c.l.b16 %v2132
      %v2204 = vunpack.c.l.b16 %v2133
      %v2205 = vunpack.c.l.b16 %v2134
      %v2206 = vunpack.c.l.b16 %v2135
      %v2207 = vunpack.c.l.b16 %v2136
      %v2208 = vunpack.c.l.b16 %v2137
      %v2209 = vunpack.c.l.b16 %v2138
      %v2210 = vpack.c.b16 %v2179, %v2178
      %v2211 = vpack.c.b16 %v2181, %v2180
      %v2212 = vpack.c.b16 %v2183, %v2182
      %v2213 = vpack.c.b16 %v2185, %v2184
      %v2214 = vpack.c.b16 %v2187, %v2186
      %v2215 = vpack.c.b16 %v2189, %v2188
      %v2216 = vpack.c.b16 %v2191, %v2190
      %v2217 = vpack.c.b16 %v2193, %v2192
      %v2218 = vpack.c.b16 %v2195, %v2194
      %v2219 = vpack.c.b16 %v2197, %v2196
      %v2220 = vpack.c.b16 %v2199, %v2198
      %v2221 = vpack.c.b16 %v2201, %v2200
      %v2222 = vpack.c.b16 %v2203, %v2202
      %v2223 = vpack.c.b16 %v2205, %v2204
      %v2224 = vpack.c.b16 %v2207, %v2206
      %v2225 = vpack.c.b16 %v2209, %v2208
      %2242 = vmatprep.subr.bf16.mxu0 0
      %2243 = vmatpush1.bf16.msra.mxu0 %v2217
      %2244 = vmatprep.subr.bf16.mxu0 0
      %2245 = vmatpush1.bf16.msra.mxu0 %v2216
      %2246 = vmatprep.subr.bf16.mxu0 0
      %2247 = vmatpush1.bf16.msra.mxu0 %v2215
      %2248 = vmatprep.subr.bf16.mxu0 0
      %2249 = vmatpush1.bf16.msra.mxu0 %v2214
      %2250 = vmatprep.subr.bf16.mxu0 0
      %2251 = vmatpush1.bf16.msra.mxu0 %v2213
      %2252 = vmatprep.subr.bf16.mxu0 0
      %2253 = vmatpush1.bf16.msra.mxu0 %v2212
      %2254 = vmatprep.subr.bf16.mxu0 0
      %2255 = vmatpush1.bf16.msra.mxu0 %v2211
      %2256 = vmatprep.subr.bf16.mxu0 0
      %2257 = vmatpush1.bf16.msra.mxu0 %v2210
      %2258 = vmatprep.subr.bf16.mxu0 0
      %2259 = vmatpush2.bf16.msra.mxu0 %v2225
      %2260 = vmatprep.subr.bf16.mxu0 0
      %2261 = vmatpush2.bf16.msra.mxu0 %v2224
      %2262 = vmatprep.subr.bf16.mxu0 0
      %2263 = vmatpush2.bf16.msra.mxu0 %v2223
      %2264 = vmatprep.subr.bf16.mxu0 0
      %2265 = vmatpush2.bf16.msra.mxu0 %v2222
      %2266 = vmatprep.subr.bf16.mxu0 0
      %2267 = vmatpush2.bf16.msra.mxu0 %v2221
      %2268 = vmatprep.subr.bf16.mxu0 0
      %2269 = vmatpush2.bf16.msra.mxu0 %v2220
      %2270 = vmatprep.subr.bf16.mxu0 0
      %2271 = vmatpush2.bf16.msra.mxu0 %v2219
      %2272 = vmatprep.subr.bf16.mxu0 0
      %2273 = vmatpush2.bf16.msra.mxu0 %v2218
      %2274 = vmatprep.mubr.bf16.mxu0 %v2106
      %2275 = vmatmul.mubr.bf16.gmra.mxu0 %v2105
      %v2276 = vpop.f32.mrf.mxu0
      %v2277 = vadd.f32 %v2144, %v2276
      %v2278 = vpop.f32.mrf.mxu0
      %v2279 = vpop.f32.mrf.mxu0
      %v2280 = vpop.f32.mrf.mxu0
      %2281 = vdwg.mxu0
      %v2282 = vmax.f32 %v2277, 0.0
      %v2283 = vpack.c.bf16 %v2282, %v2282
      %v2284 = vld [vmem:[#allocation13] sm:$0xf]
      %v2285 = vld [vmem:[#allocation13 + $0x4] sm:$0xf]
      %v2286 = vld [vmem:[#allocation13 + $0x8] sm:$0xf]
      %v2287 = vld [vmem:[#allocation13 + $0xc] sm:$0xf]
      %v2288 = vld [vmem:[#allocation13 + $0x10] sm:$0xf]
      %v2289 = vld [vmem:[#allocation13 + $0x14] sm:$0xf]
      %v2290 = vld [vmem:[#allocation13 + $0x18] sm:$0xf]
      %v2291 = vld [vmem:[#allocation13 + $0x1c] sm:$0xf]
      %v2292 = vld [vmem:[#allocation13 + $0x20] sm:$0xf]
      %v2293 = vld [vmem:[#allocation13 + $0x24] sm:$0xf]
      %v2294 = vld [vmem:[#allocation13 + $0x28] sm:$0xf]
      %v2295 = vld [vmem:[#allocation13 + $0x2c] sm:$0xf]
      %v2296 = vld [vmem:[#allocation13 + $0x30] sm:$0xf]
      %v2297 = vld [vmem:[#allocation13 + $0x34] sm:$0xf]
      %v2298 = vld [vmem:[#allocation13 + $0x38] sm:$0xf]
      %v2299 = vld [vmem:[#allocation13 + $0x3c] sm:$0xf]
      %v2300 = vld [vmem:[%s17] sm:$0x1]
      %v2302 = vlaneseq
      %v2303 = vshrl.u32 %v2302, 7
      %v2304 = vsub.s32 0, %v2303
      %v2305 = vrot.slane %v2300, %v2304
      %v2323 = vunpack.c.l.b16 %v2284
      %v2324 = vunpack.c.l.b16 %v2285
      %v2325 = vunpack.c.l.b16 %v2286
      %v2326 = vunpack.c.l.b16 %v2287
      %v2327 = vunpack.c.l.b16 %v2288
      %v2328 = vunpack.c.l.b16 %v2289
      %v2329 = vunpack.c.l.b16 %v2290
      %v2330 = vunpack.c.l.b16 %v2291
      %v2331 = vunpack.c.l.b16 %v2292
      %v2332 = vunpack.c.l.b16 %v2293
      %v2333 = vunpack.c.l.b16 %v2294
      %v2334 = vunpack.c.l.b16 %v2295
      %v2335 = vunpack.c.l.b16 %v2296
      %v2336 = vunpack.c.l.b16 %v2297
      %v2337 = vunpack.c.l.b16 %v2298
      %v2338 = vunpack.c.l.b16 %v2299
      %v2339 = vpack.c.b16 %v2324, %v2323
      %v2340 = vpack.c.b16 %v2326, %v2325
      %v2341 = vpack.c.b16 %v2328, %v2327
      %v2342 = vpack.c.b16 %v2330, %v2329
      %v2343 = vpack.c.b16 %v2332, %v2331
      %v2344 = vpack.c.b16 %v2334, %v2333
      %v2345 = vpack.c.b16 %v2336, %v2335
      %v2346 = vpack.c.b16 %v2338, %v2337
      %2355 = vmatprep.subr.bf16.mxu0 0
      %2356 = vmatpush1.bf16.msra.mxu0 %v2346
      %2357 = vmatprep.subr.bf16.mxu0 0
      %2358 = vmatpush1.bf16.msra.mxu0 %v2345
      %2359 = vmatprep.subr.bf16.mxu0 0
      %2360 = vmatpush1.bf16.msra.mxu0 %v2344
      %2361 = vmatprep.subr.bf16.mxu0 0
      %2362 = vmatpush1.bf16.msra.mxu0 %v2343
      %2363 = vmatprep.subr.bf16.mxu0 0
      %2364 = vmatpush1.bf16.msra.mxu0 %v2342
      %2365 = vmatprep.subr.bf16.mxu0 0
      %2366 = vmatpush1.bf16.msra.mxu0 %v2341
      %2367 = vmatprep.subr.bf16.mxu0 0
      %2368 = vmatpush1.bf16.msra.mxu0 %v2340
      %2369 = vmatprep.subr.bf16.mxu0 0
      %2370 = vmatpush1.bf16.msra.mxu0 %v2339
      %2371 = vmatprep.subr.bf16.mxu0 0
      %2372 = vmatpush2.bf16.msra.mxu0 0
      %2373 = vmatprep.subr.bf16.mxu0 0
      %2374 = vmatpush2.bf16.msra.mxu0 0
      %2375 = vmatprep.subr.bf16.mxu0 0
      %2376 = vmatpush2.bf16.msra.mxu0 0
      %2377 = vmatprep.subr.bf16.mxu0 0
      %2378 = vmatpush2.bf16.msra.mxu0 0
      %2379 = vmatprep.subr.bf16.mxu0 0
      %2380 = vmatpush2.bf16.msra.mxu0 0
      %2381 = vmatprep.subr.bf16.mxu0 0
      %2382 = vmatpush2.bf16.msra.mxu0 0
      %2383 = vmatprep.subr.bf16.mxu0 0
      %2384 = vmatpush2.bf16.msra.mxu0 0
      %2385 = vmatprep.subr.bf16.mxu0 0
      %2386 = vmatpush2.bf16.msra.mxu0 0
      %2387 = vmatprep.mubr.bf16.mxu0 0
      %2388 = vmatmul.mubr.bf16.gmra.mxu0 %v2283
      %v2389 = vpop.f32.mrf.mxu0
      %v2390 = vadd.f32 %v2305, %v2389
      %v2391 = vpop.f32.mrf.mxu0
      %v2392 = vpop.f32.mrf.mxu0
      %v2393 = vpop.f32.mrf.mxu0
      %2394 = vdwg.mxu0
      %v2395 = vmax.f32 %v2390, 0.0
      %v2396 = vpack.c.bf16 %v2395, %v2395
      %v2397 = vld [vmem:[#allocation15] sm:$0xf]
      %v2398 = vld [vmem:[#allocation15 + $0x4] sm:$0xf]
      %v2399 = vld [vmem:[#allocation15 + $0x8] sm:$0xf]
      %v2400 = vld [vmem:[#allocation15 + $0xc] sm:$0xf]
      %v2401 = vld [vmem:[#allocation15 + $0x10] sm:$0xf]
      %v2402 = vld [vmem:[#allocation15 + $0x14] sm:$0xf]
      %v2403 = vld [vmem:[#allocation15 + $0x18] sm:$0xf]
      %v2404 = vld [vmem:[#allocation15 + $0x1c] sm:$0xf]
      %v2405 = vld [vmem:[#allocation15 + $0x20] sm:$0xf]
      %v2406 = vld [vmem:[#allocation15 + $0x24] sm:$0xf]
      %v2407 = vld [vmem:[#allocation15 + $0x28] sm:$0xf]
      %v2408 = vld [vmem:[#allocation15 + $0x2c] sm:$0xf]
      %v2409 = vld [vmem:[#allocation15 + $0x30] sm:$0xf]
      %v2410 = vld [vmem:[#allocation15 + $0x34] sm:$0xf]
      %v2411 = vld [vmem:[#allocation15 + $0x38] sm:$0xf]
      %v2412 = vld [vmem:[#allocation15 + $0x3c] sm:$0xf]
      %v2413 = vld [vmem:[%s19] sm:$0x1]
      %v2415 = vlaneseq
      %v2416 = vshrl.u32 %v2415, 7
      %v2417 = vsub.s32 0, %v2416
      %v2418 = vrot.slane %v2413, %v2417
      %v2436 = vunpack.c.l.b16 %v2397
      %v2437 = vunpack.c.l.b16 %v2398
      %v2438 = vunpack.c.l.b16 %v2399
      %v2439 = vunpack.c.l.b16 %v2400
      %v2440 = vunpack.c.l.b16 %v2401
      %v2441 = vunpack.c.l.b16 %v2402
      %v2442 = vunpack.c.l.b16 %v2403
      %v2443 = vunpack.c.l.b16 %v2404
      %v2444 = vunpack.c.l.b16 %v2405
      %v2445 = vunpack.c.l.b16 %v2406
      %v2446 = vunpack.c.l.b16 %v2407
      %v2447 = vunpack.c.l.b16 %v2408
      %v2448 = vunpack.c.l.b16 %v2409
      %v2449 = vunpack.c.l.b16 %v2410
      %v2450 = vunpack.c.l.b16 %v2411
      %v2451 = vunpack.c.l.b16 %v2412
      %v2452 = vpack.c.b16 %v2437, %v2436
      %v2453 = vpack.c.b16 %v2439, %v2438
      %v2454 = vpack.c.b16 %v2441, %v2440
      %v2455 = vpack.c.b16 %v2443, %v2442
      %v2456 = vpack.c.b16 %v2445, %v2444
      %v2457 = vpack.c.b16 %v2447, %v2446
      %v2458 = vpack.c.b16 %v2449, %v2448
      %v2459 = vpack.c.b16 %v2451, %v2450
      %2468 = vmatprep.subr.bf16.mxu0 0
      %2469 = vmatpush1.bf16.msra.mxu0 %v2459
      %2470 = vmatprep.subr.bf16.mxu0 0
      %2471 = vmatpush1.bf16.msra.mxu0 %v2458
      %2472 = vmatprep.subr.bf16.mxu0 0
      %2473 = vmatpush1.bf16.msra.mxu0 %v2457
      %2474 = vmatprep.subr.bf16.mxu0 0
      %2475 = vmatpush1.bf16.msra.mxu0 %v2456
      %2476 = vmatprep.subr.bf16.mxu0 0
      %2477 = vmatpush1.bf16.msra.mxu0 %v2455
      %2478 = vmatprep.subr.bf16.mxu0 0
      %2479 = vmatpush1.bf16.msra.mxu0 %v2454
      %2480 = vmatprep.subr.bf16.mxu0 0
      %2481 = vmatpush1.bf16.msra.mxu0 %v2453
      %2482 = vmatprep.subr.bf16.mxu0 0
      %2483 = vmatpush1.bf16.msra.mxu0 %v2452
      %2484 = vmatprep.subr.bf16.mxu0 0
      %2485 = vmatpush2.bf16.msra.mxu0 0
      %2486 = vmatprep.subr.bf16.mxu0 0
      %2487 = vmatpush2.bf16.msra.mxu0 0
      %2488 = vmatprep.subr.bf16.mxu0 0
      %2489 = vmatpush2.bf16.msra.mxu0 0
      %2490 = vmatprep.subr.bf16.mxu0 0
      %2491 = vmatpush2.bf16.msra.mxu0 0
      %2492 = vmatprep.subr.bf16.mxu0 0
      %2493 = vmatpush2.bf16.msra.mxu0 0
      %2494 = vmatprep.subr.bf16.mxu0 0
      %2495 = vmatpush2.bf16.msra.mxu0 0
      %2496 = vmatprep.subr.bf16.mxu0 0
      %2497 = vmatpush2.bf16.msra.mxu0 0
      %2498 = vmatprep.subr.bf16.mxu0 0
      %2499 = vmatpush2.bf16.msra.mxu0 0
      %2500 = vmatprep.mubr.bf16.mxu0 0
      %2501 = vmatmul.mubr.bf16.gmra.mxu0 %v2396
      %v2502 = vpop.f32.mrf.mxu0
      %v2503 = vadd.f32 %v2418, %v2502
      %v2504 = vpop.f32.mrf.mxu0
      %v2505 = vpop.f32.mrf.mxu0
      %v2506 = vpop.f32.mrf.mxu0
      %2507 = vdwg.mxu0
      %v2508 = vmax.f32 %v2503, 0.0
      %v2509 = vpack.c.bf16 %v2508, %v2508
      %v2510 = vld [vmem:[#allocation16] sm:$0xf]
      %v2511 = vld [vmem:[#allocation16 + $0x4] sm:$0xf]
      %v2512 = vld [vmem:[#allocation16 + $0x8] sm:$0xf]
      %v2513 = vld [vmem:[#allocation16 + $0xc] sm:$0xf]
      %v2514 = vld [vmem:[#allocation16 + $0x10] sm:$0xf]
      %v2515 = vld [vmem:[#allocation16 + $0x14] sm:$0xf]
      %v2516 = vld [vmem:[#allocation16 + $0x18] sm:$0xf]
      %v2517 = vld [vmem:[#allocation16 + $0x1c] sm:$0xf]
      %v2518 = vld [vmem:[#allocation16 + $0x20] sm:$0xf]
      %v2519 = vld [vmem:[#allocation16 + $0x24] sm:$0xf]
      %v2520 = vld [vmem:[#allocation16 + $0x28] sm:$0xf]
      %v2521 = vld [vmem:[#allocation16 + $0x2c] sm:$0xf]
      %v2522 = vld [vmem:[#allocation16 + $0x30] sm:$0xf]
      %v2523 = vld [vmem:[#allocation16 + $0x34] sm:$0xf]
      %v2524 = vld [vmem:[#allocation16 + $0x38] sm:$0xf]
      %v2525 = vld [vmem:[#allocation16 + $0x3c] sm:$0xf]
      %v2526 = vld [vmem:[%s21] sm:$0x1]
      %v2528 = vlaneseq
      %v2529 = vshrl.u32 %v2528, 7
      %v2530 = vsub.s32 0, %v2529
      %v2531 = vrot.slane %v2526, %v2530
      %v2549 = vunpack.c.l.b16 %v2510
      %v2550 = vunpack.c.l.b16 %v2511
      %v2551 = vunpack.c.l.b16 %v2512
      %v2552 = vunpack.c.l.b16 %v2513
      %v2553 = vunpack.c.l.b16 %v2514
      %v2554 = vunpack.c.l.b16 %v2515
      %v2555 = vunpack.c.l.b16 %v2516
      %v2556 = vunpack.c.l.b16 %v2517
      %v2557 = vunpack.c.l.b16 %v2518
      %v2558 = vunpack.c.l.b16 %v2519
      %v2559 = vunpack.c.l.b16 %v2520
      %v2560 = vunpack.c.l.b16 %v2521
      %v2561 = vunpack.c.l.b16 %v2522
      %v2562 = vunpack.c.l.b16 %v2523
      %v2563 = vunpack.c.l.b16 %v2524
      %v2564 = vunpack.c.l.b16 %v2525
      %v2565 = vpack.c.b16 %v2550, %v2549
      %v2566 = vpack.c.b16 %v2552, %v2551
      %v2567 = vpack.c.b16 %v2554, %v2553
      %v2568 = vpack.c.b16 %v2556, %v2555
      %v2569 = vpack.c.b16 %v2558, %v2557
      %v2570 = vpack.c.b16 %v2560, %v2559
      %v2571 = vpack.c.b16 %v2562, %v2561
      %v2572 = vpack.c.b16 %v2564, %v2563
      %2581 = vmatprep.subr.bf16.mxu0 0
      %2582 = vmatpush1.bf16.msra.mxu0 %v2572
      %2583 = vmatprep.subr.bf16.mxu0 0
      %2584 = vmatpush1.bf16.msra.mxu0 %v2571
      %2585 = vmatprep.subr.bf16.mxu0 0
      %2586 = vmatpush1.bf16.msra.mxu0 %v2570
      %2587 = vmatprep.subr.bf16.mxu0 0
      %2588 = vmatpush1.bf16.msra.mxu0 %v2569
      %2589 = vmatprep.subr.bf16.mxu0 0
      %2590 = vmatpush1.bf16.msra.mxu0 %v2568
      %2591 = vmatprep.subr.bf16.mxu0 0
      %2592 = vmatpush1.bf16.msra.mxu0 %v2567
      %2593 = vmatprep.subr.bf16.mxu0 0
      %2594 = vmatpush1.bf16.msra.mxu0 %v2566
      %2595 = vmatprep.subr.bf16.mxu0 0
      %2596 = vmatpush1.bf16.msra.mxu0 %v2565
      %2597 = vmatprep.subr.bf16.mxu0 0
      %2598 = vmatpush2.bf16.msra.mxu0 0
      %2599 = vmatprep.subr.bf16.mxu0 0
      %2600 = vmatpush2.bf16.msra.mxu0 0
      %2601 = vmatprep.subr.bf16.mxu0 0
      %2602 = vmatpush2.bf16.msra.mxu0 0
      %2603 = vmatprep.subr.bf16.mxu0 0
      %2604 = vmatpush2.bf16.msra.mxu0 0
      %2605 = vmatprep.subr.bf16.mxu0 0
      %2606 = vmatpush2.bf16.msra.mxu0 0
      %2607 = vmatprep.subr.bf16.mxu0 0
      %2608 = vmatpush2.bf16.msra.mxu0 0
      %2609 = vmatprep.subr.bf16.mxu0 0
      %2610 = vmatpush2.bf16.msra.mxu0 0
      %2611 = vmatprep.subr.bf16.mxu0 0
      %2612 = vmatpush2.bf16.msra.mxu0 0
      %2613 = vmatprep.mubr.bf16.mxu0 0
      %2614 = vmatmul.mubr.bf16.gmra.mxu0 %v2509
      %v2615 = vpop.f32.mrf.mxu0
      %v2616 = vadd.f32 %v2531, %v2615
      %v2617 = vpop.f32.mrf.mxu0
      %v2618 = vpop.f32.mrf.mxu0
      %v2619 = vpop.f32.mrf.mxu0
      %2620 = vdwg.mxu0
      %v2621 = vmax.f32 %v2616, 0.0
      %v2622 = vpack.c.bf16 %v2621, %v2621
      %v2623 = vld [vmem:[%s22] sm:$0xf]
      %v2624 = vld [vmem:[%s22 + $0x4] sm:$0xf]
      %v2625 = vld [vmem:[%s22 + $0x8] sm:$0xf]
      %v2626 = vld [vmem:[%s22 + $0xc] sm:$0xf]
      %v2627 = vld [vmem:[%s22 + $0x10] sm:$0xf]
      %v2628 = vld [vmem:[%s22 + $0x14] sm:$0xf]
      %v2629 = vld [vmem:[%s22 + $0x18] sm:$0xf]
      %v2630 = vld [vmem:[%s22 + $0x1c] sm:$0xf]
      %v2631 = vld [vmem:[%s22 + $0x20] sm:$0xf]
      %v2632 = vld [vmem:[%s22 + $0x24] sm:$0xf]
      %v2633 = vld [vmem:[%s22 + $0x28] sm:$0xf]
      %v2634 = vld [vmem:[%s22 + $0x2c] sm:$0xf]
      %v2635 = vld [vmem:[%s22 + $0x30] sm:$0xf]
      %v2636 = vld [vmem:[%s22 + $0x34] sm:$0xf]
      %v2637 = vld [vmem:[%s22 + $0x38] sm:$0xf]
      %v2638 = vld [vmem:[%s22 + $0x3c] sm:$0xf]
      %v2639 = vld [vmem:[#allocation10] sm:$0x1]
      %v2641 = vlaneseq
      %v2642 = vshrl.u32 %v2641, 7
      %v2643 = vsub.s32 0, %v2642
      %v2644 = vrot.slane %v2639, %v2643
      %v2662 = vunpack.c.l.b16 %v2623
      %v2663 = vunpack.c.l.b16 %v2624
      %v2664 = vunpack.c.l.b16 %v2625
      %v2665 = vunpack.c.l.b16 %v2626
      %v2666 = vunpack.c.l.b16 %v2627
      %v2667 = vunpack.c.l.b16 %v2628
      %v2668 = vunpack.c.l.b16 %v2629
      %v2669 = vunpack.c.l.b16 %v2630
      %v2670 = vunpack.c.l.b16 %v2631
      %v2671 = vunpack.c.l.b16 %v2632
      %v2672 = vunpack.c.l.b16 %v2633
      %v2673 = vunpack.c.l.b16 %v2634
      %v2674 = vunpack.c.l.b16 %v2635
      %v2675 = vunpack.c.l.b16 %v2636
      %v2676 = vunpack.c.l.b16 %v2637
      %v2677 = vunpack.c.l.b16 %v2638
      %v2678 = vpack.c.b16 %v2663, %v2662
      %v2679 = vpack.c.b16 %v2665, %v2664
      %v2680 = vpack.c.b16 %v2667, %v2666
      %v2681 = vpack.c.b16 %v2669, %v2668
      %v2682 = vpack.c.b16 %v2671, %v2670
      %v2683 = vpack.c.b16 %v2673, %v2672
      %v2684 = vpack.c.b16 %v2675, %v2674
      %v2685 = vpack.c.b16 %v2677, %v2676
      %2694 = vmatprep.subr.bf16.mxu0 0
      %2695 = vmatpush1.bf16.msra.mxu0 %v2685
      %2696 = vmatprep.subr.bf16.mxu0 0
      %2697 = vmatpush1.bf16.msra.mxu0 %v2684
      %2698 = vmatprep.subr.bf16.mxu0 0
      %2699 = vmatpush1.bf16.msra.mxu0 %v2683
      %2700 = vmatprep.subr.bf16.mxu0 0
      %2701 = vmatpush1.bf16.msra.mxu0 %v2682
      %2702 = vmatprep.subr.bf16.mxu0 0
      %2703 = vmatpush1.bf16.msra.mxu0 %v2681
      %2704 = vmatprep.subr.bf16.mxu0 0
      %2705 = vmatpush1.bf16.msra.mxu0 %v2680
      %2706 = vmatprep.subr.bf16.mxu0 0
      %2707 = vmatpush1.bf16.msra.mxu0 %v2679
      %2708 = vmatprep.subr.bf16.mxu0 0
      %2709 = vmatpush1.bf16.msra.mxu0 %v2678
      %2710 = vmatprep.subr.bf16.mxu0 0
      %2711 = vmatpush2.bf16.msra.mxu0 0
      %2712 = vmatprep.subr.bf16.mxu0 0
      %2713 = vmatpush2.bf16.msra.mxu0 0
      %2714 = vmatprep.subr.bf16.mxu0 0
      %2715 = vmatpush2.bf16.msra.mxu0 0
      %2716 = vmatprep.subr.bf16.mxu0 0
      %2717 = vmatpush2.bf16.msra.mxu0 0
      %2718 = vmatprep.subr.bf16.mxu0 0
      %2719 = vmatpush2.bf16.msra.mxu0 0
      %2720 = vmatprep.subr.bf16.mxu0 0
      %2721 = vmatpush2.bf16.msra.mxu0 0
      %2722 = vmatprep.subr.bf16.mxu0 0
      %2723 = vmatpush2.bf16.msra.mxu0 0
      %2724 = vmatprep.subr.bf16.mxu0 0
      %2725 = vmatpush2.bf16.msra.mxu0 0
      %2726 = vmatprep.mubr.bf16.mxu0 0
      %2727 = vmatmul.mubr.bf16.gmra.mxu0 %v2622
      %v2728 = vpop.f32.mrf.mxu0
      %v2729 = vadd.f32 %v2644, %v2728
      %v2730 = vpop.f32.mrf.mxu0
      %v2731 = vpop.f32.mrf.mxu0
      %v2732 = vpop.f32.mrf.mxu0
      %2733 = vdwg.mxu0
      %2735 = vrot.lane.b32.xlu0 %v1836, 76
      %v2736 = vpop.permute.xlu0 %2735
      %v2738 = vadd.f32 %v2729, %v2736
      %vm2739 = vcmask 7168
      %2740 = vst.msk [vmem:[%s24] sm:$0xff] %vm2739, %v2738
    $region117: #{route_select_forward.1} parent=1 // pred_fallthru
      _
    // Predicated region
    $region118: #{route_select_forward.1} parent=1 // pred_check
      _
    $region119: #{route_select_forward.1} parent=1 // pred_check_branch
      %2742 = sbr.rel (0) target = $region121
    $region120: #{route_select_forward.1} parent=1 // pred_region
      _
    $region121: #{route_select_forward.1} parent=1 // pred_fallthru
      _
    // Predicated region
    $region122: #{route_select_forward.1} parent=1 // pred_check
      _
    $region123: #{route_select_forward.1} parent=1 // pred_check_branch
      %2744 = sbr.rel (0) target = $region125
    $region124: #{route_select_forward.1} parent=1 // pred_region
      _
    $region125: #{route_select_forward.1} parent=1 // pred_fallthru
      _
    %2745 = vsyncpa [#allocation12], 1
    %2746 = vsyncpa [#allocation14], 1
    %2747 = vsyncpa [#allocation17], 1

</llo_original>
